<compile_context>
chip_gen: v7x
topology: tpu7x:2x2x1
jax: 0.10.0
libtpu: 0.0.40
codegen_flags: <defaults>
</compile_context>

<pallas_src>
import functools

import jax
import jax.numpy as jnp
from jax.experimental import pallas as pl
from jax.experimental.pallas import tpu as pltpu

BN_EPS = 1e-5
K = 4  # every ConvTranspose2d in this decoder uses kernel_size=4


def calculate_output_shape(shape, kernel_size, stride, padding):
    return tuple((s + 2 * padding - kernel_size) // stride + 1 for s in shape)


# ------------------------------ Pallas kernels ------------------------------ #

def _sigmoid_f32(x):
    # Exact sigmoid: exp runs on the EUP; keep SiLU bit-faithful before each matmul
    # (approx reciprocal dropped per correctness review).
    return 1.0 / (1.0 + jnp.exp(-x))


def head_kernel(z_ref, lw_ref, lb_ref, w1_ref, o_ref):
    # Fused: Linear (bf16 MXU, f32 acc) + bias + SiLU (f32) + ConvT(256->128,1x1)
    # expressed as a second lane-dense matmul.  Intermediate [B,256] stays on-chip.
    h = jnp.dot(z_ref[...].astype(jnp.bfloat16), lw_ref[...],
                preferred_element_type=jnp.float32) + lb_ref[...]
    a = h * _sigmoid_f32(h)                                   # SiLU, f32
    o_ref[...] = jnp.dot(a.astype(jnp.bfloat16), w1_ref[...],
                         preferred_element_type=jnp.float32).astype(o_ref.dtype)


def bn_silu_matmul_kernel(x_ref, g_ref, b_ref, w_ref, o_ref):
    # Fused: BatchNorm2d (train-mode batch stats over rows of the NHWC slab) +
    # SiLU, then the next ConvTranspose layer's matmul.  BN/SiLU in f32,
    # dot in bf16 with f32 accumulation, bf16 lane-dense store.
    x = x_ref[...].astype(jnp.float32)                        # [M, C]
    mean = jnp.mean(x, axis=0, keepdims=True)
    d = x - mean
    var = jnp.mean(d * d, axis=0, keepdims=True)              # two-pass, biased var
    xn = d * jax.lax.rsqrt(var + BN_EPS) * g_ref[...] + b_ref[...]
    a = xn * _sigmoid_f32(xn)                                 # SiLU
    o_ref[...] = jnp.dot(a.astype(jnp.bfloat16), w_ref[...],
                         preferred_element_type=jnp.float32).astype(o_ref.dtype)


# ----------------------------- Pallas wrappers ------------------------------ #

def _full_spec(shape):
    # Single block == full array; every operand here is tiny (<1 MiB weights,
    # <0.5 MiB activations at B=2) and the last dim is either a multiple of 128
    # or the full array extent.  Fits v5e's 16 MiB scoped-VMEM default easily.
    return pl.BlockSpec(shape, lambda i: (0,) * len(shape))


def _call(kernel, inputs, out_shape):
    return pl.pallas_call(
        kernel,
        grid=(1,),
        in_specs=[_full_spec(a.shape) for a in inputs],
        out_specs=_full_spec(out_shape.shape),
        out_shape=out_shape,
        compiler_params=pltpu.CompilerParams(dimension_semantics=("arbitrary",)),
    )(*inputs)


def pallas_head(z, lin_w, lin_b, w1):
    out = jax.ShapeDtypeStruct((z.shape[0], w1.shape[1]), jnp.bfloat16)
    return _call(head_kernel, (z, lin_w, lin_b, w1), out)


def pallas_bn_silu_matmul(x, gamma, beta, w):
    out = jax.ShapeDtypeStruct((x.shape[0], w.shape[1]), jnp.bfloat16)
    return _call(bn_silu_matmul_kernel, (x, gamma, beta, w), out)


# ------------------------- col2im (overlap-add) glue ------------------------- #

def col2im_s2(y, B, IH, IW, OC):
    """Overlap-add for ConvTranspose2d with K=4, stride=2, padding=1.

    y: [B*IH*IW, K*K*OC] with column order (kh, kw, oc).
    Returns (flattened NHWC output [B*OH*OW, OC], OH, OW).
    Gather/scatter-free (static slices, pads, adds, interleaves) so XLA fuses it
    cheaply under jit; runs in the handoff dtype (bf16).
    """
    y6 = y.reshape(B, IH, IW, K, K, OC)
    # Parity (sub-pixel) decomposition along H:
    #   out[2j]   = y[j,   kh=1] + y[j-1, kh=3]
    #   out[2j+1] = y[j+1, kh=0] + y[j,   kh=2]
    even_h = y6[:, :, :, 1] + jnp.pad(
        y6[:, :-1, :, 3], ((0, 0), (1, 0), (0, 0), (0, 0), (0, 0)))
    odd_h = jnp.pad(
        y6[:, 1:, :, 0], ((0, 0), (0, 1), (0, 0), (0, 0), (0, 0))) + y6[:, :, :, 2]
    h = jnp.stack([even_h, odd_h], axis=2).reshape(B, 2 * IH, IW, K, OC)
    # Same decomposition along W:
    even_w = h[:, :, :, 1] + jnp.pad(
        h[:, :, :-1, 3], ((0, 0), (0, 0), (1, 0), (0, 0)))
    odd_w = jnp.pad(
        h[:, :, 1:, 0], ((0, 0), (0, 0), (0, 1), (0, 0))) + h[:, :, :, 2]
    out = jnp.stack([even_w, odd_w], axis=3).reshape(B, 2 * IH, 2 * IW, OC)
    OH, OW = 2 * IH, 2 * IW
    return out.reshape(B * OH * OW, OC), OH, OW


# -------------------------------- parameters -------------------------------- #

def _convt_weight_to_mat(w, pad_cols_to=None):
    """PyTorch ConvTranspose2d weight [IC, OC, K, K] -> bf16 [IC, K*K*OC]
    (column order (kh, kw, oc)), optionally zero-padded to a lane-dense width."""
    ic = w.shape[0]
    m = jnp.transpose(w, (0, 2, 3, 1)).reshape(ic, K * K * w.shape[1])
    if pad_cols_to is not None and pad_cols_to > m.shape[1]:
        m = jnp.pad(m, ((0, 0), (0, pad_cols_to - m.shape[1])))
    return m.astype(jnp.bfloat16)


def init_params(key, num_latent_units, input_shape):
    oshape = input_shape
    for (k, s, p) in [(4, 2, 1), (4, 2, 1), (4, 2, 1), (4, 1, 0)]:
        oshape = calculate_output_shape(oshape, k, s, p)
    oh, ow = oshape
    lin_out = 256 * oh * ow

    ks = jax.random.split(key, 12)
    nrm = lambda k, shape, s=0.05: s * jax.random.normal(k, shape, jnp.float32)
    params = {
        "lin_w": nrm(ks[0], (num_latent_units, lin_out)).astype(jnp.bfloat16),
        "lin_b": nrm(ks[1], (1, lin_out)),
        # ConvTranspose2d weights pre-laid-out as [IC, K*K*OC] bf16 matrices.
        "w1": _convt_weight_to_mat(nrm(ks[2], (256, 128, K, K))),            # N=2048
        "w2": _convt_weight_to_mat(nrm(ks[3], (128, 64, K, K))),             # N=1024
        "w3": _convt_weight_to_mat(nrm(ks[4], (64, 32, K, K))),              # N=512
        "w4": _convt_weight_to_mat(nrm(ks[5], (32, 3, K, K)), pad_cols_to=128),
        "g1": 1.0 + nrm(ks[6], (1, 128), 0.1), "b1": nrm(ks[7], (1, 128), 0.1),
        "g2": 1.0 + nrm(ks[8], (1, 64), 0.1),  "b2": nrm(ks[9], (1, 64), 0.1),
        "g3": 1.0 + nrm(ks[10], (1, 32), 0.1), "b3": nrm(ks[11], (1, 32), 0.1),
        "log_scale": jnp.zeros((1,), jnp.float32),        # nn.Parameter(zeros(1))
    }
    return params, (oh, ow)


# --------------------------------- forward ---------------------------------- #

@functools.partial(jax.jit, static_argnames=("oh", "ow"))
def image_decoder_forward(z, params, *, oh, ow):
    assert oh == 1 and ow == 1, "fused head kernel assumes a 1x1 Unflatten spatial"
    B = z.shape[0]

    # Fused Pallas kernel: Linear + SiLU + ConvT(256->128, s=1, p=0) matmul.
    # Output columns are ordered (kh, kw, oc); with a 1x1 input the ConvT needs no
    # overlap-add, so NHWC assembly is a plain reshape in the jit-fused glue.
    y = pallas_head(z, params["lin_w"], params["lin_b"], params["w1"])   # [B, 2048]
    a = y.reshape(B * K * K, 128)                                        # [B*16, 128]
    H = W = K

    # BN(128)+SiLU fused into ConvT(128->64, s=2, p=1) matmul, then overlap-add.
    y = pallas_bn_silu_matmul(a, params["g1"], params["b1"], params["w2"])
    a, H, W = col2im_s2(y, B, H, W, 64)

    # BN(64)+SiLU fused into ConvT(64->32, s=2, p=1) matmul, then overlap-add.
    y = pallas_bn_silu_matmul(a, params["g2"], params["b2"], params["w3"])
    a, H, W = col2im_s2(y, B, H, W, 32)

    # BN(32)+SiLU fused into ConvT(32->3, s=2, p=1) matmul (weight zero-padded to
    # 128 lane-dense columns; drop the padding before the overlap-add).
    y = pallas_bn_silu_matmul(a, params["g3"], params["b3"], params["w4"])
    a, H, W = col2im_s2(y[:, : 3 * K * K], B, H, W, 3)

    # Final sigmoid + the single NHWC->NCHW boundary transpose stay in XLA glue
    # (they fuse with the last overlap-add under jit; a dedicated Pallas kernel
    # here would be pure dispatch overhead).
    img = jax.nn.sigmoid(a.astype(jnp.float32)).reshape(B, H, W, 3)
    img = img.transpose(0, 3, 1, 2)
    return img, params["log_scale"]


# ----------------------------------- main ------------------------------------ #

if __name__ == "__main__":
    INPUT_SHAPE = (32, 32)     # image W, H -> unflatten spatial becomes (1, 1)
    NUM_LATENT = 32
    BATCH = 2

    root = jax.random.PRNGKey(0)
    k_params, k_z = jax.random.split(root)
    params, (oh, ow) = init_params(k_params, NUM_LATENT, INPUT_SHAPE)
    z = jax.random.normal(k_z, (BATCH, NUM_LATENT), jnp.float32)

    img, log_scale = image_decoder_forward(z, params, oh=oh, ow=ow)
    jax.block_until_ready(img)
    jax.block_until_ready(log_scale)

    assert img.shape == (BATCH, 3, INPUT_SHAPE[0], INPUT_SHAPE[1]), img.shape
    assert log_scale.shape == (1,)
    assert bool(jnp.all(jnp.isfinite(img)))
    assert bool(jnp.all((img >= 0.0) & (img <= 1.0)))   # sigmoid output range
    print("KERNEL_OK")
</pallas_src>

<mosaic_0001>
module attributes {stable_mosaic.version = 11 : i64} {
  func.func @bn_silu_matmul_kernel(%arg0: i32, %arg1: memref<32x128xbf16, #tpu.memory_space<vmem>>, %arg2: memref<1x128xf32, #tpu.memory_space<vmem>>, %arg3: memref<1x128xf32, #tpu.memory_space<vmem>>, %arg4: memref<128x1024xbf16, #tpu.memory_space<vmem>>, %arg5: memref<32x1024xbf16, #tpu.memory_space<vmem>>) attributes {dimension_semantics = [#tpu.dimension_semantics<arbitrary>], iteration_bounds = array<i64: 1>, scalar_prefetch = 0 : i64, scratch_operands = 0 : i64, tpu.core_type = #tpu.core_type<tc>, window_params = [{pipeline_mode = #tpu.pipeline_mode<synchronous>, transform_indices = @transform_0, window_bounds = array<i64: 32, 128>}, {pipeline_mode = #tpu.pipeline_mode<synchronous>, transform_indices = @transform_1, window_bounds = array<i64: 1, 128>}, {pipeline_mode = #tpu.pipeline_mode<synchronous>, transform_indices = @transform_2, window_bounds = array<i64: 1, 128>}, {pipeline_mode = #tpu.pipeline_mode<synchronous>, transform_indices = @transform_3, window_bounds = array<i64: 128, 1024>}, {pipeline_mode = #tpu.pipeline_mode<synchronous>, transform_indices = @transform_4, window_bounds = array<i64: 32, 1024>}]} {
    %c0 = arith.constant 0 : index
    %c0_0 = arith.constant 0 : index
    %0 = vector.load %arg1[%c0, %c0_0] : memref<32x128xbf16, #tpu.memory_space<vmem>>, vector<32x128xbf16>
    %1 = arith.extf %0 : vector<32x128xbf16> to vector<32x128xf32>
    %cst = arith.constant dense<0.000000e+00> : vector<128xf32>
    %2 = vector.multi_reduction <add>, %1, %cst [0] : vector<32x128xf32> to vector<128xf32>
    %3 = vector.shape_cast %2 : vector<128xf32> to vector<1x128xf32>
    %cst_1 = arith.constant 3.200000e+01 : f32
    %4 = vector.broadcast %cst_1 : f32 to vector<1x128xf32>
    %5 = arith.divf %3, %4 : vector<1x128xf32>
    %6 = vector.broadcast %5 : vector<1x128xf32> to vector<32x128xf32>
    %7 = arith.subf %1, %6 : vector<32x128xf32>
    %8 = arith.mulf %7, %7 : vector<32x128xf32>
    %cst_2 = arith.constant dense<0.000000e+00> : vector<128xf32>
    %9 = vector.multi_reduction <add>, %8, %cst_2 [0] : vector<32x128xf32> to vector<128xf32>
    %10 = vector.shape_cast %9 : vector<128xf32> to vector<1x128xf32>
    %cst_3 = arith.constant 3.200000e+01 : f32
    %11 = vector.broadcast %cst_3 : f32 to vector<1x128xf32>
    %12 = arith.divf %10, %11 : vector<1x128xf32>
    %cst_4 = arith.constant 9.99999974E-6 : f32
    %13 = vector.broadcast %cst_4 : f32 to vector<1x128xf32>
    %14 = arith.addf %12, %13 : vector<1x128xf32>
    %15 = math.rsqrt %14 : vector<1x128xf32>
    %16 = vector.broadcast %15 : vector<1x128xf32> to vector<32x128xf32>
    %17 = arith.mulf %7, %16 : vector<32x128xf32>
    %c0_5 = arith.constant 0 : index
    %c0_6 = arith.constant 0 : index
    %18 = vector.load %arg2[%c0_5, %c0_6] : memref<1x128xf32, #tpu.memory_space<vmem>>, vector<1x128xf32>
    %19 = vector.broadcast %18 : vector<1x128xf32> to vector<32x128xf32>
    %20 = arith.mulf %17, %19 : vector<32x128xf32>
    %c0_7 = arith.constant 0 : index
    %c0_8 = arith.constant 0 : index
    %21 = vector.load %arg3[%c0_7, %c0_8] : memref<1x128xf32, #tpu.memory_space<vmem>>, vector<1x128xf32>
    %22 = vector.broadcast %21 : vector<1x128xf32> to vector<32x128xf32>
    %23 = arith.addf %20, %22 : vector<32x128xf32>
    %cst_9 = arith.constant 0.000000e+00 : f32
    %24 = vector.broadcast %cst_9 : f32 to vector<32x128xf32>
    %25 = arith.subf %24, %23 : vector<32x128xf32>
    %26 = math.exp %25 : vector<32x128xf32>
    %cst_10 = arith.constant 1.000000e+00 : f32
    %27 = vector.broadcast %cst_10 : f32 to vector<32x128xf32>
    %28 = arith.addf %27, %26 : vector<32x128xf32>
    %cst_11 = arith.constant 1.000000e+00 : f32
    %29 = vector.broadcast %cst_11 : f32 to vector<32x128xf32>
    %30 = arith.divf %29, %28 : vector<32x128xf32>
    %31 = arith.mulf %23, %30 : vector<32x128xf32>
    %32 = arith.truncf %31 : vector<32x128xf32> to vector<32x128xbf16>
    %c0_12 = arith.constant 0 : index
    %c0_13 = arith.constant 0 : index
    %33 = vector.load %arg4[%c0_12, %c0_13] : memref<128x1024xbf16, #tpu.memory_space<vmem>>, vector<128x1024xbf16>
    %cst_14 = arith.constant dense<0.000000e+00> : vector<32x1024xf32>
    %34 = tpu.matmul %32, %33, %cst_14 {dimension_numbers = #tpu.dot_dimension_numbers<[1], [0], [0], [1], [0, 0, 1, 1], [], []>} : vector<32x128xbf16>, vector<128x1024xbf16>, vector<32x1024xf32> -> vector<32x1024xf32>
    %35 = arith.truncf %34 : vector<32x1024xf32> to vector<32x1024xbf16>
    %c0_15 = arith.constant 0 : index
    %c0_16 = arith.constant 0 : index
    %36 = vector.load %arg5[%c0_15, %c0_16] : memref<32x1024xbf16, #tpu.memory_space<vmem>>, vector<32x1024xbf16>
    tpu.vector_store %arg5[%c0_15, %c0_16], %35 {strides = array<i32>} : memref<32x1024xbf16, #tpu.memory_space<vmem>>, vector<32x1024xbf16>,
    return
  }
  func.func @transform_0(%arg0: i32) -> (i32, i32) {
    %c0_i32 = arith.constant 0 : i32
    %c0_i32_0 = arith.constant 0 : i32
    %c0_i32_1 = arith.constant 0 : i32
    return %c0_i32, %c0_i32_0 : i32, i32
  }
  func.func @transform_1(%arg0: i32) -> (i32, i32) {
    %c0_i32 = arith.constant 0 : i32
    %c0_i32_0 = arith.constant 0 : i32
    %c0_i32_1 = arith.constant 0 : i32
    return %c0_i32, %c0_i32_0 : i32, i32
  }
  func.func @transform_2(%arg0: i32) -> (i32, i32) {
    %c0_i32 = arith.constant 0 : i32
    %c0_i32_0 = arith.constant 0 : i32
    %c0_i32_1 = arith.constant 0 : i32
    return %c0_i32, %c0_i32_0 : i32, i32
  }
  func.func @transform_3(%arg0: i32) -> (i32, i32) {
    %c0_i32 = arith.constant 0 : i32
    %c0_i32_0 = arith.constant 0 : i32
    %c0_i32_1 = arith.constant 0 : i32
    return %c0_i32, %c0_i32_0 : i32, i32
  }
  func.func @transform_4(%arg0: i32) -> (i32, i32) {
    %c0_i32 = arith.constant 0 : i32
    %c0_i32_0 = arith.constant 0 : i32
    %c0_i32_1 = arith.constant 0 : i32
    return %c0_i32, %c0_i32_0 : i32, i32
  }
}

module attributes {stable_mosaic.version = 11 : i64} {
  func.func @head_kernel(%arg0: i32, %arg1: memref<2x32xf32, #tpu.memory_space<vmem>>, %arg2: memref<32x256xbf16, #tpu.memory_space<vmem>>, %arg3: memref<1x256xf32, #tpu.memory_space<vmem>>, %arg4: memref<256x2048xbf16, #tpu.memory_space<vmem>>, %arg5: memref<2x2048xbf16, #tpu.memory_space<vmem>>) attributes {dimension_semantics = [#tpu.dimension_semantics<arbitrary>], iteration_bounds = array<i64: 1>, scalar_prefetch = 0 : i64, scratch_operands = 0 : i64, tpu.core_type = #tpu.core_type<tc>, window_params = [{pipeline_mode = #tpu.pipeline_mode<synchronous>, transform_indices = @transform_0, window_bounds = array<i64: 2, 32>}, {pipeline_mode = #tpu.pipeline_mode<synchronous>, transform_indices = @transform_1, window_bounds = array<i64: 32, 256>}, {pipeline_mode = #tpu.pipeline_mode<synchronous>, transform_indices = @transform_2, window_bounds = array<i64: 1, 256>}, {pipeline_mode = #tpu.pipeline_mode<synchronous>, transform_indices = @transform_3, window_bounds = array<i64: 256, 2048>}, {pipeline_mode = #tpu.pipeline_mode<synchronous>, transform_indices = @transform_4, window_bounds = array<i64: 2, 2048>}]} {
    %c0 = arith.constant 0 : index
    %c0_0 = arith.constant 0 : index
    %0 = vector.load %arg1[%c0, %c0_0] : memref<2x32xf32, #tpu.memory_space<vmem>>, vector<2x32xf32>
    %1 = arith.truncf %0 : vector<2x32xf32> to vector<2x32xbf16>
    %c0_1 = arith.constant 0 : index
    %c0_2 = arith.constant 0 : index
    %2 = vector.load %arg2[%c0_1, %c0_2] : memref<32x256xbf16, #tpu.memory_space<vmem>>, vector<32x256xbf16>
    %cst = arith.constant dense<0.000000e+00> : vector<2x256xf32>
    %3 = tpu.matmul %1, %2, %cst {dimension_numbers = #tpu.dot_dimension_numbers<[1], [0], [0], [1], [0, 0, 1, 1], [], []>} : vector<2x32xbf16>, vector<32x256xbf16>, vector<2x256xf32> -> vector<2x256xf32>
    %c0_3 = arith.constant 0 : index
    %c0_4 = arith.constant 0 : index
    %4 = vector.load %arg3[%c0_3, %c0_4] : memref<1x256xf32, #tpu.memory_space<vmem>>, vector<1x256xf32>
    %5 = vector.broadcast %4 : vector<1x256xf32> to vector<2x256xf32>
    %6 = arith.addf %3, %5 : vector<2x256xf32>
    %cst_5 = arith.constant 0.000000e+00 : f32
    %7 = vector.broadcast %cst_5 : f32 to vector<2x256xf32>
    %8 = arith.subf %7, %6 : vector<2x256xf32>
    %9 = math.exp %8 : vector<2x256xf32>
    %cst_6 = arith.constant 1.000000e+00 : f32
    %10 = vector.broadcast %cst_6 : f32 to vector<2x256xf32>
    %11 = arith.addf %10, %9 : vector<2x256xf32>
    %cst_7 = arith.constant 1.000000e+00 : f32
    %12 = vector.broadcast %cst_7 : f32 to vector<2x256xf32>
    %13 = arith.divf %12, %11 : vector<2x256xf32>
    %14 = arith.mulf %6, %13 : vector<2x256xf32>
    %15 = arith.truncf %14 : vector<2x256xf32> to vector<2x256xbf16>
    %c0_8 = arith.constant 0 : index
    %c0_9 = arith.constant 0 : index
    %16 = vector.load %arg4[%c0_8, %c0_9] : memref<256x2048xbf16, #tpu.memory_space<vmem>>, vector<256x2048xbf16>
    %cst_10 = arith.constant dense<0.000000e+00> : vector<2x2048xf32>
    %17 = tpu.matmul %15, %16, %cst_10 {dimension_numbers = #tpu.dot_dimension_numbers<[1], [0], [0], [1], [0, 0, 1, 1], [], []>} : vector<2x256xbf16>, vector<256x2048xbf16>, vector<2x2048xf32> -> vector<2x2048xf32>
    %18 = arith.truncf %17 : vector<2x2048xf32> to vector<2x2048xbf16>
    %c0_11 = arith.constant 0 : index
    %c0_12 = arith.constant 0 : index
    %19 = vector.load %arg5[%c0_11, %c0_12] : memref<2x2048xbf16, #tpu.memory_space<vmem>>, vector<2x2048xbf16>
    tpu.vector_store %arg5[%c0_11, %c0_12], %18 {strides = array<i32>} : memref<2x2048xbf16, #tpu.memory_space<vmem>>, vector<2x2048xbf16>,
    return
  }
  func.func @transform_0(%arg0: i32) -> (i32, i32) {
    %c0_i32 = arith.constant 0 : i32
    %c0_i32_0 = arith.constant 0 : i32
    %c0_i32_1 = arith.constant 0 : i32
    return %c0_i32, %c0_i32_0 : i32, i32
  }
  func.func @transform_1(%arg0: i32) -> (i32, i32) {
    %c0_i32 = arith.constant 0 : i32
    %c0_i32_0 = arith.constant 0 : i32
    %c0_i32_1 = arith.constant 0 : i32
    return %c0_i32, %c0_i32_0 : i32, i32
  }
  func.func @transform_2(%arg0: i32) -> (i32, i32) {
    %c0_i32 = arith.constant 0 : i32
    %c0_i32_0 = arith.constant 0 : i32
    %c0_i32_1 = arith.constant 0 : i32
    return %c0_i32, %c0_i32_0 : i32, i32
  }
  func.func @transform_3(%arg0: i32) -> (i32, i32) {
    %c0_i32 = arith.constant 0 : i32
    %c0_i32_0 = arith.constant 0 : i32
    %c0_i32_1 = arith.constant 0 : i32
    return %c0_i32, %c0_i32_0 : i32, i32
  }
  func.func @transform_4(%arg0: i32) -> (i32, i32) {
    %c0_i32 = arith.constant 0 : i32
    %c0_i32_0 = arith.constant 0 : i32
    %c0_i32_1 = arith.constant 0 : i32
    return %c0_i32, %c0_i32_0 : i32, i32
  }
}

module attributes {stable_mosaic.version = 11 : i64} {
  func.func @bn_silu_matmul_kernel(%arg0: i32, %arg1: memref<128x64xbf16, #tpu.memory_space<vmem>>, %arg2: memref<1x64xf32, #tpu.memory_space<vmem>>, %arg3: memref<1x64xf32, #tpu.memory_space<vmem>>, %arg4: memref<64x512xbf16, #tpu.memory_space<vmem>>, %arg5: memref<128x512xbf16, #tpu.memory_space<vmem>>) attributes {dimension_semantics = [#tpu.dimension_semantics<arbitrary>], iteration_bounds = array<i64: 1>, scalar_prefetch = 0 : i64, scratch_operands = 0 : i64, tpu.core_type = #tpu.core_type<tc>, window_params = [{pipeline_mode = #tpu.pipeline_mode<synchronous>, transform_indices = @transform_0, window_bounds = array<i64: 128, 64>}, {pipeline_mode = #tpu.pipeline_mode<synchronous>, transform_indices = @transform_1, window_bounds = array<i64: 1, 64>}, {pipeline_mode = #tpu.pipeline_mode<synchronous>, transform_indices = @transform_2, window_bounds = array<i64: 1, 64>}, {pipeline_mode = #tpu.pipeline_mode<synchronous>, transform_indices = @transform_3, window_bounds = array<i64: 64, 512>}, {pipeline_mode = #tpu.pipeline_mode<synchronous>, transform_indices = @transform_4, window_bounds = array<i64: 128, 512>}]} {
    %c0 = arith.constant 0 : index
    %c0_0 = arith.constant 0 : index
    %0 = vector.load %arg1[%c0, %c0_0] : memref<128x64xbf16, #tpu.memory_space<vmem>>, vector<128x64xbf16>
    %1 = arith.extf %0 : vector<128x64xbf16> to vector<128x64xf32>
    %cst = arith.constant dense<0.000000e+00> : vector<64xf32>
    %2 = vector.multi_reduction <add>, %1, %cst [0] : vector<128x64xf32> to vector<64xf32>
    %3 = vector.shape_cast %2 : vector<64xf32> to vector<1x64xf32>
    %cst_1 = arith.constant 1.280000e+02 : f32
    %4 = vector.broadcast %cst_1 : f32 to vector<1x64xf32>
    %5 = arith.divf %3, %4 : vector<1x64xf32>
    %6 = vector.broadcast %5 : vector<1x64xf32> to vector<128x64xf32>
    %7 = arith.subf %1, %6 : vector<128x64xf32>
    %8 = arith.mulf %7, %7 : vector<128x64xf32>
    %cst_2 = arith.constant dense<0.000000e+00> : vector<64xf32>
    %9 = vector.multi_reduction <add>, %8, %cst_2 [0] : vector<128x64xf32> to vector<64xf32>
    %10 = vector.shape_cast %9 : vector<64xf32> to vector<1x64xf32>
    %cst_3 = arith.constant 1.280000e+02 : f32
    %11 = vector.broadcast %cst_3 : f32 to vector<1x64xf32>
    %12 = arith.divf %10, %11 : vector<1x64xf32>
    %cst_4 = arith.constant 9.99999974E-6 : f32
    %13 = vector.broadcast %cst_4 : f32 to vector<1x64xf32>
    %14 = arith.addf %12, %13 : vector<1x64xf32>
    %15 = math.rsqrt %14 : vector<1x64xf32>
    %16 = vector.broadcast %15 : vector<1x64xf32> to vector<128x64xf32>
    %17 = arith.mulf %7, %16 : vector<128x64xf32>
    %c0_5 = arith.constant 0 : index
    %c0_6 = arith.constant 0 : index
    %18 = vector.load %arg2[%c0_5, %c0_6] : memref<1x64xf32, #tpu.memory_space<vmem>>, vector<1x64xf32>
    %19 = vector.broadcast %18 : vector<1x64xf32> to vector<128x64xf32>
    %20 = arith.mulf %17, %19 : vector<128x64xf32>
    %c0_7 = arith.constant 0 : index
    %c0_8 = arith.constant 0 : index
    %21 = vector.load %arg3[%c0_7, %c0_8] : memref<1x64xf32, #tpu.memory_space<vmem>>, vector<1x64xf32>
    %22 = vector.broadcast %21 : vector<1x64xf32> to vector<128x64xf32>
    %23 = arith.addf %20, %22 : vector<128x64xf32>
    %cst_9 = arith.constant 0.000000e+00 : f32
    %24 = vector.broadcast %cst_9 : f32 to vector<128x64xf32>
    %25 = arith.subf %24, %23 : vector<128x64xf32>
    %26 = math.exp %25 : vector<128x64xf32>
    %cst_10 = arith.constant 1.000000e+00 : f32
    %27 = vector.broadcast %cst_10 : f32 to vector<128x64xf32>
    %28 = arith.addf %27, %26 : vector<128x64xf32>
    %cst_11 = arith.constant 1.000000e+00 : f32
    %29 = vector.broadcast %cst_11 : f32 to vector<128x64xf32>
    %30 = arith.divf %29, %28 : vector<128x64xf32>
    %31 = arith.mulf %23, %30 : vector<128x64xf32>
    %32 = arith.truncf %31 : vector<128x64xf32> to vector<128x64xbf16>
    %c0_12 = arith.constant 0 : index
    %c0_13 = arith.constant 0 : index
    %33 = vector.load %arg4[%c0_12, %c0_13] : memref<64x512xbf16, #tpu.memory_space<vmem>>, vector<64x512xbf16>
    %cst_14 = arith.constant dense<0.000000e+00> : vector<128x512xf32>
    %34 = tpu.matmul %32, %33, %cst_14 {dimension_numbers = #tpu.dot_dimension_numbers<[1], [0], [0], [1], [0, 0, 1, 1], [], []>} : vector<128x64xbf16>, vector<64x512xbf16>, vector<128x512xf32> -> vector<128x512xf32>
    %35 = arith.truncf %34 : vector<128x512xf32> to vector<128x512xbf16>
    %c0_15 = arith.constant 0 : index
    %c0_16 = arith.constant 0 : index
    %36 = vector.load %arg5[%c0_15, %c0_16] : memref<128x512xbf16, #tpu.memory_space<vmem>>, vector<128x512xbf16>
    tpu.vector_store %arg5[%c0_15, %c0_16], %35 {strides = array<i32>} : memref<128x512xbf16, #tpu.memory_space<vmem>>, vector<128x512xbf16>,
    return
  }
  func.func @transform_0(%arg0: i32) -> (i32, i32) {
    %c0_i32 = arith.constant 0 : i32
    %c0_i32_0 = arith.constant 0 : i32
    %c0_i32_1 = arith.constant 0 : i32
    return %c0_i32, %c0_i32_0 : i32, i32
  }
  func.func @transform_1(%arg0: i32) -> (i32, i32) {
    %c0_i32 = arith.constant 0 : i32
    %c0_i32_0 = arith.constant 0 : i32
    %c0_i32_1 = arith.constant 0 : i32
    return %c0_i32, %c0_i32_0 : i32, i32
  }
  func.func @transform_2(%arg0: i32) -> (i32, i32) {
    %c0_i32 = arith.constant 0 : i32
    %c0_i32_0 = arith.constant 0 : i32
    %c0_i32_1 = arith.constant 0 : i32
    return %c0_i32, %c0_i32_0 : i32, i32
  }
  func.func @transform_3(%arg0: i32) -> (i32, i32) {
    %c0_i32 = arith.constant 0 : i32
    %c0_i32_0 = arith.constant 0 : i32
    %c0_i32_1 = arith.constant 0 : i32
    return %c0_i32, %c0_i32_0 : i32, i32
  }
  func.func @transform_4(%arg0: i32) -> (i32, i32) {
    %c0_i32 = arith.constant 0 : i32
    %c0_i32_0 = arith.constant 0 : i32
    %c0_i32_1 = arith.constant 0 : i32
    return %c0_i32, %c0_i32_0 : i32, i32
  }
}

module attributes {stable_mosaic.version = 11 : i64} {
  func.func @bn_silu_matmul_kernel(%arg0: i32, %arg1: memref<512x32xbf16, #tpu.memory_space<vmem>>, %arg2: memref<1x32xf32, #tpu.memory_space<vmem>>, %arg3: memref<1x32xf32, #tpu.memory_space<vmem>>, %arg4: memref<32x128xbf16, #tpu.memory_space<vmem>>, %arg5: memref<512x128xbf16, #tpu.memory_space<vmem>>) attributes {dimension_semantics = [#tpu.dimension_semantics<arbitrary>], iteration_bounds = array<i64: 1>, scalar_prefetch = 0 : i64, scratch_operands = 0 : i64, tpu.core_type = #tpu.core_type<tc>, window_params = [{pipeline_mode = #tpu.pipeline_mode<synchronous>, transform_indices = @transform_0, window_bounds = array<i64: 512, 32>}, {pipeline_mode = #tpu.pipeline_mode<synchronous>, transform_indices = @transform_1, window_bounds = array<i64: 1, 32>}, {pipeline_mode = #tpu.pipeline_mode<synchronous>, transform_indices = @transform_2, window_bounds = array<i64: 1, 32>}, {pipeline_mode = #tpu.pipeline_mode<synchronous>, transform_indices = @transform_3, window_bounds = array<i64: 32, 128>}, {pipeline_mode = #tpu.pipeline_mode<synchronous>, transform_indices = @transform_4, window_bounds = array<i64: 512, 128>}]} {
    %c0 = arith.constant 0 : index
    %c0_0 = arith.constant 0 : index
    %0 = vector.load %arg1[%c0, %c0_0] : memref<512x32xbf16, #tpu.memory_space<vmem>>, vector<512x32xbf16>
    %1 = arith.extf %0 : vector<512x32xbf16> to vector<512x32xf32>
    %cst = arith.constant dense<0.000000e+00> : vector<32xf32>
    %2 = vector.multi_reduction <add>, %1, %cst [0] : vector<512x32xf32> to vector<32xf32>
    %3 = vector.shape_cast %2 : vector<32xf32> to vector<1x32xf32>
    %cst_1 = arith.constant 5.120000e+02 : f32
    %4 = vector.broadcast %cst_1 : f32 to vector<1x32xf32>
    %5 = arith.divf %3, %4 : vector<1x32xf32>
    %6 = vector.broadcast %5 : vector<1x32xf32> to vector<512x32xf32>
    %7 = arith.subf %1, %6 : vector<512x32xf32>
    %8 = arith.mulf %7, %7 : vector<512x32xf32>
    %cst_2 = arith.constant dense<0.000000e+00> : vector<32xf32>
    %9 = vector.multi_reduction <add>, %8, %cst_2 [0] : vector<512x32xf32> to vector<32xf32>
    %10 = vector.shape_cast %9 : vector<32xf32> to vector<1x32xf32>
    %cst_3 = arith.constant 5.120000e+02 : f32
    %11 = vector.broadcast %cst_3 : f32 to vector<1x32xf32>
    %12 = arith.divf %10, %11 : vector<1x32xf32>
    %cst_4 = arith.constant 9.99999974E-6 : f32
    %13 = vector.broadcast %cst_4 : f32 to vector<1x32xf32>
    %14 = arith.addf %12, %13 : vector<1x32xf32>
    %15 = math.rsqrt %14 : vector<1x32xf32>
    %16 = vector.broadcast %15 : vector<1x32xf32> to vector<512x32xf32>
    %17 = arith.mulf %7, %16 : vector<512x32xf32>
    %c0_5 = arith.constant 0 : index
    %c0_6 = arith.constant 0 : index
    %18 = vector.load %arg2[%c0_5, %c0_6] : memref<1x32xf32, #tpu.memory_space<vmem>>, vector<1x32xf32>
    %19 = vector.broadcast %18 : vector<1x32xf32> to vector<512x32xf32>
    %20 = arith.mulf %17, %19 : vector<512x32xf32>
    %c0_7 = arith.constant 0 : index
    %c0_8 = arith.constant 0 : index
    %21 = vector.load %arg3[%c0_7, %c0_8] : memref<1x32xf32, #tpu.memory_space<vmem>>, vector<1x32xf32>
    %22 = vector.broadcast %21 : vector<1x32xf32> to vector<512x32xf32>
    %23 = arith.addf %20, %22 : vector<512x32xf32>
    %cst_9 = arith.constant 0.000000e+00 : f32
    %24 = vector.broadcast %cst_9 : f32 to vector<512x32xf32>
    %25 = arith.subf %24, %23 : vector<512x32xf32>
    %26 = math.exp %25 : vector<512x32xf32>
    %cst_10 = arith.constant 1.000000e+00 : f32
    %27 = vector.broadcast %cst_10 : f32 to vector<512x32xf32>
    %28 = arith.addf %27, %26 : vector<512x32xf32>
    %cst_11 = arith.constant 1.000000e+00 : f32
    %29 = vector.broadcast %cst_11 : f32 to vector<512x32xf32>
    %30 = arith.divf %29, %28 : vector<512x32xf32>
    %31 = arith.mulf %23, %30 : vector<512x32xf32>
    %32 = arith.truncf %31 : vector<512x32xf32> to vector<512x32xbf16>
    %c0_12 = arith.constant 0 : index
    %c0_13 = arith.constant 0 : index
    %33 = vector.load %arg4[%c0_12, %c0_13] : memref<32x128xbf16, #tpu.memory_space<vmem>>, vector<32x128xbf16>
    %cst_14 = arith.constant dense<0.000000e+00> : vector<512x128xf32>
    %34 = tpu.matmul %32, %33, %cst_14 {dimension_numbers = #tpu.dot_dimension_numbers<[1], [0], [0], [1], [0, 0, 1, 1], [], []>} : vector<512x32xbf16>, vector<32x128xbf16>, vector<512x128xf32> -> vector<512x128xf32>
    %35 = arith.truncf %34 : vector<512x128xf32> to vector<512x128xbf16>
    %c0_15 = arith.constant 0 : index
    %c0_16 = arith.constant 0 : index
    %36 = vector.load %arg5[%c0_15, %c0_16] : memref<512x128xbf16, #tpu.memory_space<vmem>>, vector<512x128xbf16>
    tpu.vector_store %arg5[%c0_15, %c0_16], %35 {strides = array<i32>} : memref<512x128xbf16, #tpu.memory_space<vmem>>, vector<512x128xbf16>,
    return
  }
  func.func @transform_0(%arg0: i32) -> (i32, i32) {
    %c0_i32 = arith.constant 0 : i32
    %c0_i32_0 = arith.constant 0 : i32
    %c0_i32_1 = arith.constant 0 : i32
    return %c0_i32, %c0_i32_0 : i32, i32
  }
  func.func @transform_1(%arg0: i32) -> (i32, i32) {
    %c0_i32 = arith.constant 0 : i32
    %c0_i32_0 = arith.constant 0 : i32
    %c0_i32_1 = arith.constant 0 : i32
    return %c0_i32, %c0_i32_0 : i32, i32
  }
  func.func @transform_2(%arg0: i32) -> (i32, i32) {
    %c0_i32 = arith.constant 0 : i32
    %c0_i32_0 = arith.constant 0 : i32
    %c0_i32_1 = arith.constant 0 : i32
    return %c0_i32, %c0_i32_0 : i32, i32
  }
  func.func @transform_3(%arg0: i32) -> (i32, i32) {
    %c0_i32 = arith.constant 0 : i32
    %c0_i32_0 = arith.constant 0 : i32
    %c0_i32_1 = arith.constant 0 : i32
    return %c0_i32, %c0_i32_0 : i32, i32
  }
  func.func @transform_4(%arg0: i32) -> (i32, i32) {
    %c0_i32 = arith.constant 0 : i32
    %c0_i32_0 = arith.constant 0 : i32
    %c0_i32_1 = arith.constant 0 : i32
    return %c0_i32, %c0_i32_0 : i32, i32
  }
}

</mosaic_0001>

<llo_original>
// kernel: image_decoder_forward.5
$region0: #{image_decoder_forward.5}
  #allocation0 [shape = 'u32[]', space=smem, size = 0x4, offset = 0x4, fixed_abs, tag = 'smem constant byte address 0x4 - core index']
  #allocation1 [shape = 'u32[144,128]{1,0:T(1,128)}', space=vmem, size = 0x12000, scoped, tag = 'internal scratch']
  %s0 = inlined_call_operand.vmem [shape: bf16[32,128], index: 0, kind: input, shape index: {}]
  %s1 = inlined_call_operand.vmem [shape: f32[1,128], index: 1, kind: input, shape index: {}]
  %s2 = inlined_call_operand.vmem [shape: f32[1,128], index: 2, kind: input, shape index: {}]
  %s3 = inlined_call_operand.vmem [shape: bf16[128,1024], index: 3, kind: input, shape index: {}]
  %s4 = inlined_call_operand.vmem [shape: bf16[32,1024], index: 4, kind: output, shape index: {}]
  %s5 = sld [smem:[#allocation0]]
  $region26: #{image_decoder_forward.5} parent=0
    _
  %s7 = ssub.s32 1, %s5
  %s8 = scalar_select 0, %s7, %s5
  // Predicated region
  $region2: #{image_decoder_forward.5} parent=0 // pred_check
    _
  $region3: #{image_decoder_forward.5} parent=0 // pred_check_branch
    %10 = sbr.rel (0) target = $region5
  $region4: #{image_decoder_forward.5} parent=0 // pred_region
    _
  $region5: #{image_decoder_forward.5} parent=0 // pred_fallthru
    _
  // Predicated region
  $region6: #{image_decoder_forward.5} parent=0 // pred_check
    _
  $region7: #{image_decoder_forward.5} parent=0 // pred_check_branch
    %12 = sbr.rel (0) target = $region9
  $region8: #{image_decoder_forward.5} parent=0 // pred_region
    _
  $region9: #{image_decoder_forward.5} parent=0 // pred_fallthru
    _
  // Predicated region
  $region10: #{image_decoder_forward.5} parent=0 // pred_check
    _
  $region11: #{image_decoder_forward.5} parent=0 // pred_check_branch
    %14 = sbr.rel (0) target = $region13
  $region12: #{image_decoder_forward.5} parent=0 // pred_region
    _
  $region13: #{image_decoder_forward.5} parent=0 // pred_fallthru
    _
  // Predicated region
  $region14: #{image_decoder_forward.5} parent=0 // pred_check
    _
  $region15: #{image_decoder_forward.5} parent=0 // pred_check_branch
    %16 = sbr.rel (0) target = $region17
  $region16: #{image_decoder_forward.5} parent=0 // pred_region
    _
  $region17: #{image_decoder_forward.5} parent=0 // pred_fallthru
    _
  %v18 = vld [vmem:[%s0] sm:$0xf]
  %v19 = vld [vmem:[%s0 + $0x4] sm:$0xf]
  %v20 = vld [vmem:[%s0 + $0x8] sm:$0xf]
  %v21 = vld [vmem:[%s0 + $0xc] sm:$0xf]
  %v22 = vunpack.c.l.bf16 %v18
  %v23 = vunpack.c.l.bf16 %v19
  %v24 = vunpack.c.l.bf16 %v20
  %v25 = vunpack.c.l.bf16 %v21
  %v26 = vadd.f32 %v22, %v23
  %v27 = vadd.f32 %v26, %v24
  %v28 = vadd.f32 %v27, %v25
  %v29 = vrot.slane %v28, 4
  %v30 = vadd.f32 %v28, %v29
  %v31 = vrot.slane %v30, 2
  %v32 = vadd.f32 %v30, %v31
  %v33 = vrot.slane %v32, 1
  %v34 = vadd.f32 %v32, %v33
  %v35 = vrcp.pop 32.0
  %v36 = vmul.f32 %v34, %v35
  %v37 = vsub.f32 %v22, %v36
  %v38 = vsub.f32 %v23, %v36
  %v39 = vsub.f32 %v24, %v36
  %v40 = vsub.f32 %v25, %v36
  %v41 = vmul.f32 %v37, %v37
  %v42 = vmul.f32 %v38, %v38
  %v43 = vmul.f32 %v39, %v39
  %v44 = vmul.f32 %v40, %v40
  %v45 = vadd.f32 %v41, %v42
  %v46 = vadd.f32 %v45, %v43
  %v47 = vadd.f32 %v46, %v44
  %v48 = vrot.slane %v47, 4
  %v49 = vadd.f32 %v47, %v48
  %v50 = vrot.slane %v49, 2
  %v51 = vadd.f32 %v49, %v50
  %v52 = vrot.slane %v51, 1
  %v53 = vadd.f32 %v51, %v52
  %v54 = vmul.f32 %v53, %v35
  %v55 = vadd.f32 %v54, 1e-05
  %v56 = vrsqrt.pop %v55
  %v57 = vmul.f32 %v37, %v56
  %v58 = vmul.f32 %v38, %v56
  %v59 = vmul.f32 %v39, %v56
  %v60 = vmul.f32 %v40, %v56
  %v61 = vld [vmem:[%s1] sm:$0x1]
  %v63 = vlaneseq
  %v64 = vshrl.u32 %v63, 7
  %v65 = vsub.s32 0, %v64
  %v66 = vrot.slane %v61, %v65
  %v68 = vmul.f32 %v57, %v66
  %v69 = vmul.f32 %v58, %v66
  %v70 = vmul.f32 %v59, %v66
  %v71 = vmul.f32 %v60, %v66
  %v72 = vld [vmem:[%s2] sm:$0x1]
  %v74 = vlaneseq
  %v75 = vshrl.u32 %v74, 7
  %v76 = vsub.s32 0, %v75
  %v77 = vrot.slane %v72, %v76
  %v79 = vadd.f32 %v68, %v77
  %v80 = vadd.f32 %v69, %v77
  %v81 = vadd.f32 %v70, %v77
  %v82 = vadd.f32 %v71, %v77
  %v83 = vsub.f32 0.0, %v79
  %v84 = vsub.f32 0.0, %v80
  %v85 = vsub.f32 0.0, %v81
  %v86 = vsub.f32 0.0, %v82
  %v87 = vmul.f32 %v83, 1.442695
  %v88 = vpow.pop %v87
  %v89 = vmul.f32 %v84, 1.442695
  %v90 = vpow.pop %v89
  %v91 = vmul.f32 %v85, 1.442695
  %v92 = vpow.pop %v91
  %v93 = vmul.f32 %v86, 1.442695
  %v94 = vpow.pop %v93
  %v95 = vadd.f32 %v88, 1.0
  %v96 = vadd.f32 %v90, 1.0
  %v97 = vadd.f32 %v92, 1.0
  %v98 = vadd.f32 %v94, 1.0
  %v99 = vrcp.pop %v95
  %v100 = vmul.f32 1.0, %v99
  %v101 = vrcp.pop %v96
  %v102 = vmul.f32 1.0, %v101
  %v103 = vrcp.pop %v97
  %v104 = vmul.f32 1.0, %v103
  %v105 = vrcp.pop %v98
  %v106 = vmul.f32 1.0, %v105
  %v107 = vmul.f32 %v79, %v100
  %v108 = vmul.f32 %v80, %v102
  %v109 = vmul.f32 %v81, %v104
  %v110 = vmul.f32 %v82, %v106
  %v111 = vpack.c.bf16 %v108, %v107
  %v112 = vpack.c.bf16 %v110, %v109
  %v113 = vld [vmem:[%s3] sm:$0xff]
  %v114 = vld [vmem:[%s3 + $0x8] sm:$0xff]
  %v115 = vld [vmem:[%s3 + $0x10] sm:$0xff]
  %v116 = vld [vmem:[%s3 + $0x18] sm:$0xff]
  %v117 = vld [vmem:[%s3 + $0x20] sm:$0xff]
  %v118 = vld [vmem:[%s3 + $0x28] sm:$0xff]
  %v119 = vld [vmem:[%s3 + $0x30] sm:$0xff]
  %v120 = vld [vmem:[%s3 + $0x38] sm:$0xff]
  %v121 = vld [vmem:[%s3 + $0x40] sm:$0xff]
  %v122 = vld [vmem:[%s3 + $0x48] sm:$0xff]
  %v123 = vld [vmem:[%s3 + $0x50] sm:$0xff]
  %v124 = vld [vmem:[%s3 + $0x58] sm:$0xff]
  %v125 = vld [vmem:[%s3 + $0x60] sm:$0xff]
  %v126 = vld [vmem:[%s3 + $0x68] sm:$0xff]
  %v127 = vld [vmem:[%s3 + $0x70] sm:$0xff]
  %v128 = vld [vmem:[%s3 + $0x78] sm:$0xff]
  %v129 = vld [vmem:[%s3 + $0x80] sm:$0xff]
  %v130 = vld [vmem:[%s3 + $0x88] sm:$0xff]
  %v131 = vld [vmem:[%s3 + $0x90] sm:$0xff]
  %v132 = vld [vmem:[%s3 + $0x98] sm:$0xff]
  %v133 = vld [vmem:[%s3 + $0xa0] sm:$0xff]
  %v134 = vld [vmem:[%s3 + $0xa8] sm:$0xff]
  %v135 = vld [vmem:[%s3 + $0xb0] sm:$0xff]
  %v136 = vld [vmem:[%s3 + $0xb8] sm:$0xff]
  %v137 = vld [vmem:[%s3 + $0xc0] sm:$0xff]
  %v138 = vld [vmem:[%s3 + $0xc8] sm:$0xff]
  %v139 = vld [vmem:[%s3 + $0xd0] sm:$0xff]
  %v140 = vld [vmem:[%s3 + $0xd8] sm:$0xff]
  %v141 = vld [vmem:[%s3 + $0xe0] sm:$0xff]
  %v142 = vld [vmem:[%s3 + $0xe8] sm:$0xff]
  %v143 = vld [vmem:[%s3 + $0xf0] sm:$0xff]
  %v144 = vld [vmem:[%s3 + $0xf8] sm:$0xff]
  %v145 = vld [vmem:[%s3 + $0x100] sm:$0xff]
  %v146 = vld [vmem:[%s3 + $0x108] sm:$0xff]
  %v147 = vld [vmem:[%s3 + $0x110] sm:$0xff]
  %v148 = vld [vmem:[%s3 + $0x118] sm:$0xff]
  %v149 = vld [vmem:[%s3 + $0x120] sm:$0xff]
  %v150 = vld [vmem:[%s3 + $0x128] sm:$0xff]
  %v151 = vld [vmem:[%s3 + $0x130] sm:$0xff]
  %v152 = vld [vmem:[%s3 + $0x138] sm:$0xff]
  %v153 = vld [vmem:[%s3 + $0x140] sm:$0xff]
  %v154 = vld [vmem:[%s3 + $0x148] sm:$0xff]
  %v155 = vld [vmem:[%s3 + $0x150] sm:$0xff]
  %v156 = vld [vmem:[%s3 + $0x158] sm:$0xff]
  %v157 = vld [vmem:[%s3 + $0x160] sm:$0xff]
  %v158 = vld [vmem:[%s3 + $0x168] sm:$0xff]
  %v159 = vld [vmem:[%s3 + $0x170] sm:$0xff]
  %v160 = vld [vmem:[%s3 + $0x178] sm:$0xff]
  %v161 = vld [vmem:[%s3 + $0x180] sm:$0xff]
  %v162 = vld [vmem:[%s3 + $0x188] sm:$0xff]
  %v163 = vld [vmem:[%s3 + $0x190] sm:$0xff]
  %v164 = vld [vmem:[%s3 + $0x198] sm:$0xff]
  %v165 = vld [vmem:[%s3 + $0x1a0] sm:$0xff]
  %v166 = vld [vmem:[%s3 + $0x1a8] sm:$0xff]
  %v167 = vld [vmem:[%s3 + $0x1b0] sm:$0xff]
  %v168 = vld [vmem:[%s3 + $0x1b8] sm:$0xff]
  %v169 = vld [vmem:[%s3 + $0x1c0] sm:$0xff]
  %v170 = vld [vmem:[%s3 + $0x1c8] sm:$0xff]
  %v171 = vld [vmem:[%s3 + $0x1d0] sm:$0xff]
  %v172 = vld [vmem:[%s3 + $0x1d8] sm:$0xff]
  %v173 = vld [vmem:[%s3 + $0x1e0] sm:$0xff]
  %v174 = vld [vmem:[%s3 + $0x1e8] sm:$0xff]
  %v175 = vld [vmem:[%s3 + $0x1f0] sm:$0xff]
  %v176 = vld [vmem:[%s3 + $0x1f8] sm:$0xff]
  %v241 = vunpack.c.l.b16 %v113
  %v242 = vunpack.c.h.b16 %v113
  %v243 = vunpack.c.l.b16 %v114
  %v244 = vunpack.c.h.b16 %v114
  %v245 = vunpack.c.l.b16 %v115
  %v246 = vunpack.c.h.b16 %v115
  %v247 = vunpack.c.l.b16 %v116
  %v248 = vunpack.c.h.b16 %v116
  %v249 = vunpack.c.l.b16 %v117
  %v250 = vunpack.c.h.b16 %v117
  %v251 = vunpack.c.l.b16 %v118
  %v252 = vunpack.c.h.b16 %v118
  %v253 = vunpack.c.l.b16 %v119
  %v254 = vunpack.c.h.b16 %v119
  %v255 = vunpack.c.l.b16 %v120
  %v256 = vunpack.c.h.b16 %v120
  %v257 = vunpack.c.l.b16 %v121
  %v258 = vunpack.c.h.b16 %v121
  %v259 = vunpack.c.l.b16 %v122
  %v260 = vunpack.c.h.b16 %v122
  %v261 = vunpack.c.l.b16 %v123
  %v262 = vunpack.c.h.b16 %v123
  %v263 = vunpack.c.l.b16 %v124
  %v264 = vunpack.c.h.b16 %v124
  %v265 = vunpack.c.l.b16 %v125
  %v266 = vunpack.c.h.b16 %v125
  %v267 = vunpack.c.l.b16 %v126
  %v268 = vunpack.c.h.b16 %v126
  %v269 = vunpack.c.l.b16 %v127
  %v270 = vunpack.c.h.b16 %v127
  %v271 = vunpack.c.l.b16 %v128
  %v272 = vunpack.c.h.b16 %v128
  %v273 = vunpack.c.l.b16 %v129
  %v274 = vunpack.c.h.b16 %v129
  %v275 = vunpack.c.l.b16 %v130
  %v276 = vunpack.c.h.b16 %v130
  %v277 = vunpack.c.l.b16 %v131
  %v278 = vunpack.c.h.b16 %v131
  %v279 = vunpack.c.l.b16 %v132
  %v280 = vunpack.c.h.b16 %v132
  %v281 = vunpack.c.l.b16 %v133
  %v282 = vunpack.c.h.b16 %v133
  %v283 = vunpack.c.l.b16 %v134
  %v284 = vunpack.c.h.b16 %v134
  %v285 = vunpack.c.l.b16 %v135
  %v286 = vunpack.c.h.b16 %v135
  %v287 = vunpack.c.l.b16 %v136
  %v288 = vunpack.c.h.b16 %v136
  %v289 = vunpack.c.l.b16 %v137
  %v290 = vunpack.c.h.b16 %v137
  %v291 = vunpack.c.l.b16 %v138
  %v292 = vunpack.c.h.b16 %v138
  %v293 = vunpack.c.l.b16 %v139
  %v294 = vunpack.c.h.b16 %v139
  %v295 = vunpack.c.l.b16 %v140
  %v296 = vunpack.c.h.b16 %v140
  %v297 = vunpack.c.l.b16 %v141
  %v298 = vunpack.c.h.b16 %v141
  %v299 = vunpack.c.l.b16 %v142
  %v300 = vunpack.c.h.b16 %v142
  %v301 = vunpack.c.l.b16 %v143
  %v302 = vunpack.c.h.b16 %v143
  %v303 = vunpack.c.l.b16 %v144
  %v304 = vunpack.c.h.b16 %v144
  %v305 = vunpack.c.l.b16 %v145
  %v306 = vunpack.c.h.b16 %v145
  %v307 = vunpack.c.l.b16 %v146
  %v308 = vunpack.c.h.b16 %v146
  %v309 = vunpack.c.l.b16 %v147
  %v310 = vunpack.c.h.b16 %v147
  %v311 = vunpack.c.l.b16 %v148
  %v312 = vunpack.c.h.b16 %v148
  %v313 = vunpack.c.l.b16 %v149
  %v314 = vunpack.c.h.b16 %v149
  %v315 = vunpack.c.l.b16 %v150
  %v316 = vunpack.c.h.b16 %v150
  %v317 = vunpack.c.l.b16 %v151
  %v318 = vunpack.c.h.b16 %v151
  %v319 = vunpack.c.l.b16 %v152
  %v320 = vunpack.c.h.b16 %v152
  %v321 = vunpack.c.l.b16 %v153
  %v322 = vunpack.c.h.b16 %v153
  %v323 = vunpack.c.l.b16 %v154
  %v324 = vunpack.c.h.b16 %v154
  %v325 = vunpack.c.l.b16 %v155
  %v326 = vunpack.c.h.b16 %v155
  %v327 = vunpack.c.l.b16 %v156
  %v328 = vunpack.c.h.b16 %v156
  %v329 = vunpack.c.l.b16 %v157
  %v330 = vunpack.c.h.b16 %v157
  %v331 = vunpack.c.l.b16 %v158
  %v332 = vunpack.c.h.b16 %v158
  %v333 = vunpack.c.l.b16 %v159
  %v334 = vunpack.c.h.b16 %v159
  %v335 = vunpack.c.l.b16 %v160
  %v336 = vunpack.c.h.b16 %v160
  %v337 = vunpack.c.l.b16 %v161
  %v338 = vunpack.c.h.b16 %v161
  %v339 = vunpack.c.l.b16 %v162
  %v340 = vunpack.c.h.b16 %v162
  %v341 = vunpack.c.l.b16 %v163
  %v342 = vunpack.c.h.b16 %v163
  %v343 = vunpack.c.l.b16 %v164
  %v344 = vunpack.c.h.b16 %v164
  %v345 = vunpack.c.l.b16 %v165
  %v346 = vunpack.c.h.b16 %v165
  %v347 = vunpack.c.l.b16 %v166
  %v348 = vunpack.c.h.b16 %v166
  %v349 = vunpack.c.l.b16 %v167
  %v350 = vunpack.c.h.b16 %v167
  %v351 = vunpack.c.l.b16 %v168
  %v352 = vunpack.c.h.b16 %v168
  %v353 = vunpack.c.l.b16 %v169
  %v354 = vunpack.c.h.b16 %v169
  %v355 = vunpack.c.l.b16 %v170
  %v356 = vunpack.c.h.b16 %v170
  %v357 = vunpack.c.l.b16 %v171
  %v358 = vunpack.c.h.b16 %v171
  %v359 = vunpack.c.l.b16 %v172
  %v360 = vunpack.c.h.b16 %v172
  %v361 = vunpack.c.l.b16 %v173
  %v362 = vunpack.c.h.b16 %v173
  %v363 = vunpack.c.l.b16 %v174
  %v364 = vunpack.c.h.b16 %v174
  %v365 = vunpack.c.l.b16 %v175
  %v366 = vunpack.c.h.b16 %v175
  %v367 = vunpack.c.l.b16 %v176
  %v368 = vunpack.c.h.b16 %v176
  %v369 = vpack.c.b16 %v249, %v241
  %v370 = vpack.c.b16 %v250, %v242
  %v371 = vpack.c.b16 %v251, %v243
  %v372 = vpack.c.b16 %v252, %v244
  %v373 = vpack.c.b16 %v253, %v245
  %v374 = vpack.c.b16 %v254, %v246
  %v375 = vpack.c.b16 %v255, %v247
  %v376 = vpack.c.b16 %v256, %v248
  %v377 = vpack.c.b16 %v265, %v257
  %v378 = vpack.c.b16 %v266, %v258
  %v379 = vpack.c.b16 %v267, %v259
  %v380 = vpack.c.b16 %v268, %v260
  %v381 = vpack.c.b16 %v269, %v261
  %v382 = vpack.c.b16 %v270, %v262
  %v383 = vpack.c.b16 %v271, %v263
  %v384 = vpack.c.b16 %v272, %v264
  %v385 = vpack.c.b16 %v281, %v273
  %v386 = vpack.c.b16 %v282, %v274
  %v387 = vpack.c.b16 %v283, %v275
  %v388 = vpack.c.b16 %v284, %v276
  %v389 = vpack.c.b16 %v285, %v277
  %v390 = vpack.c.b16 %v286, %v278
  %v391 = vpack.c.b16 %v287, %v279
  %v392 = vpack.c.b16 %v288, %v280
  %v393 = vpack.c.b16 %v297, %v289
  %v394 = vpack.c.b16 %v298, %v290
  %v395 = vpack.c.b16 %v299, %v291
  %v396 = vpack.c.b16 %v300, %v292
  %v397 = vpack.c.b16 %v301, %v293
  %v398 = vpack.c.b16 %v302, %v294
  %v399 = vpack.c.b16 %v303, %v295
  %v400 = vpack.c.b16 %v304, %v296
  %v401 = vpack.c.b16 %v313, %v305
  %v402 = vpack.c.b16 %v314, %v306
  %v403 = vpack.c.b16 %v315, %v307
  %v404 = vpack.c.b16 %v316, %v308
  %v405 = vpack.c.b16 %v317, %v309
  %v406 = vpack.c.b16 %v318, %v310
  %v407 = vpack.c.b16 %v319, %v311
  %v408 = vpack.c.b16 %v320, %v312
  %v409 = vpack.c.b16 %v329, %v321
  %v410 = vpack.c.b16 %v330, %v322
  %v411 = vpack.c.b16 %v331, %v323
  %v412 = vpack.c.b16 %v332, %v324
  %v413 = vpack.c.b16 %v333, %v325
  %v414 = vpack.c.b16 %v334, %v326
  %v415 = vpack.c.b16 %v335, %v327
  %v416 = vpack.c.b16 %v336, %v328
  %v417 = vpack.c.b16 %v345, %v337
  %v418 = vpack.c.b16 %v346, %v338
  %v419 = vpack.c.b16 %v347, %v339
  %v420 = vpack.c.b16 %v348, %v340
  %v421 = vpack.c.b16 %v349, %v341
  %v422 = vpack.c.b16 %v350, %v342
  %v423 = vpack.c.b16 %v351, %v343
  %v424 = vpack.c.b16 %v352, %v344
  %v425 = vpack.c.b16 %v361, %v353
  %v426 = vpack.c.b16 %v362, %v354
  %v427 = vpack.c.b16 %v363, %v355
  %v428 = vpack.c.b16 %v364, %v356
  %v429 = vpack.c.b16 %v365, %v357
  %v430 = vpack.c.b16 %v366, %v358
  %v431 = vpack.c.b16 %v367, %v359
  %v432 = vpack.c.b16 %v368, %v360
  %497 = vmatprep.subr.bf16.mxu0 %v370
  %498 = vmatpush1.bf16.msra.mxu0 %v369
  %499 = vmatprep.subr.bf16.mxu0 %v378
  %500 = vmatpush1.bf16.msra.mxu0 %v377
  %501 = vmatprep.subr.bf16.mxu0 %v386
  %502 = vmatpush1.bf16.msra.mxu0 %v385
  %503 = vmatprep.subr.bf16.mxu0 %v394
  %504 = vmatpush1.bf16.msra.mxu0 %v393
  %505 = vmatprep.subr.bf16.mxu0 %v402
  %506 = vmatpush1.bf16.msra.mxu0 %v401
  %507 = vmatprep.subr.bf16.mxu0 %v410
  %508 = vmatpush1.bf16.msra.mxu0 %v409
  %509 = vmatprep.subr.bf16.mxu0 %v418
  %510 = vmatpush1.bf16.msra.mxu0 %v417
  %511 = vmatprep.subr.bf16.mxu0 %v426
  %512 = vmatpush1.bf16.msra.mxu0 %v425
  %513 = vmatprep.subr.bf16.mxu0 0
  %514 = vmatpush1.bf16.msra.mxu0 0
  %515 = vmatprep.subr.bf16.mxu0 0
  %516 = vmatpush1.bf16.msra.mxu0 0
  %517 = vmatprep.subr.bf16.mxu0 0
  %518 = vmatpush1.bf16.msra.mxu0 0
  %519 = vmatprep.subr.bf16.mxu0 0
  %520 = vmatpush1.bf16.msra.mxu0 0
  %521 = vmatprep.subr.bf16.mxu0 0
  %522 = vmatpush1.bf16.msra.mxu0 0
  %523 = vmatprep.subr.bf16.mxu0 0
  %524 = vmatpush1.bf16.msra.mxu0 0
  %525 = vmatprep.subr.bf16.mxu0 0
  %526 = vmatpush1.bf16.msra.mxu0 0
  %527 = vmatprep.subr.bf16.mxu0 0
  %528 = vmatpush1.bf16.msra.mxu0 0
  %529 = vmatprep.mubr.bf16.mxu0 0
  %530 = vmatmul.mubr.bf16.gmra.mrb[0].mxu0 %v111
  %v531 = vpop.f32.mrb[0].mxu0
  %v532 = vadd.f32 0.0, %v531
  %v533 = vpop.f32.mrb[0].mxu0
  %v534 = vadd.f32 0.0, %v533
  %v535 = vpop.f32.mrb[0].mxu0
  %v536 = vadd.f32 0.0, %v535
  %v537 = vpop.f32.mrb[0].mxu0
  %v538 = vadd.f32 0.0, %v537
  %539 = vmatprep.mubr.bf16.mxu0 0
  %540 = vmatmul.mubr.bf16.gmra.mrb[0].mxu0 %v112
  %v541 = vpop.f32.mrb[0].mxu0
  %v542 = vadd.f32 0.0, %v541
  %v543 = vpop.f32.mrb[0].mxu0
  %v544 = vadd.f32 0.0, %v543
  %v545 = vpop.f32.mrb[0].mxu0
  %v546 = vadd.f32 0.0, %v545
  %v547 = vpop.f32.mrb[0].mxu0
  %v548 = vadd.f32 0.0, %v547
  %549 = vdwg.mxu0
  %550 = vmatprep.subr.bf16.mxu0 %v372
  %551 = vmatpush1.bf16.msra.mxu0 %v371
  %552 = vmatprep.subr.bf16.mxu0 %v380
  %553 = vmatpush1.bf16.msra.mxu0 %v379
  %554 = vmatprep.subr.bf16.mxu0 %v388
  %555 = vmatpush1.bf16.msra.mxu0 %v387
  %556 = vmatprep.subr.bf16.mxu0 %v396
  %557 = vmatpush1.bf16.msra.mxu0 %v395
  %558 = vmatprep.subr.bf16.mxu0 %v404
  %559 = vmatpush1.bf16.msra.mxu0 %v403
  %560 = vmatprep.subr.bf16.mxu0 %v412
  %561 = vmatpush1.bf16.msra.mxu0 %v411
  %562 = vmatprep.subr.bf16.mxu0 %v420
  %563 = vmatpush1.bf16.msra.mxu0 %v419
  %564 = vmatprep.subr.bf16.mxu0 %v428
  %565 = vmatpush1.bf16.msra.mxu0 %v427
  %566 = vmatprep.subr.bf16.mxu0 0
  %567 = vmatpush1.bf16.msra.mxu0 0
  %568 = vmatprep.subr.bf16.mxu0 0
  %569 = vmatpush1.bf16.msra.mxu0 0
  %570 = vmatprep.subr.bf16.mxu0 0
  %571 = vmatpush1.bf16.msra.mxu0 0
  %572 = vmatprep.subr.bf16.mxu0 0
  %573 = vmatpush1.bf16.msra.mxu0 0
  %574 = vmatprep.subr.bf16.mxu0 0
  %575 = vmatpush1.bf16.msra.mxu0 0
  %576 = vmatprep.subr.bf16.mxu0 0
  %577 = vmatpush1.bf16.msra.mxu0 0
  %578 = vmatprep.subr.bf16.mxu0 0
  %579 = vmatpush1.bf16.msra.mxu0 0
  %580 = vmatprep.subr.bf16.mxu0 0
  %581 = vmatpush1.bf16.msra.mxu0 0
  %582 = vmatprep.mubr.bf16.mxu0 0
  %583 = vmatmul.mubr.bf16.gmra.mrb[0].mxu0 %v111
  %v584 = vpop.f32.mrb[0].mxu0
  %v585 = vadd.f32 0.0, %v584
  %v586 = vpop.f32.mrb[0].mxu0
  %v587 = vadd.f32 0.0, %v586
  %v588 = vpop.f32.mrb[0].mxu0
  %v589 = vadd.f32 0.0, %v588
  %v590 = vpop.f32.mrb[0].mxu0
  %v591 = vadd.f32 0.0, %v590
  %592 = vmatprep.mubr.bf16.mxu0 0
  %593 = vmatmul.mubr.bf16.gmra.mrb[0].mxu0 %v112
  %v594 = vpop.f32.mrb[0].mxu0
  %v595 = vadd.f32 0.0, %v594
  %v596 = vpop.f32.mrb[0].mxu0
  %v597 = vadd.f32 0.0, %v596
  %v598 = vpop.f32.mrb[0].mxu0
  %v599 = vadd.f32 0.0, %v598
  %v600 = vpop.f32.mrb[0].mxu0
  %v601 = vadd.f32 0.0, %v600
  %602 = vdwg.mxu0
  %603 = vmatprep.subr.bf16.mxu0 %v374
  %604 = vmatpush1.bf16.msra.mxu0 %v373
  %605 = vmatprep.subr.bf16.mxu0 %v382
  %606 = vmatpush1.bf16.msra.mxu0 %v381
  %607 = vmatprep.subr.bf16.mxu0 %v390
  %608 = vmatpush1.bf16.msra.mxu0 %v389
  %609 = vmatprep.subr.bf16.mxu0 %v398
  %610 = vmatpush1.bf16.msra.mxu0 %v397
  %611 = vmatprep.subr.bf16.mxu0 %v406
  %612 = vmatpush1.bf16.msra.mxu0 %v405
  %613 = vmatprep.subr.bf16.mxu0 %v414
  %614 = vmatpush1.bf16.msra.mxu0 %v413
  %615 = vmatprep.subr.bf16.mxu0 %v422
  %616 = vmatpush1.bf16.msra.mxu0 %v421
  %617 = vmatprep.subr.bf16.mxu0 %v430
  %618 = vmatpush1.bf16.msra.mxu0 %v429
  %619 = vmatprep.subr.bf16.mxu0 0
  %620 = vmatpush1.bf16.msra.mxu0 0
  %621 = vmatprep.subr.bf16.mxu0 0
  %622 = vmatpush1.bf16.msra.mxu0 0
  %623 = vmatprep.subr.bf16.mxu0 0
  %624 = vmatpush1.bf16.msra.mxu0 0
  %625 = vmatprep.subr.bf16.mxu0 0
  %626 = vmatpush1.bf16.msra.mxu0 0
  %627 = vmatprep.subr.bf16.mxu0 0
  %628 = vmatpush1.bf16.msra.mxu0 0
  %629 = vmatprep.subr.bf16.mxu0 0
  %630 = vmatpush1.bf16.msra.mxu0 0
  %631 = vmatprep.subr.bf16.mxu0 0
  %632 = vmatpush1.bf16.msra.mxu0 0
  %633 = vmatprep.subr.bf16.mxu0 0
  %634 = vmatpush1.bf16.msra.mxu0 0
  %635 = vmatprep.mubr.bf16.mxu0 0
  %636 = vmatmul.mubr.bf16.gmra.mrb[0].mxu0 %v111
  %v637 = vpop.f32.mrb[0].mxu0
  %v638 = vadd.f32 0.0, %v637
  %v639 = vpop.f32.mrb[0].mxu0
  %v640 = vadd.f32 0.0, %v639
  %v641 = vpop.f32.mrb[0].mxu0
  %v642 = vadd.f32 0.0, %v641
  %v643 = vpop.f32.mrb[0].mxu0
  %v644 = vadd.f32 0.0, %v643
  %645 = vmatprep.mubr.bf16.mxu0 0
  %646 = vmatmul.mubr.bf16.gmra.mrb[0].mxu0 %v112
  %v647 = vpop.f32.mrb[0].mxu0
  %v648 = vadd.f32 0.0, %v647
  %v649 = vpop.f32.mrb[0].mxu0
  %v650 = vadd.f32 0.0, %v649
  %v651 = vpop.f32.mrb[0].mxu0
  %v652 = vadd.f32 0.0, %v651
  %v653 = vpop.f32.mrb[0].mxu0
  %v654 = vadd.f32 0.0, %v653
  %655 = vdwg.mxu0
  %656 = vmatprep.subr.bf16.mxu0 %v376
  %657 = vmatpush1.bf16.msra.mxu0 %v375
  %658 = vmatprep.subr.bf16.mxu0 %v384
  %659 = vmatpush1.bf16.msra.mxu0 %v383
  %660 = vmatprep.subr.bf16.mxu0 %v392
  %661 = vmatpush1.bf16.msra.mxu0 %v391
  %662 = vmatprep.subr.bf16.mxu0 %v400
  %663 = vmatpush1.bf16.msra.mxu0 %v399
  %664 = vmatprep.subr.bf16.mxu0 %v408
  %665 = vmatpush1.bf16.msra.mxu0 %v407
  %666 = vmatprep.subr.bf16.mxu0 %v416
  %667 = vmatpush1.bf16.msra.mxu0 %v415
  %668 = vmatprep.subr.bf16.mxu0 %v424
  %669 = vmatpush1.bf16.msra.mxu0 %v423
  %670 = vmatprep.subr.bf16.mxu0 %v432
  %671 = vmatpush1.bf16.msra.mxu0 %v431
  %672 = vmatprep.subr.bf16.mxu0 0
  %673 = vmatpush1.bf16.msra.mxu0 0
  %674 = vmatprep.subr.bf16.mxu0 0
  %675 = vmatpush1.bf16.msra.mxu0 0
  %676 = vmatprep.subr.bf16.mxu0 0
  %677 = vmatpush1.bf16.msra.mxu0 0
  %678 = vmatprep.subr.bf16.mxu0 0
  %679 = vmatpush1.bf16.msra.mxu0 0
  %680 = vmatprep.subr.bf16.mxu0 0
  %681 = vmatpush1.bf16.msra.mxu0 0
  %682 = vmatprep.subr.bf16.mxu0 0
  %683 = vmatpush1.bf16.msra.mxu0 0
  %684 = vmatprep.subr.bf16.mxu0 0
  %685 = vmatpush1.bf16.msra.mxu0 0
  %686 = vmatprep.subr.bf16.mxu0 0
  %687 = vmatpush1.bf16.msra.mxu0 0
  %688 = vmatprep.mubr.bf16.mxu0 0
  %689 = vmatmul.mubr.bf16.gmra.mrb[0].mxu0 %v111
  %v690 = vpop.f32.mrb[0].mxu0
  %v691 = vadd.f32 0.0, %v690
  %v692 = vpop.f32.mrb[0].mxu0
  %v693 = vadd.f32 0.0, %v692
  %v694 = vpop.f32.mrb[0].mxu0
  %v695 = vadd.f32 0.0, %v694
  %v696 = vpop.f32.mrb[0].mxu0
  %v697 = vadd.f32 0.0, %v696
  %698 = vmatprep.mubr.bf16.mxu0 0
  %699 = vmatmul.mubr.bf16.gmra.mrb[0].mxu0 %v112
  %v700 = vpop.f32.mrb[0].mxu0
  %v701 = vadd.f32 0.0, %v700
  %v702 = vpop.f32.mrb[0].mxu0
  %v703 = vadd.f32 0.0, %v702
  %v704 = vpop.f32.mrb[0].mxu0
  %v705 = vadd.f32 0.0, %v704
  %v706 = vpop.f32.mrb[0].mxu0
  %v707 = vadd.f32 0.0, %v706
  %708 = vdwg.mxu0
  %v709 = vpack.c.bf16 %v536, %v532
  %v710 = vpack.c.bf16 %v538, %v534
  %v711 = vpack.c.bf16 %v589, %v585
  %v712 = vpack.c.bf16 %v591, %v587
  %v713 = vpack.c.bf16 %v642, %v638
  %v714 = vpack.c.bf16 %v644, %v640
  %v715 = vpack.c.bf16 %v695, %v691
  %v716 = vpack.c.bf16 %v697, %v693
  %v717 = vpack.c.bf16 %v546, %v542
  %v718 = vpack.c.bf16 %v548, %v544
  %v719 = vpack.c.bf16 %v599, %v595
  %v720 = vpack.c.bf16 %v601, %v597
  %v721 = vpack.c.bf16 %v652, %v648
  %v722 = vpack.c.bf16 %v654, %v650
  %v723 = vpack.c.bf16 %v705, %v701
  %v724 = vpack.c.bf16 %v707, %v703
  %v741 = vunpack.c.l.b16 %v709
  %v742 = vunpack.c.l.b16 %v710
  %v743 = vunpack.c.l.b16 %v711
  %v744 = vunpack.c.l.b16 %v712
  %v745 = vunpack.c.l.b16 %v713
  %v746 = vunpack.c.l.b16 %v714
  %v747 = vunpack.c.l.b16 %v715
  %v748 = vunpack.c.l.b16 %v716
  %v749 = vunpack.c.h.b16 %v709
  %v750 = vunpack.c.h.b16 %v710
  %v751 = vunpack.c.h.b16 %v711
  %v752 = vunpack.c.h.b16 %v712
  %v753 = vunpack.c.h.b16 %v713
  %v754 = vunpack.c.h.b16 %v714
  %v755 = vunpack.c.h.b16 %v715
  %v756 = vunpack.c.h.b16 %v716
  %v757 = vunpack.c.l.b16 %v717
  %v758 = vunpack.c.l.b16 %v718
  %v759 = vunpack.c.l.b16 %v719
  %v760 = vunpack.c.l.b16 %v720
  %v761 = vunpack.c.l.b16 %v721
  %v762 = vunpack.c.l.b16 %v722
  %v763 = vunpack.c.l.b16 %v723
  %v764 = vunpack.c.l.b16 %v724
  %v765 = vunpack.c.h.b16 %v717
  %v766 = vunpack.c.h.b16 %v718
  %v767 = vunpack.c.h.b16 %v719
  %v768 = vunpack.c.h.b16 %v720
  %v769 = vunpack.c.h.b16 %v721
  %v770 = vunpack.c.h.b16 %v722
  %v771 = vunpack.c.h.b16 %v723
  %v772 = vunpack.c.h.b16 %v724
  %v773 = vpack.c.b16 %v742, %v741
  %v774 = vpack.c.b16 %v744, %v743
  %v775 = vpack.c.b16 %v746, %v745
  %v776 = vpack.c.b16 %v748, %v747
  %v777 = vpack.c.b16 %v750, %v749
  %v778 = vpack.c.b16 %v752, %v751
  %v779 = vpack.c.b16 %v754, %v753
  %v780 = vpack.c.b16 %v756, %v755
  %v781 = vpack.c.b16 %v758, %v757
  %v782 = vpack.c.b16 %v760, %v759
  %v783 = vpack.c.b16 %v762, %v761
  %v784 = vpack.c.b16 %v764, %v763
  %v785 = vpack.c.b16 %v766, %v765
  %v786 = vpack.c.b16 %v768, %v767
  %v787 = vpack.c.b16 %v770, %v769
  %v788 = vpack.c.b16 %v772, %v771
  %805 = vst [vmem:[%s4] sm:$0xff] %v773
  %806 = vst [vmem:[%s4 + $0x8] sm:$0xff] %v774
  %807 = vst [vmem:[%s4 + $0x10] sm:$0xff] %v775
  %808 = vst [vmem:[%s4 + $0x18] sm:$0xff] %v776
  %809 = vst [vmem:[%s4 + $0x20] sm:$0xff] %v777
  %810 = vst [vmem:[%s4 + $0x28] sm:$0xff] %v778
  %811 = vst [vmem:[%s4 + $0x30] sm:$0xff] %v779
  %812 = vst [vmem:[%s4 + $0x38] sm:$0xff] %v780
  %813 = vst [vmem:[%s4 + $0x40] sm:$0xff] %v781
  %814 = vst [vmem:[%s4 + $0x48] sm:$0xff] %v782
  %815 = vst [vmem:[%s4 + $0x50] sm:$0xff] %v783
  %816 = vst [vmem:[%s4 + $0x58] sm:$0xff] %v784
  %817 = vst [vmem:[%s4 + $0x60] sm:$0xff] %v785
  %818 = vst [vmem:[%s4 + $0x68] sm:$0xff] %v786
  %819 = vst [vmem:[%s4 + $0x70] sm:$0xff] %v787
  %820 = vst [vmem:[%s4 + $0x78] sm:$0xff] %v788
  // Predicated region
  $region18: #{image_decoder_forward.5} parent=0 // pred_check
    _
  $region19: #{image_decoder_forward.5} parent=0 // pred_check_branch
    %822 = sbr.rel (0) target = $region21
  $region20: #{image_decoder_forward.5} parent=0 // pred_region
    _
  $region21: #{image_decoder_forward.5} parent=0 // pred_fallthru
    _
  // Predicated region
  $region22: #{image_decoder_forward.5} parent=0 // pred_check
    _
  $region23: #{image_decoder_forward.5} parent=0 // pred_check_branch
    %824 = sbr.rel (0) target = $region25
  $region24: #{image_decoder_forward.5} parent=0 // pred_region
    _
  $region25: #{image_decoder_forward.5} parent=0 // pred_fallthru
    _

// kernel: image_decoder_forward.4
$region0: #{image_decoder_forward.4}
  #allocation0 [shape = 'u32[]', space=smem, size = 0x4, offset = 0x4, fixed_abs, tag = 'smem constant byte address 0x4 - core index']
  #allocation1 [shape = 'u32[144,128]{1,0:T(1,128)}', space=vmem, size = 0x12000, scoped, tag = 'internal scratch']
  %s0 = inlined_call_operand.vmem [shape: f32[2,32], index: 0, kind: input, shape index: {}]
  %s1 = inlined_call_operand.vmem [shape: bf16[32,256], index: 1, kind: input, shape index: {}]
  %s2 = inlined_call_operand.vmem [shape: f32[1,256], index: 2, kind: input, shape index: {}]
  %s3 = inlined_call_operand.hbm [shape: bf16[256,2048], index: 3, kind: input, shape index: {}]
  %s4 = inlined_call_operand.vmem [shape: bf16[2,2048], index: 4, kind: output, shape index: {}]
  %s5 = sld [smem:[#allocation0]]
  $region30: #{image_decoder_forward.4} parent=0
    _
  %s7 = ssub.s32 1, %s5
  %s8 = scalar_select 0, %s7, %s5
  $region1: #{image_decoder_forward.4} parent=0
    #allocation2 [shape = 'u8[1048576]{0}', space=vmem, size = 0x100000, scoped, tag = 'input window, operand 3, single buffered']
    #allocation3 [shape = 's32[1]{0}', space=sflag, size = 0x4, scoped, tag = 'scoped memory for image_decoder_forward.4']
    %9 = vsyncpa [#allocation3], 0
    // Predicated region
    $region2: #{image_decoder_forward.4} parent=1 // pred_check
      _
    $region3: #{image_decoder_forward.4} parent=1 // pred_check_branch
      %11 = sbr.rel (0) target = $region5
    $region4: #{image_decoder_forward.4} parent=1 // pred_region
      _
    $region5: #{image_decoder_forward.4} parent=1 // pred_fallthru
      _
    // Predicated region
    $region6: #{image_decoder_forward.4} parent=1 // pred_check
      _
    $region7: #{image_decoder_forward.4} parent=1 // pred_check_branch
      %13 = sbr.rel (0) target = $region9
    $region8: #{image_decoder_forward.4} parent=1 // pred_region
      _
    $region9: #{image_decoder_forward.4} parent=1 // pred_fallthru
      _
    // Predicated region
    $region10: #{image_decoder_forward.4} parent=1 // pred_check
      _
    $region11: #{image_decoder_forward.4} parent=1 // pred_check_branch
      %15 = sbr.rel (0) target = $region13
    $region12: #{image_decoder_forward.4} parent=1 // pred_region
      _
    $region13: #{image_decoder_forward.4} parent=1 // pred_fallthru
      _
    // Predicated region
    $region14: #{image_decoder_forward.4} parent=1 // pred_check
      _
    $region15: #{image_decoder_forward.4} parent=1 // pred_check_branch
      %17 = sbr.rel (0) target = $region17
    $region16: #{image_decoder_forward.4} parent=1 // pred_region
      %s19 = ssub.s32 32768, 32768
      %20 = vsyncadd [#allocation3], %s19
      %s21 = sshll.u32 [#allocation2], 4
      %s22 = int_to_ptr.vmem [resolvable:$true] %s21
      %27 = dma.hbm_to_vmem [thread:$0]  %s3, 32768, %s22, [#allocation3], 1024, 1024, 64
    $region17: #{image_decoder_forward.4} parent=1 // pred_fallthru
      _
    // Predicated region
    $region18: #{image_decoder_forward.4} parent=1 // pred_check
      _
    $region19: #{image_decoder_forward.4} parent=1 // pred_check_branch
      %29 = sbr.rel (0) target = $region21
    $region20: #{image_decoder_forward.4} parent=1 // pred_region
      %30 = dma.done [#allocation3], 32768
    $region21: #{image_decoder_forward.4} parent=1 // pred_fallthru
      _
    %v32 = vld [vmem:[%s0] sm:$0x3]
    %v33 = vpack.c.bf16 %v32, %v32
    %v34 = vld [vmem:[%s1] sm:$0xff]
    %v35 = vld [vmem:[%s1 + $0x8] sm:$0xff]
    %v36 = vld [vmem:[%s1 + $0x10] sm:$0xff]
    %v37 = vld [vmem:[%s1 + $0x18] sm:$0xff]
    %v38 = vld [vmem:[%s2] sm:$0x3]
    %v40 = vlaneseq
    %v41 = vshrl.u32 %v40, 7
    %v42 = vsub.s32 0, %v41
    %v43 = vrot.slane %v38, %v42
    %v44 = vlaneseq
    %v45 = vshrl.u32 %v44, 7
    %v46 = vsub.s32 1, %v45
    %v47 = vrot.slane %v38, %v46
    %v54 = vunpack.c.l.b16 %v34
    %v55 = vunpack.c.h.b16 %v34
    %v56 = vunpack.c.l.b16 %v35
    %v57 = vunpack.c.h.b16 %v35
    %v58 = vunpack.c.l.b16 %v36
    %v59 = vunpack.c.h.b16 %v36
    %v60 = vunpack.c.l.b16 %v37
    %v61 = vunpack.c.h.b16 %v37
    %v62 = vpack.c.b16 %v56, %v54
    %v63 = vpack.c.b16 %v57, %v55
    %v64 = vpack.c.b16 %v60, %v58
    %v65 = vpack.c.b16 %v61, %v59
    %vm70 = vcmask 261120
    %v72 = vsel %vm70, %v33, 0
    %74 = vmatprep.subr.bf16.mxu0 %v63
    %75 = vmatpush1.bf16.msra.mxu0 %v62
    %76 = vmatprep.subr.bf16.mxu0 %v65
    %77 = vmatpush1.bf16.msra.mxu0 %v64
    %78 = vmatprep.subr.bf16.mxu0 0
    %79 = vmatpush1.bf16.msra.mxu0 0
    %80 = vmatprep.subr.bf16.mxu0 0
    %81 = vmatpush1.bf16.msra.mxu0 0
    %82 = vmatprep.subr.bf16.mxu0 0
    %83 = vmatpush1.bf16.msra.mxu0 0
    %84 = vmatprep.subr.bf16.mxu0 0
    %85 = vmatpush1.bf16.msra.mxu0 0
    %86 = vmatprep.subr.bf16.mxu0 0
    %87 = vmatpush1.bf16.msra.mxu0 0
    %88 = vmatprep.subr.bf16.mxu0 0
    %89 = vmatpush1.bf16.msra.mxu0 0
    %90 = vmatprep.subr.bf16.mxu0 0
    %91 = vmatpush1.bf16.msra.mxu0 0
    %92 = vmatprep.subr.bf16.mxu0 0
    %93 = vmatpush1.bf16.msra.mxu0 0
    %94 = vmatprep.subr.bf16.mxu0 0
    %95 = vmatpush1.bf16.msra.mxu0 0
    %96 = vmatprep.subr.bf16.mxu0 0
    %97 = vmatpush1.bf16.msra.mxu0 0
    %98 = vmatprep.subr.bf16.mxu0 0
    %99 = vmatpush1.bf16.msra.mxu0 0
    %100 = vmatprep.subr.bf16.mxu0 0
    %101 = vmatpush1.bf16.msra.mxu0 0
    %102 = vmatprep.subr.bf16.mxu0 0
    %103 = vmatpush1.bf16.msra.mxu0 0
    %104 = vmatprep.subr.bf16.mxu0 0
    %105 = vmatpush1.bf16.msra.mxu0 0
    %106 = vmatprep.mubr.bf16.mxu0 0
    %107 = vmatmul.mubr.bf16.gmra.mrb[0].mxu0 %v72
    %v108 = vpop.f32.mrb[0].mxu0
    %v109 = vadd.f32 %v43, %v108
    %v110 = vpop.f32.mrb[0].mxu0
    %v111 = vadd.f32 %v47, %v110
    %v112 = vpop.f32.mrb[0].mxu0
    %v113 = vpop.f32.mrb[0].mxu0
    %114 = vdwg.mxu0
    %v115 = vsub.f32 0.0, %v109
    %v116 = vsub.f32 0.0, %v111
    %v117 = vmul.f32 %v115, 1.442695
    %v118 = vpow.pop %v117
    %v119 = vmul.f32 %v116, 1.442695
    %v120 = vpow.pop %v119
    %v121 = vadd.f32 %v118, 1.0
    %v122 = vadd.f32 %v120, 1.0
    %v123 = vrcp.pop %v121
    %v124 = vmul.f32 1.0, %v123
    %v125 = vrcp.pop %v122
    %v126 = vmul.f32 1.0, %v125
    %v127 = vmul.f32 %v109, %v124
    %v128 = vmul.f32 %v111, %v126
    %v129 = vpack.c.bf16 %v127, %v127
    %v130 = vpack.c.bf16 %v128, %v128
    %v131 = vld [vmem:[#allocation2] sm:$0xff]
    %v132 = vld [vmem:[#allocation2 + $0x8] sm:$0xff]
    %v133 = vld [vmem:[#allocation2 + $0x10] sm:$0xff]
    %v134 = vld [vmem:[#allocation2 + $0x18] sm:$0xff]
    %v135 = vld [vmem:[#allocation2 + $0x20] sm:$0xff]
    %v136 = vld [vmem:[#allocation2 + $0x28] sm:$0xff]
    %v137 = vld [vmem:[#allocation2 + $0x30] sm:$0xff]
    %v138 = vld [vmem:[#allocation2 + $0x38] sm:$0xff]
    %v139 = vld [vmem:[#allocation2 + $0x40] sm:$0xff]
    %v140 = vld [vmem:[#allocation2 + $0x48] sm:$0xff]
    %v141 = vld [vmem:[#allocation2 + $0x50] sm:$0xff]
    %v142 = vld [vmem:[#allocation2 + $0x58] sm:$0xff]
    %v143 = vld [vmem:[#allocation2 + $0x60] sm:$0xff]
    %v144 = vld [vmem:[#allocation2 + $0x68] sm:$0xff]
    %v145 = vld [vmem:[#allocation2 + $0x70] sm:$0xff]
    %v146 = vld [vmem:[#allocation2 + $0x78] sm:$0xff]
    %v147 = vld [vmem:[#allocation2 + $0x80] sm:$0xff]
    %v148 = vld [vmem:[#allocation2 + $0x88] sm:$0xff]
    %v149 = vld [vmem:[#allocation2 + $0x90] sm:$0xff]
    %v150 = vld [vmem:[#allocation2 + $0x98] sm:$0xff]
    %v151 = vld [vmem:[#allocation2 + $0xa0] sm:$0xff]
    %v152 = vld [vmem:[#allocation2 + $0xa8] sm:$0xff]
    %v153 = vld [vmem:[#allocation2 + $0xb0] sm:$0xff]
    %v154 = vld [vmem:[#allocation2 + $0xb8] sm:$0xff]
    %v155 = vld [vmem:[#allocation2 + $0xc0] sm:$0xff]
    %v156 = vld [vmem:[#allocation2 + $0xc8] sm:$0xff]
    %v157 = vld [vmem:[#allocation2 + $0xd0] sm:$0xff]
    %v158 = vld [vmem:[#allocation2 + $0xd8] sm:$0xff]
    %v159 = vld [vmem:[#allocation2 + $0xe0] sm:$0xff]
    %v160 = vld [vmem:[#allocation2 + $0xe8] sm:$0xff]
    %v161 = vld [vmem:[#allocation2 + $0xf0] sm:$0xff]
    %v162 = vld [vmem:[#allocation2 + $0xf8] sm:$0xff]
    %v163 = vld [vmem:[#allocation2 + $0x100] sm:$0xff]
    %v164 = vld [vmem:[#allocation2 + $0x108] sm:$0xff]
    %v165 = vld [vmem:[#allocation2 + $0x110] sm:$0xff]
    %v166 = vld [vmem:[#allocation2 + $0x118] sm:$0xff]
    %v167 = vld [vmem:[#allocation2 + $0x120] sm:$0xff]
    %v168 = vld [vmem:[#allocation2 + $0x128] sm:$0xff]
    %v169 = vld [vmem:[#allocation2 + $0x130] sm:$0xff]
    %v170 = vld [vmem:[#allocation2 + $0x138] sm:$0xff]
    %v171 = vld [vmem:[#allocation2 + $0x140] sm:$0xff]
    %v172 = vld [vmem:[#allocation2 + $0x148] sm:$0xff]
    %v173 = vld [vmem:[#allocation2 + $0x150] sm:$0xff]
    %v174 = vld [vmem:[#allocation2 + $0x158] sm:$0xff]
    %v175 = vld [vmem:[#allocation2 + $0x160] sm:$0xff]
    %v176 = vld [vmem:[#allocation2 + $0x168] sm:$0xff]
    %v177 = vld [vmem:[#allocation2 + $0x170] sm:$0xff]
    %v178 = vld [vmem:[#allocation2 + $0x178] sm:$0xff]
    %v179 = vld [vmem:[#allocation2 + $0x180] sm:$0xff]
    %v180 = vld [vmem:[#allocation2 + $0x188] sm:$0xff]
    %v181 = vld [vmem:[#allocation2 + $0x190] sm:$0xff]
    %v182 = vld [vmem:[#allocation2 + $0x198] sm:$0xff]
    %v183 = vld [vmem:[#allocation2 + $0x1a0] sm:$0xff]
    %v184 = vld [vmem:[#allocation2 + $0x1a8] sm:$0xff]
    %v185 = vld [vmem:[#allocation2 + $0x1b0] sm:$0xff]
    %v186 = vld [vmem:[#allocation2 + $0x1b8] sm:$0xff]
    %v187 = vld [vmem:[#allocation2 + $0x1c0] sm:$0xff]
    %v188 = vld [vmem:[#allocation2 + $0x1c8] sm:$0xff]
    %v189 = vld [vmem:[#allocation2 + $0x1d0] sm:$0xff]
    %v190 = vld [vmem:[#allocation2 + $0x1d8] sm:$0xff]
    %v191 = vld [vmem:[#allocation2 + $0x1e0] sm:$0xff]
    %v192 = vld [vmem:[#allocation2 + $0x1e8] sm:$0xff]
    %v193 = vld [vmem:[#allocation2 + $0x1f0] sm:$0xff]
    %v194 = vld [vmem:[#allocation2 + $0x1f8] sm:$0xff]
    %v195 = vld [vmem:[#allocation2 + $0x200] sm:$0xff]
    %v196 = vld [vmem:[#allocation2 + $0x208] sm:$0xff]
    %v197 = vld [vmem:[#allocation2 + $0x210] sm:$0xff]
    %v198 = vld [vmem:[#allocation2 + $0x218] sm:$0xff]
    %v199 = vld [vmem:[#allocation2 + $0x220] sm:$0xff]
    %v200 = vld [vmem:[#allocation2 + $0x228] sm:$0xff]
    %v201 = vld [vmem:[#allocation2 + $0x230] sm:$0xff]
    %v202 = vld [vmem:[#allocation2 + $0x238] sm:$0xff]
    %v203 = vld [vmem:[#allocation2 + $0x240] sm:$0xff]
    %v204 = vld [vmem:[#allocation2 + $0x248] sm:$0xff]
    %v205 = vld [vmem:[#allocation2 + $0x250] sm:$0xff]
    %v206 = vld [vmem:[#allocation2 + $0x258] sm:$0xff]
    %v207 = vld [vmem:[#allocation2 + $0x260] sm:$0xff]
    %v208 = vld [vmem:[#allocation2 + $0x268] sm:$0xff]
    %v209 = vld [vmem:[#allocation2 + $0x270] sm:$0xff]
    %v210 = vld [vmem:[#allocation2 + $0x278] sm:$0xff]
    %v211 = vld [vmem:[#allocation2 + $0x280] sm:$0xff]
    %v212 = vld [vmem:[#allocation2 + $0x288] sm:$0xff]
    %v213 = vld [vmem:[#allocation2 + $0x290] sm:$0xff]
    %v214 = vld [vmem:[#allocation2 + $0x298] sm:$0xff]
    %v215 = vld [vmem:[#allocation2 + $0x2a0] sm:$0xff]
    %v216 = vld [vmem:[#allocation2 + $0x2a8] sm:$0xff]
    %v217 = vld [vmem:[#allocation2 + $0x2b0] sm:$0xff]
    %v218 = vld [vmem:[#allocation2 + $0x2b8] sm:$0xff]
    %v219 = vld [vmem:[#allocation2 + $0x2c0] sm:$0xff]
    %v220 = vld [vmem:[#allocation2 + $0x2c8] sm:$0xff]
    %v221 = vld [vmem:[#allocation2 + $0x2d0] sm:$0xff]
    %v222 = vld [vmem:[#allocation2 + $0x2d8] sm:$0xff]
    %v223 = vld [vmem:[#allocation2 + $0x2e0] sm:$0xff]
    %v224 = vld [vmem:[#allocation2 + $0x2e8] sm:$0xff]
    %v225 = vld [vmem:[#allocation2 + $0x2f0] sm:$0xff]
    %v226 = vld [vmem:[#allocation2 + $0x2f8] sm:$0xff]
    %v227 = vld [vmem:[#allocation2 + $0x300] sm:$0xff]
    %v228 = vld [vmem:[#allocation2 + $0x308] sm:$0xff]
    %v229 = vld [vmem:[#allocation2 + $0x310] sm:$0xff]
    %v230 = vld [vmem:[#allocation2 + $0x318] sm:$0xff]
    %v231 = vld [vmem:[#allocation2 + $0x320] sm:$0xff]
    %v232 = vld [vmem:[#allocation2 + $0x328] sm:$0xff]
    %v233 = vld [vmem:[#allocation2 + $0x330] sm:$0xff]
    %v234 = vld [vmem:[#allocation2 + $0x338] sm:$0xff]
    %v235 = vld [vmem:[#allocation2 + $0x340] sm:$0xff]
    %v236 = vld [vmem:[#allocation2 + $0x348] sm:$0xff]
    %v237 = vld [vmem:[#allocation2 + $0x350] sm:$0xff]
    %v238 = vld [vmem:[#allocation2 + $0x358] sm:$0xff]
    %v239 = vld [vmem:[#allocation2 + $0x360] sm:$0xff]
    %v240 = vld [vmem:[#allocation2 + $0x368] sm:$0xff]
    %v241 = vld [vmem:[#allocation2 + $0x370] sm:$0xff]
    %v242 = vld [vmem:[#allocation2 + $0x378] sm:$0xff]
    %v243 = vld [vmem:[#allocation2 + $0x380] sm:$0xff]
    %v244 = vld [vmem:[#allocation2 + $0x388] sm:$0xff]
    %v245 = vld [vmem:[#allocation2 + $0x390] sm:$0xff]
    %v246 = vld [vmem:[#allocation2 + $0x398] sm:$0xff]
    %v247 = vld [vmem:[#allocation2 + $0x3a0] sm:$0xff]
    %v248 = vld [vmem:[#allocation2 + $0x3a8] sm:$0xff]
    %v249 = vld [vmem:[#allocation2 + $0x3b0] sm:$0xff]
    %v250 = vld [vmem:[#allocation2 + $0x3b8] sm:$0xff]
    %v251 = vld [vmem:[#allocation2 + $0x3c0] sm:$0xff]
    %v252 = vld [vmem:[#allocation2 + $0x3c8] sm:$0xff]
    %v253 = vld [vmem:[#allocation2 + $0x3d0] sm:$0xff]
    %v254 = vld [vmem:[#allocation2 + $0x3d8] sm:$0xff]
    %v255 = vld [vmem:[#allocation2 + $0x3e0] sm:$0xff]
    %v256 = vld [vmem:[#allocation2 + $0x3e8] sm:$0xff]
    %v257 = vld [vmem:[#allocation2 + $0x3f0] sm:$0xff]
    %v258 = vld [vmem:[#allocation2 + $0x3f8] sm:$0xff]
    %v259 = vld [vmem:[#allocation2 + $0x400] sm:$0xff]
    %v260 = vld [vmem:[#allocation2 + $0x408] sm:$0xff]
    %v261 = vld [vmem:[#allocation2 + $0x410] sm:$0xff]
    %v262 = vld [vmem:[#allocation2 + $0x418] sm:$0xff]
    %v263 = vld [vmem:[#allocation2 + $0x420] sm:$0xff]
    %v264 = vld [vmem:[#allocation2 + $0x428] sm:$0xff]
    %v265 = vld [vmem:[#allocation2 + $0x430] sm:$0xff]
    %v266 = vld [vmem:[#allocation2 + $0x438] sm:$0xff]
    %v267 = vld [vmem:[#allocation2 + $0x440] sm:$0xff]
    %v268 = vld [vmem:[#allocation2 + $0x448] sm:$0xff]
    %v269 = vld [vmem:[#allocation2 + $0x450] sm:$0xff]
    %v270 = vld [vmem:[#allocation2 + $0x458] sm:$0xff]
    %v271 = vld [vmem:[#allocation2 + $0x460] sm:$0xff]
    %v272 = vld [vmem:[#allocation2 + $0x468] sm:$0xff]
    %v273 = vld [vmem:[#allocation2 + $0x470] sm:$0xff]
    %v274 = vld [vmem:[#allocation2 + $0x478] sm:$0xff]
    %v275 = vld [vmem:[#allocation2 + $0x480] sm:$0xff]
    %v276 = vld [vmem:[#allocation2 + $0x488] sm:$0xff]
    %v277 = vld [vmem:[#allocation2 + $0x490] sm:$0xff]
    %v278 = vld [vmem:[#allocation2 + $0x498] sm:$0xff]
    %v279 = vld [vmem:[#allocation2 + $0x4a0] sm:$0xff]
    %v280 = vld [vmem:[#allocation2 + $0x4a8] sm:$0xff]
    %v281 = vld [vmem:[#allocation2 + $0x4b0] sm:$0xff]
    %v282 = vld [vmem:[#allocation2 + $0x4b8] sm:$0xff]
    %v283 = vld [vmem:[#allocation2 + $0x4c0] sm:$0xff]
    %v284 = vld [vmem:[#allocation2 + $0x4c8] sm:$0xff]
    %v285 = vld [vmem:[#allocation2 + $0x4d0] sm:$0xff]
    %v286 = vld [vmem:[#allocation2 + $0x4d8] sm:$0xff]
    %v287 = vld [vmem:[#allocation2 + $0x4e0] sm:$0xff]
    %v288 = vld [vmem:[#allocation2 + $0x4e8] sm:$0xff]
    %v289 = vld [vmem:[#allocation2 + $0x4f0] sm:$0xff]
    %v290 = vld [vmem:[#allocation2 + $0x4f8] sm:$0xff]
    %v291 = vld [vmem:[#allocation2 + $0x500] sm:$0xff]
    %v292 = vld [vmem:[#allocation2 + $0x508] sm:$0xff]
    %v293 = vld [vmem:[#allocation2 + $0x510] sm:$0xff]
    %v294 = vld [vmem:[#allocation2 + $0x518] sm:$0xff]
    %v295 = vld [vmem:[#allocation2 + $0x520] sm:$0xff]
    %v296 = vld [vmem:[#allocation2 + $0x528] sm:$0xff]
    %v297 = vld [vmem:[#allocation2 + $0x530] sm:$0xff]
    %v298 = vld [vmem:[#allocation2 + $0x538] sm:$0xff]
    %v299 = vld [vmem:[#allocation2 + $0x540] sm:$0xff]
    %v300 = vld [vmem:[#allocation2 + $0x548] sm:$0xff]
    %v301 = vld [vmem:[#allocation2 + $0x550] sm:$0xff]
    %v302 = vld [vmem:[#allocation2 + $0x558] sm:$0xff]
    %v303 = vld [vmem:[#allocation2 + $0x560] sm:$0xff]
    %v304 = vld [vmem:[#allocation2 + $0x568] sm:$0xff]
    %v305 = vld [vmem:[#allocation2 + $0x570] sm:$0xff]
    %v306 = vld [vmem:[#allocation2 + $0x578] sm:$0xff]
    %v307 = vld [vmem:[#allocation2 + $0x580] sm:$0xff]
    %v308 = vld [vmem:[#allocation2 + $0x588] sm:$0xff]
    %v309 = vld [vmem:[#allocation2 + $0x590] sm:$0xff]
    %v310 = vld [vmem:[#allocation2 + $0x598] sm:$0xff]
    %v311 = vld [vmem:[#allocation2 + $0x5a0] sm:$0xff]
    %v312 = vld [vmem:[#allocation2 + $0x5a8] sm:$0xff]
    %v313 = vld [vmem:[#allocation2 + $0x5b0] sm:$0xff]
    %v314 = vld [vmem:[#allocation2 + $0x5b8] sm:$0xff]
    %v315 = vld [vmem:[#allocation2 + $0x5c0] sm:$0xff]
    %v316 = vld [vmem:[#allocation2 + $0x5c8] sm:$0xff]
    %v317 = vld [vmem:[#allocation2 + $0x5d0] sm:$0xff]
    %v318 = vld [vmem:[#allocation2 + $0x5d8] sm:$0xff]
    %v319 = vld [vmem:[#allocation2 + $0x5e0] sm:$0xff]
    %v320 = vld [vmem:[#allocation2 + $0x5e8] sm:$0xff]
    %v321 = vld [vmem:[#allocation2 + $0x5f0] sm:$0xff]
    %v322 = vld [vmem:[#allocation2 + $0x5f8] sm:$0xff]
    %v323 = vld [vmem:[#allocation2 + $0x600] sm:$0xff]
    %v324 = vld [vmem:[#allocation2 + $0x608] sm:$0xff]
    %v325 = vld [vmem:[#allocation2 + $0x610] sm:$0xff]
    %v326 = vld [vmem:[#allocation2 + $0x618] sm:$0xff]
    %v327 = vld [vmem:[#allocation2 + $0x620] sm:$0xff]
    %v328 = vld [vmem:[#allocation2 + $0x628] sm:$0xff]
    %v329 = vld [vmem:[#allocation2 + $0x630] sm:$0xff]
    %v330 = vld [vmem:[#allocation2 + $0x638] sm:$0xff]
    %v331 = vld [vmem:[#allocation2 + $0x640] sm:$0xff]
    %v332 = vld [vmem:[#allocation2 + $0x648] sm:$0xff]
    %v333 = vld [vmem:[#allocation2 + $0x650] sm:$0xff]
    %v334 = vld [vmem:[#allocation2 + $0x658] sm:$0xff]
    %v335 = vld [vmem:[#allocation2 + $0x660] sm:$0xff]
    %v336 = vld [vmem:[#allocation2 + $0x668] sm:$0xff]
    %v337 = vld [vmem:[#allocation2 + $0x670] sm:$0xff]
    %v338 = vld [vmem:[#allocation2 + $0x678] sm:$0xff]
    %v339 = vld [vmem:[#allocation2 + $0x680] sm:$0xff]
    %v340 = vld [vmem:[#allocation2 + $0x688] sm:$0xff]
    %v341 = vld [vmem:[#allocation2 + $0x690] sm:$0xff]
    %v342 = vld [vmem:[#allocation2 + $0x698] sm:$0xff]
    %v343 = vld [vmem:[#allocation2 + $0x6a0] sm:$0xff]
    %v344 = vld [vmem:[#allocation2 + $0x6a8] sm:$0xff]
    %v345 = vld [vmem:[#allocation2 + $0x6b0] sm:$0xff]
    %v346 = vld [vmem:[#allocation2 + $0x6b8] sm:$0xff]
    %v347 = vld [vmem:[#allocation2 + $0x6c0] sm:$0xff]
    %v348 = vld [vmem:[#allocation2 + $0x6c8] sm:$0xff]
    %v349 = vld [vmem:[#allocation2 + $0x6d0] sm:$0xff]
    %v350 = vld [vmem:[#allocation2 + $0x6d8] sm:$0xff]
    %v351 = vld [vmem:[#allocation2 + $0x6e0] sm:$0xff]
    %v352 = vld [vmem:[#allocation2 + $0x6e8] sm:$0xff]
    %v353 = vld [vmem:[#allocation2 + $0x6f0] sm:$0xff]
    %v354 = vld [vmem:[#allocation2 + $0x6f8] sm:$0xff]
    %v355 = vld [vmem:[#allocation2 + $0x700] sm:$0xff]
    %v356 = vld [vmem:[#allocation2 + $0x708] sm:$0xff]
    %v357 = vld [vmem:[#allocation2 + $0x710] sm:$0xff]
    %v358 = vld [vmem:[#allocation2 + $0x718] sm:$0xff]
    %v359 = vld [vmem:[#allocation2 + $0x720] sm:$0xff]
    %v360 = vld [vmem:[#allocation2 + $0x728] sm:$0xff]
    %v361 = vld [vmem:[#allocation2 + $0x730] sm:$0xff]
    %v362 = vld [vmem:[#allocation2 + $0x738] sm:$0xff]
    %v363 = vld [vmem:[#allocation2 + $0x740] sm:$0xff]
    %v364 = vld [vmem:[#allocation2 + $0x748] sm:$0xff]
    %v365 = vld [vmem:[#allocation2 + $0x750] sm:$0xff]
    %v366 = vld [vmem:[#allocation2 + $0x758] sm:$0xff]
    %v367 = vld [vmem:[#allocation2 + $0x760] sm:$0xff]
    %v368 = vld [vmem:[#allocation2 + $0x768] sm:$0xff]
    %v369 = vld [vmem:[#allocation2 + $0x770] sm:$0xff]
    %v370 = vld [vmem:[#allocation2 + $0x778] sm:$0xff]
    %v371 = vld [vmem:[#allocation2 + $0x780] sm:$0xff]
    %v372 = vld [vmem:[#allocation2 + $0x788] sm:$0xff]
    %v373 = vld [vmem:[#allocation2 + $0x790] sm:$0xff]
    %v374 = vld [vmem:[#allocation2 + $0x798] sm:$0xff]
    %v375 = vld [vmem:[#allocation2 + $0x7a0] sm:$0xff]
    %v376 = vld [vmem:[#allocation2 + $0x7a8] sm:$0xff]
    %v377 = vld [vmem:[#allocation2 + $0x7b0] sm:$0xff]
    %v378 = vld [vmem:[#allocation2 + $0x7b8] sm:$0xff]
    %v379 = vld [vmem:[#allocation2 + $0x7c0] sm:$0xff]
    %v380 = vld [vmem:[#allocation2 + $0x7c8] sm:$0xff]
    %v381 = vld [vmem:[#allocation2 + $0x7d0] sm:$0xff]
    %v382 = vld [vmem:[#allocation2 + $0x7d8] sm:$0xff]
    %v383 = vld [vmem:[#allocation2 + $0x7e0] sm:$0xff]
    %v384 = vld [vmem:[#allocation2 + $0x7e8] sm:$0xff]
    %v385 = vld [vmem:[#allocation2 + $0x7f0] sm:$0xff]
    %v386 = vld [vmem:[#allocation2 + $0x7f8] sm:$0xff]
    %v643 = vunpack.c.l.b16 %v131
    %v644 = vunpack.c.h.b16 %v131
    %v645 = vunpack.c.l.b16 %v132
    %v646 = vunpack.c.h.b16 %v132
    %v647 = vunpack.c.l.b16 %v133
    %v648 = vunpack.c.h.b16 %v133
    %v649 = vunpack.c.l.b16 %v134
    %v650 = vunpack.c.h.b16 %v134
    %v651 = vunpack.c.l.b16 %v135
    %v652 = vunpack.c.h.b16 %v135
    %v653 = vunpack.c.l.b16 %v136
    %v654 = vunpack.c.h.b16 %v136
    %v655 = vunpack.c.l.b16 %v137
    %v656 = vunpack.c.h.b16 %v137
    %v657 = vunpack.c.l.b16 %v138
    %v658 = vunpack.c.h.b16 %v138
    %v659 = vunpack.c.l.b16 %v139
    %v660 = vunpack.c.h.b16 %v139
    %v661 = vunpack.c.l.b16 %v140
    %v662 = vunpack.c.h.b16 %v140
    %v663 = vunpack.c.l.b16 %v141
    %v664 = vunpack.c.h.b16 %v141
    %v665 = vunpack.c.l.b16 %v142
    %v666 = vunpack.c.h.b16 %v142
    %v667 = vunpack.c.l.b16 %v143
    %v668 = vunpack.c.h.b16 %v143
    %v669 = vunpack.c.l.b16 %v144
    %v670 = vunpack.c.h.b16 %v144
    %v671 = vunpack.c.l.b16 %v145
    %v672 = vunpack.c.h.b16 %v145
    %v673 = vunpack.c.l.b16 %v146
    %v674 = vunpack.c.h.b16 %v146
    %v675 = vunpack.c.l.b16 %v147
    %v676 = vunpack.c.h.b16 %v147
    %v677 = vunpack.c.l.b16 %v148
    %v678 = vunpack.c.h.b16 %v148
    %v679 = vunpack.c.l.b16 %v149
    %v680 = vunpack.c.h.b16 %v149
    %v681 = vunpack.c.l.b16 %v150
    %v682 = vunpack.c.h.b16 %v150
    %v683 = vunpack.c.l.b16 %v151
    %v684 = vunpack.c.h.b16 %v151
    %v685 = vunpack.c.l.b16 %v152
    %v686 = vunpack.c.h.b16 %v152
    %v687 = vunpack.c.l.b16 %v153
    %v688 = vunpack.c.h.b16 %v153
    %v689 = vunpack.c.l.b16 %v154
    %v690 = vunpack.c.h.b16 %v154
    %v691 = vunpack.c.l.b16 %v155
    %v692 = vunpack.c.h.b16 %v155
    %v693 = vunpack.c.l.b16 %v156
    %v694 = vunpack.c.h.b16 %v156
    %v695 = vunpack.c.l.b16 %v157
    %v696 = vunpack.c.h.b16 %v157
    %v697 = vunpack.c.l.b16 %v158
    %v698 = vunpack.c.h.b16 %v158
    %v699 = vunpack.c.l.b16 %v159
    %v700 = vunpack.c.h.b16 %v159
    %v701 = vunpack.c.l.b16 %v160
    %v702 = vunpack.c.h.b16 %v160
    %v703 = vunpack.c.l.b16 %v161
    %v704 = vunpack.c.h.b16 %v161
    %v705 = vunpack.c.l.b16 %v162
    %v706 = vunpack.c.h.b16 %v162
    %v707 = vunpack.c.l.b16 %v163
    %v708 = vunpack.c.h.b16 %v163
    %v709 = vunpack.c.l.b16 %v164
    %v710 = vunpack.c.h.b16 %v164
    %v711 = vunpack.c.l.b16 %v165
    %v712 = vunpack.c.h.b16 %v165
    %v713 = vunpack.c.l.b16 %v166
    %v714 = vunpack.c.h.b16 %v166
    %v715 = vunpack.c.l.b16 %v167
    %v716 = vunpack.c.h.b16 %v167
    %v717 = vunpack.c.l.b16 %v168
    %v718 = vunpack.c.h.b16 %v168
    %v719 = vunpack.c.l.b16 %v169
    %v720 = vunpack.c.h.b16 %v169
    %v721 = vunpack.c.l.b16 %v170
    %v722 = vunpack.c.h.b16 %v170
    %v723 = vunpack.c.l.b16 %v171
    %v724 = vunpack.c.h.b16 %v171
    %v725 = vunpack.c.l.b16 %v172
    %v726 = vunpack.c.h.b16 %v172
    %v727 = vunpack.c.l.b16 %v173
    %v728 = vunpack.c.h.b16 %v173
    %v729 = vunpack.c.l.b16 %v174
    %v730 = vunpack.c.h.b16 %v174
    %v731 = vunpack.c.l.b16 %v175
    %v732 = vunpack.c.h.b16 %v175
    %v733 = vunpack.c.l.b16 %v176
    %v734 = vunpack.c.h.b16 %v176
    %v735 = vunpack.c.l.b16 %v177
    %v736 = vunpack.c.h.b16 %v177
    %v737 = vunpack.c.l.b16 %v178
    %v738 = vunpack.c.h.b16 %v178
    %v739 = vunpack.c.l.b16 %v179
    %v740 = vunpack.c.h.b16 %v179
    %v741 = vunpack.c.l.b16 %v180
    %v742 = vunpack.c.h.b16 %v180
    %v743 = vunpack.c.l.b16 %v181
    %v744 = vunpack.c.h.b16 %v181
    %v745 = vunpack.c.l.b16 %v182
    %v746 = vunpack.c.h.b16 %v182
    %v747 = vunpack.c.l.b16 %v183
    %v748 = vunpack.c.h.b16 %v183
    %v749 = vunpack.c.l.b16 %v184
    %v750 = vunpack.c.h.b16 %v184
    %v751 = vunpack.c.l.b16 %v185
    %v752 = vunpack.c.h.b16 %v185
    %v753 = vunpack.c.l.b16 %v186
    %v754 = vunpack.c.h.b16 %v186
    %v755 = vunpack.c.l.b16 %v187
    %v756 = vunpack.c.h.b16 %v187
    %v757 = vunpack.c.l.b16 %v188
    %v758 = vunpack.c.h.b16 %v188
    %v759 = vunpack.c.l.b16 %v189
    %v760 = vunpack.c.h.b16 %v189
    %v761 = vunpack.c.l.b16 %v190
    %v762 = vunpack.c.h.b16 %v190
    %v763 = vunpack.c.l.b16 %v191
    %v764 = vunpack.c.h.b16 %v191
    %v765 = vunpack.c.l.b16 %v192
    %v766 = vunpack.c.h.b16 %v192
    %v767 = vunpack.c.l.b16 %v193
    %v768 = vunpack.c.h.b16 %v193
    %v769 = vunpack.c.l.b16 %v194
    %v770 = vunpack.c.h.b16 %v194
    %v771 = vunpack.c.l.b16 %v195
    %v772 = vunpack.c.h.b16 %v195
    %v773 = vunpack.c.l.b16 %v196
    %v774 = vunpack.c.h.b16 %v196
    %v775 = vunpack.c.l.b16 %v197
    %v776 = vunpack.c.h.b16 %v197
    %v777 = vunpack.c.l.b16 %v198
    %v778 = vunpack.c.h.b16 %v198
    %v779 = vunpack.c.l.b16 %v199
    %v780 = vunpack.c.h.b16 %v199
    %v781 = vunpack.c.l.b16 %v200
    %v782 = vunpack.c.h.b16 %v200
    %v783 = vunpack.c.l.b16 %v201
    %v784 = vunpack.c.h.b16 %v201
    %v785 = vunpack.c.l.b16 %v202
    %v786 = vunpack.c.h.b16 %v202
    %v787 = vunpack.c.l.b16 %v203
    %v788 = vunpack.c.h.b16 %v203
    %v789 = vunpack.c.l.b16 %v204
    %v790 = vunpack.c.h.b16 %v204
    %v791 = vunpack.c.l.b16 %v205
    %v792 = vunpack.c.h.b16 %v205
    %v793 = vunpack.c.l.b16 %v206
    %v794 = vunpack.c.h.b16 %v206
    %v795 = vunpack.c.l.b16 %v207
    %v796 = vunpack.c.h.b16 %v207
    %v797 = vunpack.c.l.b16 %v208
    %v798 = vunpack.c.h.b16 %v208
    %v799 = vunpack.c.l.b16 %v209
    %v800 = vunpack.c.h.b16 %v209
    %v801 = vunpack.c.l.b16 %v210
    %v802 = vunpack.c.h.b16 %v210
    %v803 = vunpack.c.l.b16 %v211
    %v804 = vunpack.c.h.b16 %v211
    %v805 = vunpack.c.l.b16 %v212
    %v806 = vunpack.c.h.b16 %v212
    %v807 = vunpack.c.l.b16 %v213
    %v808 = vunpack.c.h.b16 %v213
    %v809 = vunpack.c.l.b16 %v214
    %v810 = vunpack.c.h.b16 %v214
    %v811 = vunpack.c.l.b16 %v215
    %v812 = vunpack.c.h.b16 %v215
    %v813 = vunpack.c.l.b16 %v216
    %v814 = vunpack.c.h.b16 %v216
    %v815 = vunpack.c.l.b16 %v217
    %v816 = vunpack.c.h.b16 %v217
    %v817 = vunpack.c.l.b16 %v218
    %v818 = vunpack.c.h.b16 %v218
    %v819 = vunpack.c.l.b16 %v219
    %v820 = vunpack.c.h.b16 %v219
    %v821 = vunpack.c.l.b16 %v220
    %v822 = vunpack.c.h.b16 %v220
    %v823 = vunpack.c.l.b16 %v221
    %v824 = vunpack.c.h.b16 %v221
    %v825 = vunpack.c.l.b16 %v222
    %v826 = vunpack.c.h.b16 %v222
    %v827 = vunpack.c.l.b16 %v223
    %v828 = vunpack.c.h.b16 %v223
    %v829 = vunpack.c.l.b16 %v224
    %v830 = vunpack.c.h.b16 %v224
    %v831 = vunpack.c.l.b16 %v225
    %v832 = vunpack.c.h.b16 %v225
    %v833 = vunpack.c.l.b16 %v226
    %v834 = vunpack.c.h.b16 %v226
    %v835 = vunpack.c.l.b16 %v227
    %v836 = vunpack.c.h.b16 %v227
    %v837 = vunpack.c.l.b16 %v228
    %v838 = vunpack.c.h.b16 %v228
    %v839 = vunpack.c.l.b16 %v229
    %v840 = vunpack.c.h.b16 %v229
    %v841 = vunpack.c.l.b16 %v230
    %v842 = vunpack.c.h.b16 %v230
    %v843 = vunpack.c.l.b16 %v231
    %v844 = vunpack.c.h.b16 %v231
    %v845 = vunpack.c.l.b16 %v232
    %v846 = vunpack.c.h.b16 %v232
    %v847 = vunpack.c.l.b16 %v233
    %v848 = vunpack.c.h.b16 %v233
    %v849 = vunpack.c.l.b16 %v234
    %v850 = vunpack.c.h.b16 %v234
    %v851 = vunpack.c.l.b16 %v235
    %v852 = vunpack.c.h.b16 %v235
    %v853 = vunpack.c.l.b16 %v236
    %v854 = vunpack.c.h.b16 %v236
    %v855 = vunpack.c.l.b16 %v237
    %v856 = vunpack.c.h.b16 %v237
    %v857 = vunpack.c.l.b16 %v238
    %v858 = vunpack.c.h.b16 %v238
    %v859 = vunpack.c.l.b16 %v239
    %v860 = vunpack.c.h.b16 %v239
    %v861 = vunpack.c.l.b16 %v240
    %v862 = vunpack.c.h.b16 %v240
    %v863 = vunpack.c.l.b16 %v241
    %v864 = vunpack.c.h.b16 %v241
    %v865 = vunpack.c.l.b16 %v242
    %v866 = vunpack.c.h.b16 %v242
    %v867 = vunpack.c.l.b16 %v243
    %v868 = vunpack.c.h.b16 %v243
    %v869 = vunpack.c.l.b16 %v244
    %v870 = vunpack.c.h.b16 %v244
    %v871 = vunpack.c.l.b16 %v245
    %v872 = vunpack.c.h.b16 %v245
    %v873 = vunpack.c.l.b16 %v246
    %v874 = vunpack.c.h.b16 %v246
    %v875 = vunpack.c.l.b16 %v247
    %v876 = vunpack.c.h.b16 %v247
    %v877 = vunpack.c.l.b16 %v248
    %v878 = vunpack.c.h.b16 %v248
    %v879 = vunpack.c.l.b16 %v249
    %v880 = vunpack.c.h.b16 %v249
    %v881 = vunpack.c.l.b16 %v250
    %v882 = vunpack.c.h.b16 %v250
    %v883 = vunpack.c.l.b16 %v251
    %v884 = vunpack.c.h.b16 %v251
    %v885 = vunpack.c.l.b16 %v252
    %v886 = vunpack.c.h.b16 %v252
    %v887 = vunpack.c.l.b16 %v253
    %v888 = vunpack.c.h.b16 %v253
    %v889 = vunpack.c.l.b16 %v254
    %v890 = vunpack.c.h.b16 %v254
    %v891 = vunpack.c.l.b16 %v255
    %v892 = vunpack.c.h.b16 %v255
    %v893 = vunpack.c.l.b16 %v256
    %v894 = vunpack.c.h.b16 %v256
    %v895 = vunpack.c.l.b16 %v257
    %v896 = vunpack.c.h.b16 %v257
    %v897 = vunpack.c.l.b16 %v258
    %v898 = vunpack.c.h.b16 %v258
    %v899 = vunpack.c.l.b16 %v259
    %v900 = vunpack.c.h.b16 %v259
    %v901 = vunpack.c.l.b16 %v260
    %v902 = vunpack.c.h.b16 %v260
    %v903 = vunpack.c.l.b16 %v261
    %v904 = vunpack.c.h.b16 %v261
    %v905 = vunpack.c.l.b16 %v262
    %v906 = vunpack.c.h.b16 %v262
    %v907 = vunpack.c.l.b16 %v263
    %v908 = vunpack.c.h.b16 %v263
    %v909 = vunpack.c.l.b16 %v264
    %v910 = vunpack.c.h.b16 %v264
    %v911 = vunpack.c.l.b16 %v265
    %v912 = vunpack.c.h.b16 %v265
    %v913 = vunpack.c.l.b16 %v266
    %v914 = vunpack.c.h.b16 %v266
    %v915 = vunpack.c.l.b16 %v267
    %v916 = vunpack.c.h.b16 %v267
    %v917 = vunpack.c.l.b16 %v268
    %v918 = vunpack.c.h.b16 %v268
    %v919 = vunpack.c.l.b16 %v269
    %v920 = vunpack.c.h.b16 %v269
    %v921 = vunpack.c.l.b16 %v270
    %v922 = vunpack.c.h.b16 %v270
    %v923 = vunpack.c.l.b16 %v271
    %v924 = vunpack.c.h.b16 %v271
    %v925 = vunpack.c.l.b16 %v272
    %v926 = vunpack.c.h.b16 %v272
    %v927 = vunpack.c.l.b16 %v273
    %v928 = vunpack.c.h.b16 %v273
    %v929 = vunpack.c.l.b16 %v274
    %v930 = vunpack.c.h.b16 %v274
    %v931 = vunpack.c.l.b16 %v275
    %v932 = vunpack.c.h.b16 %v275
    %v933 = vunpack.c.l.b16 %v276
    %v934 = vunpack.c.h.b16 %v276
    %v935 = vunpack.c.l.b16 %v277
    %v936 = vunpack.c.h.b16 %v277
    %v937 = vunpack.c.l.b16 %v278
    %v938 = vunpack.c.h.b16 %v278
    %v939 = vunpack.c.l.b16 %v279
    %v940 = vunpack.c.h.b16 %v279
    %v941 = vunpack.c.l.b16 %v280
    %v942 = vunpack.c.h.b16 %v280
    %v943 = vunpack.c.l.b16 %v281
    %v944 = vunpack.c.h.b16 %v281
    %v945 = vunpack.c.l.b16 %v282
    %v946 = vunpack.c.h.b16 %v282
    %v947 = vunpack.c.l.b16 %v283
    %v948 = vunpack.c.h.b16 %v283
    %v949 = vunpack.c.l.b16 %v284
    %v950 = vunpack.c.h.b16 %v284
    %v951 = vunpack.c.l.b16 %v285
    %v952 = vunpack.c.h.b16 %v285
    %v953 = vunpack.c.l.b16 %v286
    %v954 = vunpack.c.h.b16 %v286
    %v955 = vunpack.c.l.b16 %v287
    %v956 = vunpack.c.h.b16 %v287
    %v957 = vunpack.c.l.b16 %v288
    %v958 = vunpack.c.h.b16 %v288
    %v959 = vunpack.c.l.b16 %v289
    %v960 = vunpack.c.h.b16 %v289
    %v961 = vunpack.c.l.b16 %v290
    %v962 = vunpack.c.h.b16 %v290
    %v963 = vunpack.c.l.b16 %v291
    %v964 = vunpack.c.h.b16 %v291
    %v965 = vunpack.c.l.b16 %v292
    %v966 = vunpack.c.h.b16 %v292
    %v967 = vunpack.c.l.b16 %v293
    %v968 = vunpack.c.h.b16 %v293
    %v969 = vunpack.c.l.b16 %v294
    %v970 = vunpack.c.h.b16 %v294
    %v971 = vunpack.c.l.b16 %v295
    %v972 = vunpack.c.h.b16 %v295
    %v973 = vunpack.c.l.b16 %v296
    %v974 = vunpack.c.h.b16 %v296
    %v975 = vunpack.c.l.b16 %v297
    %v976 = vunpack.c.h.b16 %v297
    %v977 = vunpack.c.l.b16 %v298
    %v978 = vunpack.c.h.b16 %v298
    %v979 = vunpack.c.l.b16 %v299
    %v980 = vunpack.c.h.b16 %v299
    %v981 = vunpack.c.l.b16 %v300
    %v982 = vunpack.c.h.b16 %v300
    %v983 = vunpack.c.l.b16 %v301
    %v984 = vunpack.c.h.b16 %v301
    %v985 = vunpack.c.l.b16 %v302
    %v986 = vunpack.c.h.b16 %v302
    %v987 = vunpack.c.l.b16 %v303
    %v988 = vunpack.c.h.b16 %v303
    %v989 = vunpack.c.l.b16 %v304
    %v990 = vunpack.c.h.b16 %v304
    %v991 = vunpack.c.l.b16 %v305
    %v992 = vunpack.c.h.b16 %v305
    %v993 = vunpack.c.l.b16 %v306
    %v994 = vunpack.c.h.b16 %v306
    %v995 = vunpack.c.l.b16 %v307
    %v996 = vunpack.c.h.b16 %v307
    %v997 = vunpack.c.l.b16 %v308
    %v998 = vunpack.c.h.b16 %v308
    %v999 = vunpack.c.l.b16 %v309
    %v1000 = vunpack.c.h.b16 %v309
    %v1001 = vunpack.c.l.b16 %v310
    %v1002 = vunpack.c.h.b16 %v310
    %v1003 = vunpack.c.l.b16 %v311
    %v1004 = vunpack.c.h.b16 %v311
    %v1005 = vunpack.c.l.b16 %v312
    %v1006 = vunpack.c.h.b16 %v312
    %v1007 = vunpack.c.l.b16 %v313
    %v1008 = vunpack.c.h.b16 %v313
    %v1009 = vunpack.c.l.b16 %v314
    %v1010 = vunpack.c.h.b16 %v314
    %v1011 = vunpack.c.l.b16 %v315
    %v1012 = vunpack.c.h.b16 %v315
    %v1013 = vunpack.c.l.b16 %v316
    %v1014 = vunpack.c.h.b16 %v316
    %v1015 = vunpack.c.l.b16 %v317
    %v1016 = vunpack.c.h.b16 %v317
    %v1017 = vunpack.c.l.b16 %v318
    %v1018 = vunpack.c.h.b16 %v318
    %v1019 = vunpack.c.l.b16 %v319
    %v1020 = vunpack.c.h.b16 %v319
    %v1021 = vunpack.c.l.b16 %v320
    %v1022 = vunpack.c.h.b16 %v320
    %v1023 = vunpack.c.l.b16 %v321
    %v1024 = vunpack.c.h.b16 %v321
    %v1025 = vunpack.c.l.b16 %v322
    %v1026 = vunpack.c.h.b16 %v322
    %v1027 = vunpack.c.l.b16 %v323
    %v1028 = vunpack.c.h.b16 %v323
    %v1029 = vunpack.c.l.b16 %v324
    %v1030 = vunpack.c.h.b16 %v324
    %v1031 = vunpack.c.l.b16 %v325
    %v1032 = vunpack.c.h.b16 %v325
    %v1033 = vunpack.c.l.b16 %v326
    %v1034 = vunpack.c.h.b16 %v326
    %v1035 = vunpack.c.l.b16 %v327
    %v1036 = vunpack.c.h.b16 %v327
    %v1037 = vunpack.c.l.b16 %v328
    %v1038 = vunpack.c.h.b16 %v328
    %v1039 = vunpack.c.l.b16 %v329
    %v1040 = vunpack.c.h.b16 %v329
    %v1041 = vunpack.c.l.b16 %v330
    %v1042 = vunpack.c.h.b16 %v330
    %v1043 = vunpack.c.l.b16 %v331
    %v1044 = vunpack.c.h.b16 %v331
    %v1045 = vunpack.c.l.b16 %v332
    %v1046 = vunpack.c.h.b16 %v332
    %v1047 = vunpack.c.l.b16 %v333
    %v1048 = vunpack.c.h.b16 %v333
    %v1049 = vunpack.c.l.b16 %v334
    %v1050 = vunpack.c.h.b16 %v334
    %v1051 = vunpack.c.l.b16 %v335
    %v1052 = vunpack.c.h.b16 %v335
    %v1053 = vunpack.c.l.b16 %v336
    %v1054 = vunpack.c.h.b16 %v336
    %v1055 = vunpack.c.l.b16 %v337
    %v1056 = vunpack.c.h.b16 %v337
    %v1057 = vunpack.c.l.b16 %v338
    %v1058 = vunpack.c.h.b16 %v338
    %v1059 = vunpack.c.l.b16 %v339
    %v1060 = vunpack.c.h.b16 %v339
    %v1061 = vunpack.c.l.b16 %v340
    %v1062 = vunpack.c.h.b16 %v340
    %v1063 = vunpack.c.l.b16 %v341
    %v1064 = vunpack.c.h.b16 %v341
    %v1065 = vunpack.c.l.b16 %v342
    %v1066 = vunpack.c.h.b16 %v342
    %v1067 = vunpack.c.l.b16 %v343
    %v1068 = vunpack.c.h.b16 %v343
    %v1069 = vunpack.c.l.b16 %v344
    %v1070 = vunpack.c.h.b16 %v344
    %v1071 = vunpack.c.l.b16 %v345
    %v1072 = vunpack.c.h.b16 %v345
    %v1073 = vunpack.c.l.b16 %v346
    %v1074 = vunpack.c.h.b16 %v346
    %v1075 = vunpack.c.l.b16 %v347
    %v1076 = vunpack.c.h.b16 %v347
    %v1077 = vunpack.c.l.b16 %v348
    %v1078 = vunpack.c.h.b16 %v348
    %v1079 = vunpack.c.l.b16 %v349
    %v1080 = vunpack.c.h.b16 %v349
    %v1081 = vunpack.c.l.b16 %v350
    %v1082 = vunpack.c.h.b16 %v350
    %v1083 = vunpack.c.l.b16 %v351
    %v1084 = vunpack.c.h.b16 %v351
    %v1085 = vunpack.c.l.b16 %v352
    %v1086 = vunpack.c.h.b16 %v352
    %v1087 = vunpack.c.l.b16 %v353
    %v1088 = vunpack.c.h.b16 %v353
    %v1089 = vunpack.c.l.b16 %v354
    %v1090 = vunpack.c.h.b16 %v354
    %v1091 = vunpack.c.l.b16 %v355
    %v1092 = vunpack.c.h.b16 %v355
    %v1093 = vunpack.c.l.b16 %v356
    %v1094 = vunpack.c.h.b16 %v356
    %v1095 = vunpack.c.l.b16 %v357
    %v1096 = vunpack.c.h.b16 %v357
    %v1097 = vunpack.c.l.b16 %v358
    %v1098 = vunpack.c.h.b16 %v358
    %v1099 = vunpack.c.l.b16 %v359
    %v1100 = vunpack.c.h.b16 %v359
    %v1101 = vunpack.c.l.b16 %v360
    %v1102 = vunpack.c.h.b16 %v360
    %v1103 = vunpack.c.l.b16 %v361
    %v1104 = vunpack.c.h.b16 %v361
    %v1105 = vunpack.c.l.b16 %v362
    %v1106 = vunpack.c.h.b16 %v362
    %v1107 = vunpack.c.l.b16 %v363
    %v1108 = vunpack.c.h.b16 %v363
    %v1109 = vunpack.c.l.b16 %v364
    %v1110 = vunpack.c.h.b16 %v364
    %v1111 = vunpack.c.l.b16 %v365
    %v1112 = vunpack.c.h.b16 %v365
    %v1113 = vunpack.c.l.b16 %v366
    %v1114 = vunpack.c.h.b16 %v366
    %v1115 = vunpack.c.l.b16 %v367
    %v1116 = vunpack.c.h.b16 %v367
    %v1117 = vunpack.c.l.b16 %v368
    %v1118 = vunpack.c.h.b16 %v368
    %v1119 = vunpack.c.l.b16 %v369
    %v1120 = vunpack.c.h.b16 %v369
    %v1121 = vunpack.c.l.b16 %v370
    %v1122 = vunpack.c.h.b16 %v370
    %v1123 = vunpack.c.l.b16 %v371
    %v1124 = vunpack.c.h.b16 %v371
    %v1125 = vunpack.c.l.b16 %v372
    %v1126 = vunpack.c.h.b16 %v372
    %v1127 = vunpack.c.l.b16 %v373
    %v1128 = vunpack.c.h.b16 %v373
    %v1129 = vunpack.c.l.b16 %v374
    %v1130 = vunpack.c.h.b16 %v374
    %v1131 = vunpack.c.l.b16 %v375
    %v1132 = vunpack.c.h.b16 %v375
    %v1133 = vunpack.c.l.b16 %v376
    %v1134 = vunpack.c.h.b16 %v376
    %v1135 = vunpack.c.l.b16 %v377
    %v1136 = vunpack.c.h.b16 %v377
    %v1137 = vunpack.c.l.b16 %v378
    %v1138 = vunpack.c.h.b16 %v378
    %v1139 = vunpack.c.l.b16 %v379
    %v1140 = vunpack.c.h.b16 %v379
    %v1141 = vunpack.c.l.b16 %v380
    %v1142 = vunpack.c.h.b16 %v380
    %v1143 = vunpack.c.l.b16 %v381
    %v1144 = vunpack.c.h.b16 %v381
    %v1145 = vunpack.c.l.b16 %v382
    %v1146 = vunpack.c.h.b16 %v382
    %v1147 = vunpack.c.l.b16 %v383
    %v1148 = vunpack.c.h.b16 %v383
    %v1149 = vunpack.c.l.b16 %v384
    %v1150 = vunpack.c.h.b16 %v384
    %v1151 = vunpack.c.l.b16 %v385
    %v1152 = vunpack.c.h.b16 %v385
    %v1153 = vunpack.c.l.b16 %v386
    %v1154 = vunpack.c.h.b16 %v386
    %v1155 = vpack.c.b16 %v659, %v643
    %v1156 = vpack.c.b16 %v660, %v644
    %v1157 = vpack.c.b16 %v661, %v645
    %v1158 = vpack.c.b16 %v662, %v646
    %v1159 = vpack.c.b16 %v663, %v647
    %v1160 = vpack.c.b16 %v664, %v648
    %v1161 = vpack.c.b16 %v665, %v649
    %v1162 = vpack.c.b16 %v666, %v650
    %v1163 = vpack.c.b16 %v667, %v651
    %v1164 = vpack.c.b16 %v668, %v652
    %v1165 = vpack.c.b16 %v669, %v653
    %v1166 = vpack.c.b16 %v670, %v654
    %v1167 = vpack.c.b16 %v671, %v655
    %v1168 = vpack.c.b16 %v672, %v656
    %v1169 = vpack.c.b16 %v673, %v657
    %v1170 = vpack.c.b16 %v674, %v658
    %v1171 = vpack.c.b16 %v691, %v675
    %v1172 = vpack.c.b16 %v692, %v676
    %v1173 = vpack.c.b16 %v693, %v677
    %v1174 = vpack.c.b16 %v694, %v678
    %v1175 = vpack.c.b16 %v695, %v679
    %v1176 = vpack.c.b16 %v696, %v680
    %v1177 = vpack.c.b16 %v697, %v681
    %v1178 = vpack.c.b16 %v698, %v682
    %v1179 = vpack.c.b16 %v699, %v683
    %v1180 = vpack.c.b16 %v700, %v684
    %v1181 = vpack.c.b16 %v701, %v685
    %v1182 = vpack.c.b16 %v702, %v686
    %v1183 = vpack.c.b16 %v703, %v687
    %v1184 = vpack.c.b16 %v704, %v688
    %v1185 = vpack.c.b16 %v705, %v689
    %v1186 = vpack.c.b16 %v706, %v690
    %v1187 = vpack.c.b16 %v723, %v707
    %v1188 = vpack.c.b16 %v724, %v708
    %v1189 = vpack.c.b16 %v725, %v709
    %v1190 = vpack.c.b16 %v726, %v710
    %v1191 = vpack.c.b16 %v727, %v711
    %v1192 = vpack.c.b16 %v728, %v712
    %v1193 = vpack.c.b16 %v729, %v713
    %v1194 = vpack.c.b16 %v730, %v714
    %v1195 = vpack.c.b16 %v731, %v715
    %v1196 = vpack.c.b16 %v732, %v716
    %v1197 = vpack.c.b16 %v733, %v717
    %v1198 = vpack.c.b16 %v734, %v718
    %v1199 = vpack.c.b16 %v735, %v719
    %v1200 = vpack.c.b16 %v736, %v720
    %v1201 = vpack.c.b16 %v737, %v721
    %v1202 = vpack.c.b16 %v738, %v722
    %v1203 = vpack.c.b16 %v755, %v739
    %v1204 = vpack.c.b16 %v756, %v740
    %v1205 = vpack.c.b16 %v757, %v741
    %v1206 = vpack.c.b16 %v758, %v742
    %v1207 = vpack.c.b16 %v759, %v743
    %v1208 = vpack.c.b16 %v760, %v744
    %v1209 = vpack.c.b16 %v761, %v745
    %v1210 = vpack.c.b16 %v762, %v746
    %v1211 = vpack.c.b16 %v763, %v747
    %v1212 = vpack.c.b16 %v764, %v748
    %v1213 = vpack.c.b16 %v765, %v749
    %v1214 = vpack.c.b16 %v766, %v750
    %v1215 = vpack.c.b16 %v767, %v751
    %v1216 = vpack.c.b16 %v768, %v752
    %v1217 = vpack.c.b16 %v769, %v753
    %v1218 = vpack.c.b16 %v770, %v754
    %v1219 = vpack.c.b16 %v787, %v771
    %v1220 = vpack.c.b16 %v788, %v772
    %v1221 = vpack.c.b16 %v789, %v773
    %v1222 = vpack.c.b16 %v790, %v774
    %v1223 = vpack.c.b16 %v791, %v775
    %v1224 = vpack.c.b16 %v792, %v776
    %v1225 = vpack.c.b16 %v793, %v777
    %v1226 = vpack.c.b16 %v794, %v778
    %v1227 = vpack.c.b16 %v795, %v779
    %v1228 = vpack.c.b16 %v796, %v780
    %v1229 = vpack.c.b16 %v797, %v781
    %v1230 = vpack.c.b16 %v798, %v782
    %v1231 = vpack.c.b16 %v799, %v783
    %v1232 = vpack.c.b16 %v800, %v784
    %v1233 = vpack.c.b16 %v801, %v785
    %v1234 = vpack.c.b16 %v802, %v786
    %v1235 = vpack.c.b16 %v819, %v803
    %v1236 = vpack.c.b16 %v820, %v804
    %v1237 = vpack.c.b16 %v821, %v805
    %v1238 = vpack.c.b16 %v822, %v806
    %v1239 = vpack.c.b16 %v823, %v807
    %v1240 = vpack.c.b16 %v824, %v808
    %v1241 = vpack.c.b16 %v825, %v809
    %v1242 = vpack.c.b16 %v826, %v810
    %v1243 = vpack.c.b16 %v827, %v811
    %v1244 = vpack.c.b16 %v828, %v812
    %v1245 = vpack.c.b16 %v829, %v813
    %v1246 = vpack.c.b16 %v830, %v814
    %v1247 = vpack.c.b16 %v831, %v815
    %v1248 = vpack.c.b16 %v832, %v816
    %v1249 = vpack.c.b16 %v833, %v817
    %v1250 = vpack.c.b16 %v834, %v818
    %v1251 = vpack.c.b16 %v851, %v835
    %v1252 = vpack.c.b16 %v852, %v836
    %v1253 = vpack.c.b16 %v853, %v837
    %v1254 = vpack.c.b16 %v854, %v838
    %v1255 = vpack.c.b16 %v855, %v839
    %v1256 = vpack.c.b16 %v856, %v840
    %v1257 = vpack.c.b16 %v857, %v841
    %v1258 = vpack.c.b16 %v858, %v842
    %v1259 = vpack.c.b16 %v859, %v843
    %v1260 = vpack.c.b16 %v860, %v844
    %v1261 = vpack.c.b16 %v861, %v845
    %v1262 = vpack.c.b16 %v862, %v846
    %v1263 = vpack.c.b16 %v863, %v847
    %v1264 = vpack.c.b16 %v864, %v848
    %v1265 = vpack.c.b16 %v865, %v849
    %v1266 = vpack.c.b16 %v866, %v850
    %v1267 = vpack.c.b16 %v883, %v867
    %v1268 = vpack.c.b16 %v884, %v868
    %v1269 = vpack.c.b16 %v885, %v869
    %v1270 = vpack.c.b16 %v886, %v870
    %v1271 = vpack.c.b16 %v887, %v871
    %v1272 = vpack.c.b16 %v888, %v872
    %v1273 = vpack.c.b16 %v889, %v873
    %v1274 = vpack.c.b16 %v890, %v874
    %v1275 = vpack.c.b16 %v891, %v875
    %v1276 = vpack.c.b16 %v892, %v876
    %v1277 = vpack.c.b16 %v893, %v877
    %v1278 = vpack.c.b16 %v894, %v878
    %v1279 = vpack.c.b16 %v895, %v879
    %v1280 = vpack.c.b16 %v896, %v880
    %v1281 = vpack.c.b16 %v897, %v881
    %v1282 = vpack.c.b16 %v898, %v882
    %v1283 = vpack.c.b16 %v915, %v899
    %v1284 = vpack.c.b16 %v916, %v900
    %v1285 = vpack.c.b16 %v917, %v901
    %v1286 = vpack.c.b16 %v918, %v902
    %v1287 = vpack.c.b16 %v919, %v903
    %v1288 = vpack.c.b16 %v920, %v904
    %v1289 = vpack.c.b16 %v921, %v905
    %v1290 = vpack.c.b16 %v922, %v906
    %v1291 = vpack.c.b16 %v923, %v907
    %v1292 = vpack.c.b16 %v924, %v908
    %v1293 = vpack.c.b16 %v925, %v909
    %v1294 = vpack.c.b16 %v926, %v910
    %v1295 = vpack.c.b16 %v927, %v911
    %v1296 = vpack.c.b16 %v928, %v912
    %v1297 = vpack.c.b16 %v929, %v913
    %v1298 = vpack.c.b16 %v930, %v914
    %v1299 = vpack.c.b16 %v947, %v931
    %v1300 = vpack.c.b16 %v948, %v932
    %v1301 = vpack.c.b16 %v949, %v933
    %v1302 = vpack.c.b16 %v950, %v934
    %v1303 = vpack.c.b16 %v951, %v935
    %v1304 = vpack.c.b16 %v952, %v936
    %v1305 = vpack.c.b16 %v953, %v937
    %v1306 = vpack.c.b16 %v954, %v938
    %v1307 = vpack.c.b16 %v955, %v939
    %v1308 = vpack.c.b16 %v956, %v940
    %v1309 = vpack.c.b16 %v957, %v941
    %v1310 = vpack.c.b16 %v958, %v942
    %v1311 = vpack.c.b16 %v959, %v943
    %v1312 = vpack.c.b16 %v960, %v944
    %v1313 = vpack.c.b16 %v961, %v945
    %v1314 = vpack.c.b16 %v962, %v946
    %v1315 = vpack.c.b16 %v979, %v963
    %v1316 = vpack.c.b16 %v980, %v964
    %v1317 = vpack.c.b16 %v981, %v965
    %v1318 = vpack.c.b16 %v982, %v966
    %v1319 = vpack.c.b16 %v983, %v967
    %v1320 = vpack.c.b16 %v984, %v968
    %v1321 = vpack.c.b16 %v985, %v969
    %v1322 = vpack.c.b16 %v986, %v970
    %v1323 = vpack.c.b16 %v987, %v971
    %v1324 = vpack.c.b16 %v988, %v972
    %v1325 = vpack.c.b16 %v989, %v973
    %v1326 = vpack.c.b16 %v990, %v974
    %v1327 = vpack.c.b16 %v991, %v975
    %v1328 = vpack.c.b16 %v992, %v976
    %v1329 = vpack.c.b16 %v993, %v977
    %v1330 = vpack.c.b16 %v994, %v978
    %v1331 = vpack.c.b16 %v1011, %v995
    %v1332 = vpack.c.b16 %v1012, %v996
    %v1333 = vpack.c.b16 %v1013, %v997
    %v1334 = vpack.c.b16 %v1014, %v998
    %v1335 = vpack.c.b16 %v1015, %v999
    %v1336 = vpack.c.b16 %v1016, %v1000
    %v1337 = vpack.c.b16 %v1017, %v1001
    %v1338 = vpack.c.b16 %v1018, %v1002
    %v1339 = vpack.c.b16 %v1019, %v1003
    %v1340 = vpack.c.b16 %v1020, %v1004
    %v1341 = vpack.c.b16 %v1021, %v1005
    %v1342 = vpack.c.b16 %v1022, %v1006
    %v1343 = vpack.c.b16 %v1023, %v1007
    %v1344 = vpack.c.b16 %v1024, %v1008
    %v1345 = vpack.c.b16 %v1025, %v1009
    %v1346 = vpack.c.b16 %v1026, %v1010
    %v1347 = vpack.c.b16 %v1043, %v1027
    %v1348 = vpack.c.b16 %v1044, %v1028
    %v1349 = vpack.c.b16 %v1045, %v1029
    %v1350 = vpack.c.b16 %v1046, %v1030
    %v1351 = vpack.c.b16 %v1047, %v1031
    %v1352 = vpack.c.b16 %v1048, %v1032
    %v1353 = vpack.c.b16 %v1049, %v1033
    %v1354 = vpack.c.b16 %v1050, %v1034
    %v1355 = vpack.c.b16 %v1051, %v1035
    %v1356 = vpack.c.b16 %v1052, %v1036
    %v1357 = vpack.c.b16 %v1053, %v1037
    %v1358 = vpack.c.b16 %v1054, %v1038
    %v1359 = vpack.c.b16 %v1055, %v1039
    %v1360 = vpack.c.b16 %v1056, %v1040
    %v1361 = vpack.c.b16 %v1057, %v1041
    %v1362 = vpack.c.b16 %v1058, %v1042
    %v1363 = vpack.c.b16 %v1075, %v1059
    %v1364 = vpack.c.b16 %v1076, %v1060
    %v1365 = vpack.c.b16 %v1077, %v1061
    %v1366 = vpack.c.b16 %v1078, %v1062
    %v1367 = vpack.c.b16 %v1079, %v1063
    %v1368 = vpack.c.b16 %v1080, %v1064
    %v1369 = vpack.c.b16 %v1081, %v1065
    %v1370 = vpack.c.b16 %v1082, %v1066
    %v1371 = vpack.c.b16 %v1083, %v1067
    %v1372 = vpack.c.b16 %v1084, %v1068
    %v1373 = vpack.c.b16 %v1085, %v1069
    %v1374 = vpack.c.b16 %v1086, %v1070
    %v1375 = vpack.c.b16 %v1087, %v1071
    %v1376 = vpack.c.b16 %v1088, %v1072
    %v1377 = vpack.c.b16 %v1089, %v1073
    %v1378 = vpack.c.b16 %v1090, %v1074
    %v1379 = vpack.c.b16 %v1107, %v1091
    %v1380 = vpack.c.b16 %v1108, %v1092
    %v1381 = vpack.c.b16 %v1109, %v1093
    %v1382 = vpack.c.b16 %v1110, %v1094
    %v1383 = vpack.c.b16 %v1111, %v1095
    %v1384 = vpack.c.b16 %v1112, %v1096
    %v1385 = vpack.c.b16 %v1113, %v1097
    %v1386 = vpack.c.b16 %v1114, %v1098
    %v1387 = vpack.c.b16 %v1115, %v1099
    %v1388 = vpack.c.b16 %v1116, %v1100
    %v1389 = vpack.c.b16 %v1117, %v1101
    %v1390 = vpack.c.b16 %v1118, %v1102
    %v1391 = vpack.c.b16 %v1119, %v1103
    %v1392 = vpack.c.b16 %v1120, %v1104
    %v1393 = vpack.c.b16 %v1121, %v1105
    %v1394 = vpack.c.b16 %v1122, %v1106
    %v1395 = vpack.c.b16 %v1139, %v1123
    %v1396 = vpack.c.b16 %v1140, %v1124
    %v1397 = vpack.c.b16 %v1141, %v1125
    %v1398 = vpack.c.b16 %v1142, %v1126
    %v1399 = vpack.c.b16 %v1143, %v1127
    %v1400 = vpack.c.b16 %v1144, %v1128
    %v1401 = vpack.c.b16 %v1145, %v1129
    %v1402 = vpack.c.b16 %v1146, %v1130
    %v1403 = vpack.c.b16 %v1147, %v1131
    %v1404 = vpack.c.b16 %v1148, %v1132
    %v1405 = vpack.c.b16 %v1149, %v1133
    %v1406 = vpack.c.b16 %v1150, %v1134
    %v1407 = vpack.c.b16 %v1151, %v1135
    %v1408 = vpack.c.b16 %v1152, %v1136
    %v1409 = vpack.c.b16 %v1153, %v1137
    %v1410 = vpack.c.b16 %v1154, %v1138
    %1667 = vmatprep.subr.bf16.mxu0 %v1156
    %1668 = vmatpush1.bf16.msra.mxu0 %v1155
    %1669 = vmatprep.subr.bf16.mxu0 %v1172
    %1670 = vmatpush1.bf16.msra.mxu0 %v1171
    %1671 = vmatprep.subr.bf16.mxu0 %v1188
    %1672 = vmatpush1.bf16.msra.mxu0 %v1187
    %1673 = vmatprep.subr.bf16.mxu0 %v1204
    %1674 = vmatpush1.bf16.msra.mxu0 %v1203
    %1675 = vmatprep.subr.bf16.mxu0 %v1220
    %1676 = vmatpush1.bf16.msra.mxu0 %v1219
    %1677 = vmatprep.subr.bf16.mxu0 %v1236
    %1678 = vmatpush1.bf16.msra.mxu0 %v1235
    %1679 = vmatprep.subr.bf16.mxu0 %v1252
    %1680 = vmatpush1.bf16.msra.mxu0 %v1251
    %1681 = vmatprep.subr.bf16.mxu0 %v1268
    %1682 = vmatpush1.bf16.msra.mxu0 %v1267
    %1683 = vmatprep.subr.bf16.mxu0 %v1284
    %1684 = vmatpush1.bf16.msra.mxu0 %v1283
    %1685 = vmatprep.subr.bf16.mxu0 %v1300
    %1686 = vmatpush1.bf16.msra.mxu0 %v1299
    %1687 = vmatprep.subr.bf16.mxu0 %v1316
    %1688 = vmatpush1.bf16.msra.mxu0 %v1315
    %1689 = vmatprep.subr.bf16.mxu0 %v1332
    %1690 = vmatpush1.bf16.msra.mxu0 %v1331
    %1691 = vmatprep.subr.bf16.mxu0 %v1348
    %1692 = vmatpush1.bf16.msra.mxu0 %v1347
    %1693 = vmatprep.subr.bf16.mxu0 %v1364
    %1694 = vmatpush1.bf16.msra.mxu0 %v1363
    %1695 = vmatprep.subr.bf16.mxu0 %v1380
    %1696 = vmatpush1.bf16.msra.mxu0 %v1379
    %1697 = vmatprep.subr.bf16.mxu0 %v1396
    %1698 = vmatpush1.bf16.msra.mxu0 %v1395
    %1699 = vmatprep.mubr.bf16.mxu0 %v130
    %1700 = vmatmul.mubr.bf16.gmra.mrb[0].mxu0 %v129
    %v1701 = vpop.f32.mrb[0].mxu0
    %v1702 = vadd.f32 0.0, %v1701
    %v1703 = vpop.f32.mrb[0].mxu0
    %v1704 = vadd.f32 0.0, %v1703
    %v1705 = vpop.f32.mrb[0].mxu0
    %v1706 = vpop.f32.mrb[0].mxu0
    %1707 = vdwg.mxu0
    %1708 = vmatprep.subr.bf16.mxu0 %v1158
    %1709 = vmatpush1.bf16.msra.mxu0 %v1157
    %1710 = vmatprep.subr.bf16.mxu0 %v1174
    %1711 = vmatpush1.bf16.msra.mxu0 %v1173
    %1712 = vmatprep.subr.bf16.mxu0 %v1190
    %1713 = vmatpush1.bf16.msra.mxu0 %v1189
    %1714 = vmatprep.subr.bf16.mxu0 %v1206
    %1715 = vmatpush1.bf16.msra.mxu0 %v1205
    %1716 = vmatprep.subr.bf16.mxu0 %v1222
    %1717 = vmatpush1.bf16.msra.mxu0 %v1221
    %1718 = vmatprep.subr.bf16.mxu0 %v1238
    %1719 = vmatpush1.bf16.msra.mxu0 %v1237
    %1720 = vmatprep.subr.bf16.mxu0 %v1254
    %1721 = vmatpush1.bf16.msra.mxu0 %v1253
    %1722 = vmatprep.subr.bf16.mxu0 %v1270
    %1723 = vmatpush1.bf16.msra.mxu0 %v1269
    %1724 = vmatprep.subr.bf16.mxu0 %v1286
    %1725 = vmatpush1.bf16.msra.mxu0 %v1285
    %1726 = vmatprep.subr.bf16.mxu0 %v1302
    %1727 = vmatpush1.bf16.msra.mxu0 %v1301
    %1728 = vmatprep.subr.bf16.mxu0 %v1318
    %1729 = vmatpush1.bf16.msra.mxu0 %v1317
    %1730 = vmatprep.subr.bf16.mxu0 %v1334
    %1731 = vmatpush1.bf16.msra.mxu0 %v1333
    %1732 = vmatprep.subr.bf16.mxu0 %v1350
    %1733 = vmatpush1.bf16.msra.mxu0 %v1349
    %1734 = vmatprep.subr.bf16.mxu0 %v1366
    %1735 = vmatpush1.bf16.msra.mxu0 %v1365
    %1736 = vmatprep.subr.bf16.mxu0 %v1382
    %1737 = vmatpush1.bf16.msra.mxu0 %v1381
    %1738 = vmatprep.subr.bf16.mxu0 %v1398
    %1739 = vmatpush1.bf16.msra.mxu0 %v1397
    %1740 = vmatprep.mubr.bf16.mxu0 %v130
    %1741 = vmatmul.mubr.bf16.gmra.mrb[0].mxu0 %v129
    %v1742 = vpop.f32.mrb[0].mxu0
    %v1743 = vadd.f32 0.0, %v1742
    %v1744 = vpop.f32.mrb[0].mxu0
    %v1745 = vadd.f32 0.0, %v1744
    %v1746 = vpop.f32.mrb[0].mxu0
    %v1747 = vpop.f32.mrb[0].mxu0
    %1748 = vdwg.mxu0
    %1749 = vmatprep.subr.bf16.mxu0 %v1160
    %1750 = vmatpush1.bf16.msra.mxu0 %v1159
    %1751 = vmatprep.subr.bf16.mxu0 %v1176
    %1752 = vmatpush1.bf16.msra.mxu0 %v1175
    %1753 = vmatprep.subr.bf16.mxu0 %v1192
    %1754 = vmatpush1.bf16.msra.mxu0 %v1191
    %1755 = vmatprep.subr.bf16.mxu0 %v1208
    %1756 = vmatpush1.bf16.msra.mxu0 %v1207
    %1757 = vmatprep.subr.bf16.mxu0 %v1224
    %1758 = vmatpush1.bf16.msra.mxu0 %v1223
    %1759 = vmatprep.subr.bf16.mxu0 %v1240
    %1760 = vmatpush1.bf16.msra.mxu0 %v1239
    %1761 = vmatprep.subr.bf16.mxu0 %v1256
    %1762 = vmatpush1.bf16.msra.mxu0 %v1255
    %1763 = vmatprep.subr.bf16.mxu0 %v1272
    %1764 = vmatpush1.bf16.msra.mxu0 %v1271
    %1765 = vmatprep.subr.bf16.mxu0 %v1288
    %1766 = vmatpush1.bf16.msra.mxu0 %v1287
    %1767 = vmatprep.subr.bf16.mxu0 %v1304
    %1768 = vmatpush1.bf16.msra.mxu0 %v1303
    %1769 = vmatprep.subr.bf16.mxu0 %v1320
    %1770 = vmatpush1.bf16.msra.mxu0 %v1319
    %1771 = vmatprep.subr.bf16.mxu0 %v1336
    %1772 = vmatpush1.bf16.msra.mxu0 %v1335
    %1773 = vmatprep.subr.bf16.mxu0 %v1352
    %1774 = vmatpush1.bf16.msra.mxu0 %v1351
    %1775 = vmatprep.subr.bf16.mxu0 %v1368
    %1776 = vmatpush1.bf16.msra.mxu0 %v1367
    %1777 = vmatprep.subr.bf16.mxu0 %v1384
    %1778 = vmatpush1.bf16.msra.mxu0 %v1383
    %1779 = vmatprep.subr.bf16.mxu0 %v1400
    %1780 = vmatpush1.bf16.msra.mxu0 %v1399
    %1781 = vmatprep.mubr.bf16.mxu0 %v130
    %1782 = vmatmul.mubr.bf16.gmra.mrb[0].mxu0 %v129
    %v1783 = vpop.f32.mrb[0].mxu0
    %v1784 = vadd.f32 0.0, %v1783
    %v1785 = vpop.f32.mrb[0].mxu0
    %v1786 = vadd.f32 0.0, %v1785
    %v1787 = vpop.f32.mrb[0].mxu0
    %v1788 = vpop.f32.mrb[0].mxu0
    %1789 = vdwg.mxu0
    %1790 = vmatprep.subr.bf16.mxu0 %v1162
    %1791 = vmatpush1.bf16.msra.mxu0 %v1161
    %1792 = vmatprep.subr.bf16.mxu0 %v1178
    %1793 = vmatpush1.bf16.msra.mxu0 %v1177
    %1794 = vmatprep.subr.bf16.mxu0 %v1194
    %1795 = vmatpush1.bf16.msra.mxu0 %v1193
    %1796 = vmatprep.subr.bf16.mxu0 %v1210
    %1797 = vmatpush1.bf16.msra.mxu0 %v1209
    %1798 = vmatprep.subr.bf16.mxu0 %v1226
    %1799 = vmatpush1.bf16.msra.mxu0 %v1225
    %1800 = vmatprep.subr.bf16.mxu0 %v1242
    %1801 = vmatpush1.bf16.msra.mxu0 %v1241
    %1802 = vmatprep.subr.bf16.mxu0 %v1258
    %1803 = vmatpush1.bf16.msra.mxu0 %v1257
    %1804 = vmatprep.subr.bf16.mxu0 %v1274
    %1805 = vmatpush1.bf16.msra.mxu0 %v1273
    %1806 = vmatprep.subr.bf16.mxu0 %v1290
    %1807 = vmatpush1.bf16.msra.mxu0 %v1289
    %1808 = vmatprep.subr.bf16.mxu0 %v1306
    %1809 = vmatpush1.bf16.msra.mxu0 %v1305
    %1810 = vmatprep.subr.bf16.mxu0 %v1322
    %1811 = vmatpush1.bf16.msra.mxu0 %v1321
    %1812 = vmatprep.subr.bf16.mxu0 %v1338
    %1813 = vmatpush1.bf16.msra.mxu0 %v1337
    %1814 = vmatprep.subr.bf16.mxu0 %v1354
    %1815 = vmatpush1.bf16.msra.mxu0 %v1353
    %1816 = vmatprep.subr.bf16.mxu0 %v1370
    %1817 = vmatpush1.bf16.msra.mxu0 %v1369
    %1818 = vmatprep.subr.bf16.mxu0 %v1386
    %1819 = vmatpush1.bf16.msra.mxu0 %v1385
    %1820 = vmatprep.subr.bf16.mxu0 %v1402
    %1821 = vmatpush1.bf16.msra.mxu0 %v1401
    %1822 = vmatprep.mubr.bf16.mxu0 %v130
    %1823 = vmatmul.mubr.bf16.gmra.mrb[0].mxu0 %v129
    %v1824 = vpop.f32.mrb[0].mxu0
    %v1825 = vadd.f32 0.0, %v1824
    %v1826 = vpop.f32.mrb[0].mxu0
    %v1827 = vadd.f32 0.0, %v1826
    %v1828 = vpop.f32.mrb[0].mxu0
    %v1829 = vpop.f32.mrb[0].mxu0
    %1830 = vdwg.mxu0
    %1831 = vmatprep.subr.bf16.mxu0 %v1164
    %1832 = vmatpush1.bf16.msra.mxu0 %v1163
    %1833 = vmatprep.subr.bf16.mxu0 %v1180
    %1834 = vmatpush1.bf16.msra.mxu0 %v1179
    %1835 = vmatprep.subr.bf16.mxu0 %v1196
    %1836 = vmatpush1.bf16.msra.mxu0 %v1195
    %1837 = vmatprep.subr.bf16.mxu0 %v1212
    %1838 = vmatpush1.bf16.msra.mxu0 %v1211
    %1839 = vmatprep.subr.bf16.mxu0 %v1228
    %1840 = vmatpush1.bf16.msra.mxu0 %v1227
    %1841 = vmatprep.subr.bf16.mxu0 %v1244
    %1842 = vmatpush1.bf16.msra.mxu0 %v1243
    %1843 = vmatprep.subr.bf16.mxu0 %v1260
    %1844 = vmatpush1.bf16.msra.mxu0 %v1259
    %1845 = vmatprep.subr.bf16.mxu0 %v1276
    %1846 = vmatpush1.bf16.msra.mxu0 %v1275
    %1847 = vmatprep.subr.bf16.mxu0 %v1292
    %1848 = vmatpush1.bf16.msra.mxu0 %v1291
    %1849 = vmatprep.subr.bf16.mxu0 %v1308
    %1850 = vmatpush1.bf16.msra.mxu0 %v1307
    %1851 = vmatprep.subr.bf16.mxu0 %v1324
    %1852 = vmatpush1.bf16.msra.mxu0 %v1323
    %1853 = vmatprep.subr.bf16.mxu0 %v1340
    %1854 = vmatpush1.bf16.msra.mxu0 %v1339
    %1855 = vmatprep.subr.bf16.mxu0 %v1356
    %1856 = vmatpush1.bf16.msra.mxu0 %v1355
    %1857 = vmatprep.subr.bf16.mxu0 %v1372
    %1858 = vmatpush1.bf16.msra.mxu0 %v1371
    %1859 = vmatprep.subr.bf16.mxu0 %v1388
    %1860 = vmatpush1.bf16.msra.mxu0 %v1387
    %1861 = vmatprep.subr.bf16.mxu0 %v1404
    %1862 = vmatpush1.bf16.msra.mxu0 %v1403
    %1863 = vmatprep.mubr.bf16.mxu0 %v130
    %1864 = vmatmul.mubr.bf16.gmra.mrb[0].mxu0 %v129
    %v1865 = vpop.f32.mrb[0].mxu0
    %v1866 = vadd.f32 0.0, %v1865
    %v1867 = vpop.f32.mrb[0].mxu0
    %v1868 = vadd.f32 0.0, %v1867
    %v1869 = vpop.f32.mrb[0].mxu0
    %v1870 = vpop.f32.mrb[0].mxu0
    %1871 = vdwg.mxu0
    %1872 = vmatprep.subr.bf16.mxu0 %v1166
    %1873 = vmatpush1.bf16.msra.mxu0 %v1165
    %1874 = vmatprep.subr.bf16.mxu0 %v1182
    %1875 = vmatpush1.bf16.msra.mxu0 %v1181
    %1876 = vmatprep.subr.bf16.mxu0 %v1198
    %1877 = vmatpush1.bf16.msra.mxu0 %v1197
    %1878 = vmatprep.subr.bf16.mxu0 %v1214
    %1879 = vmatpush1.bf16.msra.mxu0 %v1213
    %1880 = vmatprep.subr.bf16.mxu0 %v1230
    %1881 = vmatpush1.bf16.msra.mxu0 %v1229
    %1882 = vmatprep.subr.bf16.mxu0 %v1246
    %1883 = vmatpush1.bf16.msra.mxu0 %v1245
    %1884 = vmatprep.subr.bf16.mxu0 %v1262
    %1885 = vmatpush1.bf16.msra.mxu0 %v1261
    %1886 = vmatprep.subr.bf16.mxu0 %v1278
    %1887 = vmatpush1.bf16.msra.mxu0 %v1277
    %1888 = vmatprep.subr.bf16.mxu0 %v1294
    %1889 = vmatpush1.bf16.msra.mxu0 %v1293
    %1890 = vmatprep.subr.bf16.mxu0 %v1310
    %1891 = vmatpush1.bf16.msra.mxu0 %v1309
    %1892 = vmatprep.subr.bf16.mxu0 %v1326
    %1893 = vmatpush1.bf16.msra.mxu0 %v1325
    %1894 = vmatprep.subr.bf16.mxu0 %v1342
    %1895 = vmatpush1.bf16.msra.mxu0 %v1341
    %1896 = vmatprep.subr.bf16.mxu0 %v1358
    %1897 = vmatpush1.bf16.msra.mxu0 %v1357
    %1898 = vmatprep.subr.bf16.mxu0 %v1374
    %1899 = vmatpush1.bf16.msra.mxu0 %v1373
    %1900 = vmatprep.subr.bf16.mxu0 %v1390
    %1901 = vmatpush1.bf16.msra.mxu0 %v1389
    %1902 = vmatprep.subr.bf16.mxu0 %v1406
    %1903 = vmatpush1.bf16.msra.mxu0 %v1405
    %1904 = vmatprep.mubr.bf16.mxu0 %v130
    %1905 = vmatmul.mubr.bf16.gmra.mrb[0].mxu0 %v129
    %v1906 = vpop.f32.mrb[0].mxu0
    %v1907 = vadd.f32 0.0, %v1906
    %v1908 = vpop.f32.mrb[0].mxu0
    %v1909 = vadd.f32 0.0, %v1908
    %v1910 = vpop.f32.mrb[0].mxu0
    %v1911 = vpop.f32.mrb[0].mxu0
    %1912 = vdwg.mxu0
    %1913 = vmatprep.subr.bf16.mxu0 %v1168
    %1914 = vmatpush1.bf16.msra.mxu0 %v1167
    %1915 = vmatprep.subr.bf16.mxu0 %v1184
    %1916 = vmatpush1.bf16.msra.mxu0 %v1183
    %1917 = vmatprep.subr.bf16.mxu0 %v1200
    %1918 = vmatpush1.bf16.msra.mxu0 %v1199
    %1919 = vmatprep.subr.bf16.mxu0 %v1216
    %1920 = vmatpush1.bf16.msra.mxu0 %v1215
    %1921 = vmatprep.subr.bf16.mxu0 %v1232
    %1922 = vmatpush1.bf16.msra.mxu0 %v1231
    %1923 = vmatprep.subr.bf16.mxu0 %v1248
    %1924 = vmatpush1.bf16.msra.mxu0 %v1247
    %1925 = vmatprep.subr.bf16.mxu0 %v1264
    %1926 = vmatpush1.bf16.msra.mxu0 %v1263
    %1927 = vmatprep.subr.bf16.mxu0 %v1280
    %1928 = vmatpush1.bf16.msra.mxu0 %v1279
    %1929 = vmatprep.subr.bf16.mxu0 %v1296
    %1930 = vmatpush1.bf16.msra.mxu0 %v1295
    %1931 = vmatprep.subr.bf16.mxu0 %v1312
    %1932 = vmatpush1.bf16.msra.mxu0 %v1311
    %1933 = vmatprep.subr.bf16.mxu0 %v1328
    %1934 = vmatpush1.bf16.msra.mxu0 %v1327
    %1935 = vmatprep.subr.bf16.mxu0 %v1344
    %1936 = vmatpush1.bf16.msra.mxu0 %v1343
    %1937 = vmatprep.subr.bf16.mxu0 %v1360
    %1938 = vmatpush1.bf16.msra.mxu0 %v1359
    %1939 = vmatprep.subr.bf16.mxu0 %v1376
    %1940 = vmatpush1.bf16.msra.mxu0 %v1375
    %1941 = vmatprep.subr.bf16.mxu0 %v1392
    %1942 = vmatpush1.bf16.msra.mxu0 %v1391
    %1943 = vmatprep.subr.bf16.mxu0 %v1408
    %1944 = vmatpush1.bf16.msra.mxu0 %v1407
    %1945 = vmatprep.mubr.bf16.mxu0 %v130
    %1946 = vmatmul.mubr.bf16.gmra.mrb[0].mxu0 %v129
    %v1947 = vpop.f32.mrb[0].mxu0
    %v1948 = vadd.f32 0.0, %v1947
    %v1949 = vpop.f32.mrb[0].mxu0
    %v1950 = vadd.f32 0.0, %v1949
    %v1951 = vpop.f32.mrb[0].mxu0
    %v1952 = vpop.f32.mrb[0].mxu0
    %1953 = vdwg.mxu0
    %1954 = vmatprep.subr.bf16.mxu0 %v1170
    %1955 = vmatpush1.bf16.msra.mxu0 %v1169
    %1956 = vmatprep.subr.bf16.mxu0 %v1186
    %1957 = vmatpush1.bf16.msra.mxu0 %v1185
    %1958 = vmatprep.subr.bf16.mxu0 %v1202
    %1959 = vmatpush1.bf16.msra.mxu0 %v1201
    %1960 = vmatprep.subr.bf16.mxu0 %v1218
    %1961 = vmatpush1.bf16.msra.mxu0 %v1217
    %1962 = vmatprep.subr.bf16.mxu0 %v1234
    %1963 = vmatpush1.bf16.msra.mxu0 %v1233
    %1964 = vmatprep.subr.bf16.mxu0 %v1250
    %1965 = vmatpush1.bf16.msra.mxu0 %v1249
    %1966 = vmatprep.subr.bf16.mxu0 %v1266
    %1967 = vmatpush1.bf16.msra.mxu0 %v1265
    %1968 = vmatprep.subr.bf16.mxu0 %v1282
    %1969 = vmatpush1.bf16.msra.mxu0 %v1281
    %1970 = vmatprep.subr.bf16.mxu0 %v1298
    %1971 = vmatpush1.bf16.msra.mxu0 %v1297
    %1972 = vmatprep.subr.bf16.mxu0 %v1314
    %1973 = vmatpush1.bf16.msra.mxu0 %v1313
    %1974 = vmatprep.subr.bf16.mxu0 %v1330
    %1975 = vmatpush1.bf16.msra.mxu0 %v1329
    %1976 = vmatprep.subr.bf16.mxu0 %v1346
    %1977 = vmatpush1.bf16.msra.mxu0 %v1345
    %1978 = vmatprep.subr.bf16.mxu0 %v1362
    %1979 = vmatpush1.bf16.msra.mxu0 %v1361
    %1980 = vmatprep.subr.bf16.mxu0 %v1378
    %1981 = vmatpush1.bf16.msra.mxu0 %v1377
    %1982 = vmatprep.subr.bf16.mxu0 %v1394
    %1983 = vmatpush1.bf16.msra.mxu0 %v1393
    %1984 = vmatprep.subr.bf16.mxu0 %v1410
    %1985 = vmatpush1.bf16.msra.mxu0 %v1409
    %1986 = vmatprep.mubr.bf16.mxu0 %v130
    %1987 = vmatmul.mubr.bf16.gmra.mrb[0].mxu0 %v129
    %v1988 = vpop.f32.mrb[0].mxu0
    %v1989 = vadd.f32 0.0, %v1988
    %v1990 = vpop.f32.mrb[0].mxu0
    %v1991 = vadd.f32 0.0, %v1990
    %v1992 = vpop.f32.mrb[0].mxu0
    %v1993 = vpop.f32.mrb[0].mxu0
    %1994 = vdwg.mxu0
    %v1995 = vpack.c.bf16 %v1702, %v1702
    %v1996 = vpack.c.bf16 %v1704, %v1704
    %v1997 = vpack.c.bf16 %v1743, %v1743
    %v1998 = vpack.c.bf16 %v1745, %v1745
    %v1999 = vpack.c.bf16 %v1784, %v1784
    %v2000 = vpack.c.bf16 %v1786, %v1786
    %v2001 = vpack.c.bf16 %v1825, %v1825
    %v2002 = vpack.c.bf16 %v1827, %v1827
    %v2003 = vpack.c.bf16 %v1866, %v1866
    %v2004 = vpack.c.bf16 %v1868, %v1868
    %v2005 = vpack.c.bf16 %v1907, %v1907
    %v2006 = vpack.c.bf16 %v1909, %v1909
    %v2007 = vpack.c.bf16 %v1948, %v1948
    %v2008 = vpack.c.bf16 %v1950, %v1950
    %v2009 = vpack.c.bf16 %v1989, %v1989
    %v2010 = vpack.c.bf16 %v1991, %v1991
    %v2027 = vcombine.low %v1995, %v1996
    %v2028 = vcombine.low %v1997, %v1998
    %v2029 = vcombine.low %v1999, %v2000
    %v2030 = vcombine.low %v2001, %v2002
    %v2032 = vunpack.c.l.s4 1966171168
    %v2033 = vunpack.c.0.s8 %v2032
    %v2034 = vlaneseq
    %v2035 = vshrl.u32 %v2034, 7
    %v2036 = vsub.s32 %v2033, %v2035
    %v2037 = vrot.slane %v2027, %v2036
    %v2039 = vunpack.c.l.s4 1966171168
    %v2040 = vunpack.c.0.s8 %v2039
    %v2041 = vlaneseq
    %v2042 = vshrl.u32 %v2041, 7
    %v2043 = vsub.s32 %v2040, %v2042
    %v2044 = vrot.slane %v2028, %v2043
    %v2046 = vunpack.c.l.s4 1966171168
    %v2047 = vunpack.c.0.s8 %v2046
    %v2048 = vlaneseq
    %v2049 = vshrl.u32 %v2048, 7
    %v2050 = vsub.s32 %v2047, %v2049
    %v2051 = vrot.slane %v2029, %v2050
    %v2053 = vunpack.c.l.s4 1966171168
    %v2054 = vunpack.c.0.s8 %v2053
    %v2055 = vlaneseq
    %v2056 = vshrl.u32 %v2055, 7
    %v2057 = vsub.s32 %v2054, %v2056
    %v2058 = vrot.slane %v2030, %v2057
    %v2059 = vcombine.low %v2037, %v2044
    %v2060 = vcombine.low %v2051, %v2058
    %v2062 = vunpack.c.l.s4 1966171168
    %v2063 = vunpack.c.0.s8 %v2062
    %v2064 = vlaneseq
    %v2065 = vshrl.u32 %v2064, 7
    %v2066 = vsub.s32 %v2063, %v2065
    %v2067 = vrot.slane %v2059, %v2066
    %v2069 = vunpack.c.l.s4 1966171168
    %v2070 = vunpack.c.0.s8 %v2069
    %v2071 = vlaneseq
    %v2072 = vshrl.u32 %v2071, 7
    %v2073 = vsub.s32 %v2070, %v2072
    %v2074 = vrot.slane %v2060, %v2073
    %v2075 = vcombine.low %v2067, %v2074
    %v2076 = vcombine.low %v2003, %v2004
    %v2077 = vcombine.low %v2005, %v2006
    %v2078 = vcombine.low %v2007, %v2008
    %v2079 = vcombine.low %v2009, %v2010
    %v2081 = vunpack.c.l.s4 1966171168
    %v2082 = vunpack.c.0.s8 %v2081
    %v2083 = vlaneseq
    %v2084 = vshrl.u32 %v2083, 7
    %v2085 = vsub.s32 %v2082, %v2084
    %v2086 = vrot.slane %v2076, %v2085
    %v2088 = vunpack.c.l.s4 1966171168
    %v2089 = vunpack.c.0.s8 %v2088
    %v2090 = vlaneseq
    %v2091 = vshrl.u32 %v2090, 7
    %v2092 = vsub.s32 %v2089, %v2091
    %v2093 = vrot.slane %v2077, %v2092
    %v2095 = vunpack.c.l.s4 1966171168
    %v2096 = vunpack.c.0.s8 %v2095
    %v2097 = vlaneseq
    %v2098 = vshrl.u32 %v2097, 7
    %v2099 = vsub.s32 %v2096, %v2098
    %v2100 = vrot.slane %v2078, %v2099
    %v2102 = vunpack.c.l.s4 1966171168
    %v2103 = vunpack.c.0.s8 %v2102
    %v2104 = vlaneseq
    %v2105 = vshrl.u32 %v2104, 7
    %v2106 = vsub.s32 %v2103, %v2105
    %v2107 = vrot.slane %v2079, %v2106
    %v2108 = vcombine.low %v2086, %v2093
    %v2109 = vcombine.low %v2100, %v2107
    %v2111 = vunpack.c.l.s4 1966171168
    %v2112 = vunpack.c.0.s8 %v2111
    %v2113 = vlaneseq
    %v2114 = vshrl.u32 %v2113, 7
    %v2115 = vsub.s32 %v2112, %v2114
    %v2116 = vrot.slane %v2108, %v2115
    %v2118 = vunpack.c.l.s4 1966171168
    %v2119 = vunpack.c.0.s8 %v2118
    %v2120 = vlaneseq
    %v2121 = vshrl.u32 %v2120, 7
    %v2122 = vsub.s32 %v2119, %v2121
    %v2123 = vrot.slane %v2109, %v2122
    %v2124 = vcombine.low %v2116, %v2123
    %2127 = vst [vmem:[%s4] sm:$0xff] %v2075
    %2128 = vst [vmem:[%s4 + $0x8] sm:$0xff] %v2124
    // Predicated region
    $region22: #{image_decoder_forward.4} parent=1 // pred_check
      _
    $region23: #{image_decoder_forward.4} parent=1 // pred_check_branch
      %2130 = sbr.rel (0) target = $region25
    $region24: #{image_decoder_forward.4} parent=1 // pred_region
      _
    $region25: #{image_decoder_forward.4} parent=1 // pred_fallthru
      _
    // Predicated region
    $region26: #{image_decoder_forward.4} parent=1 // pred_check
      _
    $region27: #{image_decoder_forward.4} parent=1 // pred_check_branch
      %2132 = sbr.rel (0) target = $region29
    $region28: #{image_decoder_forward.4} parent=1 // pred_region
      _
    $region29: #{image_decoder_forward.4} parent=1 // pred_fallthru
      _
    %2133 = vsyncpa [#allocation3], 1

// kernel: image_decoder_forward.6
$region0: #{image_decoder_forward.6}
  #allocation0 [shape = 'u32[]', space=smem, size = 0x4, offset = 0x4, fixed_abs, tag = 'smem constant byte address 0x4 - core index']
  #allocation1 [shape = 'u32[144,128]{1,0:T(1,128)}', space=vmem, size = 0x12000, scoped, tag = 'internal scratch']
  %s0 = inlined_call_operand.vmem [shape: bf16[128,64], index: 0, kind: input, shape index: {}]
  %s1 = inlined_call_operand.vmem [shape: f32[1,64], index: 1, kind: input, shape index: {}]
  %s2 = inlined_call_operand.vmem [shape: f32[1,64], index: 2, kind: input, shape index: {}]
  %s3 = inlined_call_operand.vmem [shape: bf16[64,512], index: 3, kind: input, shape index: {}]
  %s4 = inlined_call_operand.vmem [shape: bf16[128,512], index: 4, kind: output, shape index: {}]
  %s5 = sld [smem:[#allocation0]]
  $region26: #{image_decoder_forward.6} parent=0
    _
  %s7 = ssub.s32 1, %s5
  %s8 = scalar_select 0, %s7, %s5
  // Predicated region
  $region2: #{image_decoder_forward.6} parent=0 // pred_check
    _
  $region3: #{image_decoder_forward.6} parent=0 // pred_check_branch
    %10 = sbr.rel (0) target = $region5
  $region4: #{image_decoder_forward.6} parent=0 // pred_region
    _
  $region5: #{image_decoder_forward.6} parent=0 // pred_fallthru
    _
  // Predicated region
  $region6: #{image_decoder_forward.6} parent=0 // pred_check
    _
  $region7: #{image_decoder_forward.6} parent=0 // pred_check_branch
    %12 = sbr.rel (0) target = $region9
  $region8: #{image_decoder_forward.6} parent=0 // pred_region
    _
  $region9: #{image_decoder_forward.6} parent=0 // pred_fallthru
    _
  // Predicated region
  $region10: #{image_decoder_forward.6} parent=0 // pred_check
    _
  $region11: #{image_decoder_forward.6} parent=0 // pred_check_branch
    %14 = sbr.rel (0) target = $region13
  $region12: #{image_decoder_forward.6} parent=0 // pred_region
    _
  $region13: #{image_decoder_forward.6} parent=0 // pred_fallthru
    _
  // Predicated region
  $region14: #{image_decoder_forward.6} parent=0 // pred_check
    _
  $region15: #{image_decoder_forward.6} parent=0 // pred_check_branch
    %16 = sbr.rel (0) target = $region17
  $region16: #{image_decoder_forward.6} parent=0 // pred_region
    _
  $region17: #{image_decoder_forward.6} parent=0 // pred_fallthru
    _
  %v18 = vld [vmem:[%s0] sm:$0xf]
  %v19 = vld [vmem:[%s0 + $0x4] sm:$0xf]
  %v20 = vld [vmem:[%s0 + $0x8] sm:$0xf]
  %v21 = vld [vmem:[%s0 + $0xc] sm:$0xf]
  %v22 = vld [vmem:[%s0 + $0x10] sm:$0xf]
  %v23 = vld [vmem:[%s0 + $0x14] sm:$0xf]
  %v24 = vld [vmem:[%s0 + $0x18] sm:$0xf]
  %v25 = vld [vmem:[%s0 + $0x1c] sm:$0xf]
  %v26 = vld [vmem:[%s0 + $0x20] sm:$0xf]
  %v27 = vld [vmem:[%s0 + $0x24] sm:$0xf]
  %v28 = vld [vmem:[%s0 + $0x28] sm:$0xf]
  %v29 = vld [vmem:[%s0 + $0x2c] sm:$0xf]
  %v30 = vld [vmem:[%s0 + $0x30] sm:$0xf]
  %v31 = vld [vmem:[%s0 + $0x34] sm:$0xf]
  %v32 = vld [vmem:[%s0 + $0x38] sm:$0xf]
  %v33 = vld [vmem:[%s0 + $0x3c] sm:$0xf]
  %v34 = vunpack.c.l.bf16 %v18
  %v35 = vunpack.c.l.bf16 %v19
  %v36 = vunpack.c.l.bf16 %v20
  %v37 = vunpack.c.l.bf16 %v21
  %v38 = vunpack.c.l.bf16 %v22
  %v39 = vunpack.c.l.bf16 %v23
  %v40 = vunpack.c.l.bf16 %v24
  %v41 = vunpack.c.l.bf16 %v25
  %v42 = vunpack.c.l.bf16 %v26
  %v43 = vunpack.c.l.bf16 %v27
  %v44 = vunpack.c.l.bf16 %v28
  %v45 = vunpack.c.l.bf16 %v29
  %v46 = vunpack.c.l.bf16 %v30
  %v47 = vunpack.c.l.bf16 %v31
  %v48 = vunpack.c.l.bf16 %v32
  %v49 = vunpack.c.l.bf16 %v33
  %vm50 = vcmask 523264
  %v51 = vsel %vm50, %v34, 0.0
  %v52 = vsel %vm50, %v35, 0.0
  %v53 = vadd.f32 %v51, %v52
  %v54 = vsel %vm50, %v36, 0.0
  %v55 = vadd.f32 %v53, %v54
  %v56 = vsel %vm50, %v37, 0.0
  %v57 = vadd.f32 %v55, %v56
  %v58 = vsel %vm50, %v38, 0.0
  %v59 = vadd.f32 %v57, %v58
  %v60 = vsel %vm50, %v39, 0.0
  %v61 = vadd.f32 %v59, %v60
  %v62 = vsel %vm50, %v40, 0.0
  %v63 = vadd.f32 %v61, %v62
  %v64 = vsel %vm50, %v41, 0.0
  %v65 = vadd.f32 %v63, %v64
  %v66 = vsel %vm50, %v42, 0.0
  %v67 = vadd.f32 %v65, %v66
  %v68 = vsel %vm50, %v43, 0.0
  %v69 = vadd.f32 %v67, %v68
  %v70 = vsel %vm50, %v44, 0.0
  %v71 = vadd.f32 %v69, %v70
  %v72 = vsel %vm50, %v45, 0.0
  %v73 = vadd.f32 %v71, %v72
  %v74 = vsel %vm50, %v46, 0.0
  %v75 = vadd.f32 %v73, %v74
  %v76 = vsel %vm50, %v47, 0.0
  %v77 = vadd.f32 %v75, %v76
  %v78 = vsel %vm50, %v48, 0.0
  %v79 = vadd.f32 %v77, %v78
  %v80 = vsel %vm50, %v49, 0.0
  %v81 = vadd.f32 %v79, %v80
  %v82 = vrot.slane %v81, 4
  %v83 = vadd.f32 %v81, %v82
  %v84 = vrot.slane %v83, 2
  %v85 = vadd.f32 %v83, %v84
  %v86 = vrot.slane %v85, 1
  %v87 = vadd.f32 %v85, %v86
  %v88 = vrcp.pop 128.0
  %v89 = vmul.f32 %v87, %v88
  %v90 = vsub.f32 %v34, %v89
  %v91 = vsub.f32 %v35, %v89
  %v92 = vsub.f32 %v36, %v89
  %v93 = vsub.f32 %v37, %v89
  %v94 = vsub.f32 %v38, %v89
  %v95 = vsub.f32 %v39, %v89
  %v96 = vsub.f32 %v40, %v89
  %v97 = vsub.f32 %v41, %v89
  %v98 = vsub.f32 %v42, %v89
  %v99 = vsub.f32 %v43, %v89
  %v100 = vsub.f32 %v44, %v89
  %v101 = vsub.f32 %v45, %v89
  %v102 = vsub.f32 %v46, %v89
  %v103 = vsub.f32 %v47, %v89
  %v104 = vsub.f32 %v48, %v89
  %v105 = vsub.f32 %v49, %v89
  %v106 = vmul.f32 %v90, %v90
  %v107 = vmul.f32 %v91, %v91
  %v108 = vmul.f32 %v92, %v92
  %v109 = vmul.f32 %v93, %v93
  %v110 = vmul.f32 %v94, %v94
  %v111 = vmul.f32 %v95, %v95
  %v112 = vmul.f32 %v96, %v96
  %v113 = vmul.f32 %v97, %v97
  %v114 = vmul.f32 %v98, %v98
  %v115 = vmul.f32 %v99, %v99
  %v116 = vmul.f32 %v100, %v100
  %v117 = vmul.f32 %v101, %v101
  %v118 = vmul.f32 %v102, %v102
  %v119 = vmul.f32 %v103, %v103
  %v120 = vmul.f32 %v104, %v104
  %v121 = vmul.f32 %v105, %v105
  %v122 = vsel %vm50, %v106, 0.0
  %v123 = vsel %vm50, %v107, 0.0
  %v124 = vadd.f32 %v122, %v123
  %v125 = vsel %vm50, %v108, 0.0
  %v126 = vadd.f32 %v124, %v125
  %v127 = vsel %vm50, %v109, 0.0
  %v128 = vadd.f32 %v126, %v127
  %v129 = vsel %vm50, %v110, 0.0
  %v130 = vadd.f32 %v128, %v129
  %v131 = vsel %vm50, %v111, 0.0
  %v132 = vadd.f32 %v130, %v131
  %v133 = vsel %vm50, %v112, 0.0
  %v134 = vadd.f32 %v132, %v133
  %v135 = vsel %vm50, %v113, 0.0
  %v136 = vadd.f32 %v134, %v135
  %v137 = vsel %vm50, %v114, 0.0
  %v138 = vadd.f32 %v136, %v137
  %v139 = vsel %vm50, %v115, 0.0
  %v140 = vadd.f32 %v138, %v139
  %v141 = vsel %vm50, %v116, 0.0
  %v142 = vadd.f32 %v140, %v141
  %v143 = vsel %vm50, %v117, 0.0
  %v144 = vadd.f32 %v142, %v143
  %v145 = vsel %vm50, %v118, 0.0
  %v146 = vadd.f32 %v144, %v145
  %v147 = vsel %vm50, %v119, 0.0
  %v148 = vadd.f32 %v146, %v147
  %v149 = vsel %vm50, %v120, 0.0
  %v150 = vadd.f32 %v148, %v149
  %v151 = vsel %vm50, %v121, 0.0
  %v152 = vadd.f32 %v150, %v151
  %v153 = vrot.slane %v152, 4
  %v154 = vadd.f32 %v152, %v153
  %v155 = vrot.slane %v154, 2
  %v156 = vadd.f32 %v154, %v155
  %v157 = vrot.slane %v156, 1
  %v158 = vadd.f32 %v156, %v157
  %v159 = vmul.f32 %v158, %v88
  %v160 = vadd.f32 %v159, 1e-05
  %v161 = vrsqrt.pop %v160
  %v162 = vmul.f32 %v90, %v161
  %v163 = vmul.f32 %v91, %v161
  %v164 = vmul.f32 %v92, %v161
  %v165 = vmul.f32 %v93, %v161
  %v166 = vmul.f32 %v94, %v161
  %v167 = vmul.f32 %v95, %v161
  %v168 = vmul.f32 %v96, %v161
  %v169 = vmul.f32 %v97, %v161
  %v170 = vmul.f32 %v98, %v161
  %v171 = vmul.f32 %v99, %v161
  %v172 = vmul.f32 %v100, %v161
  %v173 = vmul.f32 %v101, %v161
  %v174 = vmul.f32 %v102, %v161
  %v175 = vmul.f32 %v103, %v161
  %v176 = vmul.f32 %v104, %v161
  %v177 = vmul.f32 %v105, %v161
  %v178 = vld [vmem:[%s1] sm:$0x1]
  %v180 = vlaneseq
  %v181 = vshrl.u32 %v180, 7
  %v182 = vsub.s32 0, %v181
  %v183 = vrot.slane %v178, %v182
  %v185 = vmul.f32 %v162, %v183
  %v186 = vmul.f32 %v163, %v183
  %v187 = vmul.f32 %v164, %v183
  %v188 = vmul.f32 %v165, %v183
  %v189 = vmul.f32 %v166, %v183
  %v190 = vmul.f32 %v167, %v183
  %v191 = vmul.f32 %v168, %v183
  %v192 = vmul.f32 %v169, %v183
  %v193 = vmul.f32 %v170, %v183
  %v194 = vmul.f32 %v171, %v183
  %v195 = vmul.f32 %v172, %v183
  %v196 = vmul.f32 %v173, %v183
  %v197 = vmul.f32 %v174, %v183
  %v198 = vmul.f32 %v175, %v183
  %v199 = vmul.f32 %v176, %v183
  %v200 = vmul.f32 %v177, %v183
  %v201 = vld [vmem:[%s2] sm:$0x1]
  %v203 = vlaneseq
  %v204 = vshrl.u32 %v203, 7
  %v205 = vsub.s32 0, %v204
  %v206 = vrot.slane %v201, %v205
  %v208 = vadd.f32 %v185, %v206
  %v209 = vadd.f32 %v186, %v206
  %v210 = vadd.f32 %v187, %v206
  %v211 = vadd.f32 %v188, %v206
  %v212 = vadd.f32 %v189, %v206
  %v213 = vadd.f32 %v190, %v206
  %v214 = vadd.f32 %v191, %v206
  %v215 = vadd.f32 %v192, %v206
  %v216 = vadd.f32 %v193, %v206
  %v217 = vadd.f32 %v194, %v206
  %v218 = vadd.f32 %v195, %v206
  %v219 = vadd.f32 %v196, %v206
  %v220 = vadd.f32 %v197, %v206
  %v221 = vadd.f32 %v198, %v206
  %v222 = vadd.f32 %v199, %v206
  %v223 = vadd.f32 %v200, %v206
  %v224 = vsub.f32 0.0, %v208
  %v225 = vsub.f32 0.0, %v209
  %v226 = vsub.f32 0.0, %v210
  %v227 = vsub.f32 0.0, %v211
  %v228 = vsub.f32 0.0, %v212
  %v229 = vsub.f32 0.0, %v213
  %v230 = vsub.f32 0.0, %v214
  %v231 = vsub.f32 0.0, %v215
  %v232 = vsub.f32 0.0, %v216
  %v233 = vsub.f32 0.0, %v217
  %v234 = vsub.f32 0.0, %v218
  %v235 = vsub.f32 0.0, %v219
  %v236 = vsub.f32 0.0, %v220
  %v237 = vsub.f32 0.0, %v221
  %v238 = vsub.f32 0.0, %v222
  %v239 = vsub.f32 0.0, %v223
  %v240 = vmul.f32 %v224, 1.442695
  %v241 = vpow.pop %v240
  %v242 = vmul.f32 %v225, 1.442695
  %v243 = vpow.pop %v242
  %v244 = vmul.f32 %v226, 1.442695
  %v245 = vpow.pop %v244
  %v246 = vmul.f32 %v227, 1.442695
  %v247 = vpow.pop %v246
  %v248 = vmul.f32 %v228, 1.442695
  %v249 = vpow.pop %v248
  %v250 = vmul.f32 %v229, 1.442695
  %v251 = vpow.pop %v250
  %v252 = vmul.f32 %v230, 1.442695
  %v253 = vpow.pop %v252
  %v254 = vmul.f32 %v231, 1.442695
  %v255 = vpow.pop %v254
  %v256 = vmul.f32 %v232, 1.442695
  %v257 = vpow.pop %v256
  %v258 = vmul.f32 %v233, 1.442695
  %v259 = vpow.pop %v258
  %v260 = vmul.f32 %v234, 1.442695
  %v261 = vpow.pop %v260
  %v262 = vmul.f32 %v235, 1.442695
  %v263 = vpow.pop %v262
  %v264 = vmul.f32 %v236, 1.442695
  %v265 = vpow.pop %v264
  %v266 = vmul.f32 %v237, 1.442695
  %v267 = vpow.pop %v266
  %v268 = vmul.f32 %v238, 1.442695
  %v269 = vpow.pop %v268
  %v270 = vmul.f32 %v239, 1.442695
  %v271 = vpow.pop %v270
  %v272 = vadd.f32 %v241, 1.0
  %v273 = vadd.f32 %v243, 1.0
  %v274 = vadd.f32 %v245, 1.0
  %v275 = vadd.f32 %v247, 1.0
  %v276 = vadd.f32 %v249, 1.0
  %v277 = vadd.f32 %v251, 1.0
  %v278 = vadd.f32 %v253, 1.0
  %v279 = vadd.f32 %v255, 1.0
  %v280 = vadd.f32 %v257, 1.0
  %v281 = vadd.f32 %v259, 1.0
  %v282 = vadd.f32 %v261, 1.0
  %v283 = vadd.f32 %v263, 1.0
  %v284 = vadd.f32 %v265, 1.0
  %v285 = vadd.f32 %v267, 1.0
  %v286 = vadd.f32 %v269, 1.0
  %v287 = vadd.f32 %v271, 1.0
  %v288 = vrcp.pop %v272
  %v289 = vmul.f32 1.0, %v288
  %v290 = vrcp.pop %v273
  %v291 = vmul.f32 1.0, %v290
  %v292 = vrcp.pop %v274
  %v293 = vmul.f32 1.0, %v292
  %v294 = vrcp.pop %v275
  %v295 = vmul.f32 1.0, %v294
  %v296 = vrcp.pop %v276
  %v297 = vmul.f32 1.0, %v296
  %v298 = vrcp.pop %v277
  %v299 = vmul.f32 1.0, %v298
  %v300 = vrcp.pop %v278
  %v301 = vmul.f32 1.0, %v300
  %v302 = vrcp.pop %v279
  %v303 = vmul.f32 1.0, %v302
  %v304 = vrcp.pop %v280
  %v305 = vmul.f32 1.0, %v304
  %v306 = vrcp.pop %v281
  %v307 = vmul.f32 1.0, %v306
  %v308 = vrcp.pop %v282
  %v309 = vmul.f32 1.0, %v308
  %v310 = vrcp.pop %v283
  %v311 = vmul.f32 1.0, %v310
  %v312 = vrcp.pop %v284
  %v313 = vmul.f32 1.0, %v312
  %v314 = vrcp.pop %v285
  %v315 = vmul.f32 1.0, %v314
  %v316 = vrcp.pop %v286
  %v317 = vmul.f32 1.0, %v316
  %v318 = vrcp.pop %v287
  %v319 = vmul.f32 1.0, %v318
  %v320 = vmul.f32 %v208, %v289
  %v321 = vmul.f32 %v209, %v291
  %v322 = vmul.f32 %v210, %v293
  %v323 = vmul.f32 %v211, %v295
  %v324 = vmul.f32 %v212, %v297
  %v325 = vmul.f32 %v213, %v299
  %v326 = vmul.f32 %v214, %v301
  %v327 = vmul.f32 %v215, %v303
  %v328 = vmul.f32 %v216, %v305
  %v329 = vmul.f32 %v217, %v307
  %v330 = vmul.f32 %v218, %v309
  %v331 = vmul.f32 %v219, %v311
  %v332 = vmul.f32 %v220, %v313
  %v333 = vmul.f32 %v221, %v315
  %v334 = vmul.f32 %v222, %v317
  %v335 = vmul.f32 %v223, %v319
  %v336 = vpack.c.bf16 %v321, %v320
  %v337 = vpack.c.bf16 %v323, %v322
  %v338 = vpack.c.bf16 %v325, %v324
  %v339 = vpack.c.bf16 %v327, %v326
  %v340 = vpack.c.bf16 %v329, %v328
  %v341 = vpack.c.bf16 %v331, %v330
  %v342 = vpack.c.bf16 %v333, %v332
  %v343 = vpack.c.bf16 %v335, %v334
  %v344 = vld [vmem:[%s3] sm:$0xff]
  %v345 = vld [vmem:[%s3 + $0x8] sm:$0xff]
  %v346 = vld [vmem:[%s3 + $0x10] sm:$0xff]
  %v347 = vld [vmem:[%s3 + $0x18] sm:$0xff]
  %v348 = vld [vmem:[%s3 + $0x20] sm:$0xff]
  %v349 = vld [vmem:[%s3 + $0x28] sm:$0xff]
  %v350 = vld [vmem:[%s3 + $0x30] sm:$0xff]
  %v351 = vld [vmem:[%s3 + $0x38] sm:$0xff]
  %v352 = vld [vmem:[%s3 + $0x40] sm:$0xff]
  %v353 = vld [vmem:[%s3 + $0x48] sm:$0xff]
  %v354 = vld [vmem:[%s3 + $0x50] sm:$0xff]
  %v355 = vld [vmem:[%s3 + $0x58] sm:$0xff]
  %v356 = vld [vmem:[%s3 + $0x60] sm:$0xff]
  %v357 = vld [vmem:[%s3 + $0x68] sm:$0xff]
  %v358 = vld [vmem:[%s3 + $0x70] sm:$0xff]
  %v359 = vld [vmem:[%s3 + $0x78] sm:$0xff]
  %v376 = vunpack.c.l.b16 %v344
  %v377 = vunpack.c.h.b16 %v344
  %v378 = vunpack.c.l.b16 %v345
  %v379 = vunpack.c.h.b16 %v345
  %v380 = vunpack.c.l.b16 %v346
  %v381 = vunpack.c.h.b16 %v346
  %v382 = vunpack.c.l.b16 %v347
  %v383 = vunpack.c.h.b16 %v347
  %v384 = vunpack.c.l.b16 %v348
  %v385 = vunpack.c.h.b16 %v348
  %v386 = vunpack.c.l.b16 %v349
  %v387 = vunpack.c.h.b16 %v349
  %v388 = vunpack.c.l.b16 %v350
  %v389 = vunpack.c.h.b16 %v350
  %v390 = vunpack.c.l.b16 %v351
  %v391 = vunpack.c.h.b16 %v351
  %v392 = vunpack.c.l.b16 %v352
  %v393 = vunpack.c.h.b16 %v352
  %v394 = vunpack.c.l.b16 %v353
  %v395 = vunpack.c.h.b16 %v353
  %v396 = vunpack.c.l.b16 %v354
  %v397 = vunpack.c.h.b16 %v354
  %v398 = vunpack.c.l.b16 %v355
  %v399 = vunpack.c.h.b16 %v355
  %v400 = vunpack.c.l.b16 %v356
  %v401 = vunpack.c.h.b16 %v356
  %v402 = vunpack.c.l.b16 %v357
  %v403 = vunpack.c.h.b16 %v357
  %v404 = vunpack.c.l.b16 %v358
  %v405 = vunpack.c.h.b16 %v358
  %v406 = vunpack.c.l.b16 %v359
  %v407 = vunpack.c.h.b16 %v359
  %v408 = vpack.c.b16 %v380, %v376
  %v409 = vpack.c.b16 %v381, %v377
  %v410 = vpack.c.b16 %v382, %v378
  %v411 = vpack.c.b16 %v383, %v379
  %v412 = vpack.c.b16 %v388, %v384
  %v413 = vpack.c.b16 %v389, %v385
  %v414 = vpack.c.b16 %v390, %v386
  %v415 = vpack.c.b16 %v391, %v387
  %v416 = vpack.c.b16 %v396, %v392
  %v417 = vpack.c.b16 %v397, %v393
  %v418 = vpack.c.b16 %v398, %v394
  %v419 = vpack.c.b16 %v399, %v395
  %v420 = vpack.c.b16 %v404, %v400
  %v421 = vpack.c.b16 %v405, %v401
  %v422 = vpack.c.b16 %v406, %v402
  %v423 = vpack.c.b16 %v407, %v403
  %v441 = vsel %vm50, %v336, 0
  %v444 = vsel %vm50, %v337, 0
  %v447 = vsel %vm50, %v338, 0
  %v450 = vsel %vm50, %v339, 0
  %v453 = vsel %vm50, %v340, 0
  %v456 = vsel %vm50, %v341, 0
  %v459 = vsel %vm50, %v342, 0
  %v462 = vsel %vm50, %v343, 0
  %464 = vmatprep.subr.bf16.mxu0 %v409
  %465 = vmatpush1.bf16.msra.mxu0 %v408
  %466 = vmatprep.subr.bf16.mxu0 %v413
  %467 = vmatpush1.bf16.msra.mxu0 %v412
  %468 = vmatprep.subr.bf16.mxu0 %v417
  %469 = vmatpush1.bf16.msra.mxu0 %v416
  %470 = vmatprep.subr.bf16.mxu0 %v421
  %471 = vmatpush1.bf16.msra.mxu0 %v420
  %472 = vmatprep.subr.bf16.mxu0 0
  %473 = vmatpush1.bf16.msra.mxu0 0
  %474 = vmatprep.subr.bf16.mxu0 0
  %475 = vmatpush1.bf16.msra.mxu0 0
  %476 = vmatprep.subr.bf16.mxu0 0
  %477 = vmatpush1.bf16.msra.mxu0 0
  %478 = vmatprep.subr.bf16.mxu0 0
  %479 = vmatpush1.bf16.msra.mxu0 0
  %480 = vmatprep.subr.bf16.mxu0 0
  %481 = vmatpush1.bf16.msra.mxu0 0
  %482 = vmatprep.subr.bf16.mxu0 0
  %483 = vmatpush1.bf16.msra.mxu0 0
  %484 = vmatprep.subr.bf16.mxu0 0
  %485 = vmatpush1.bf16.msra.mxu0 0
  %486 = vmatprep.subr.bf16.mxu0 0
  %487 = vmatpush1.bf16.msra.mxu0 0
  %488 = vmatprep.subr.bf16.mxu0 0
  %489 = vmatpush1.bf16.msra.mxu0 0
  %490 = vmatprep.subr.bf16.mxu0 0
  %491 = vmatpush1.bf16.msra.mxu0 0
  %492 = vmatprep.subr.bf16.mxu0 0
  %493 = vmatpush1.bf16.msra.mxu0 0
  %494 = vmatprep.subr.bf16.mxu0 0
  %495 = vmatpush1.bf16.msra.mxu0 0
  %496 = vmatprep.mubr.bf16.mxu0 0
  %497 = vmatmul.mubr.bf16.gmra.mrb[0].mxu0 %v441
  %v498 = vpop.f32.mrb[0].mxu0
  %v499 = vadd.f32 0.0, %v498
  %v500 = vpop.f32.mrb[0].mxu0
  %v501 = vadd.f32 0.0, %v500
  %v502 = vpop.f32.mrb[0].mxu0
  %v503 = vadd.f32 0.0, %v502
  %v504 = vpop.f32.mrb[0].mxu0
  %v505 = vadd.f32 0.0, %v504
  %506 = vmatprep.mubr.bf16.mxu0 0
  %507 = vmatmul.mubr.bf16.gmra.mrb[0].mxu0 %v444
  %v508 = vpop.f32.mrb[0].mxu0
  %v509 = vadd.f32 0.0, %v508
  %v510 = vpop.f32.mrb[0].mxu0
  %v511 = vadd.f32 0.0, %v510
  %v512 = vpop.f32.mrb[0].mxu0
  %v513 = vadd.f32 0.0, %v512
  %v514 = vpop.f32.mrb[0].mxu0
  %v515 = vadd.f32 0.0, %v514
  %516 = vmatprep.mubr.bf16.mxu0 0
  %517 = vmatmul.mubr.bf16.gmra.mrb[0].mxu0 %v447
  %v518 = vpop.f32.mrb[0].mxu0
  %v519 = vadd.f32 0.0, %v518
  %v520 = vpop.f32.mrb[0].mxu0
  %v521 = vadd.f32 0.0, %v520
  %v522 = vpop.f32.mrb[0].mxu0
  %v523 = vadd.f32 0.0, %v522
  %v524 = vpop.f32.mrb[0].mxu0
  %v525 = vadd.f32 0.0, %v524
  %526 = vmatprep.mubr.bf16.mxu0 0
  %527 = vmatmul.mubr.bf16.gmra.mrb[0].mxu0 %v450
  %v528 = vpop.f32.mrb[0].mxu0
  %v529 = vadd.f32 0.0, %v528
  %v530 = vpop.f32.mrb[0].mxu0
  %v531 = vadd.f32 0.0, %v530
  %v532 = vpop.f32.mrb[0].mxu0
  %v533 = vadd.f32 0.0, %v532
  %v534 = vpop.f32.mrb[0].mxu0
  %v535 = vadd.f32 0.0, %v534
  %536 = vmatprep.mubr.bf16.mxu0 0
  %537 = vmatmul.mubr.bf16.gmra.mrb[0].mxu0 %v453
  %v538 = vpop.f32.mrb[0].mxu0
  %v539 = vadd.f32 0.0, %v538
  %v540 = vpop.f32.mrb[0].mxu0
  %v541 = vadd.f32 0.0, %v540
  %v542 = vpop.f32.mrb[0].mxu0
  %v543 = vadd.f32 0.0, %v542
  %v544 = vpop.f32.mrb[0].mxu0
  %v545 = vadd.f32 0.0, %v544
  %546 = vmatprep.mubr.bf16.mxu0 0
  %547 = vmatmul.mubr.bf16.gmra.mrb[0].mxu0 %v456
  %v548 = vpop.f32.mrb[0].mxu0
  %v549 = vadd.f32 0.0, %v548
  %v550 = vpop.f32.mrb[0].mxu0
  %v551 = vadd.f32 0.0, %v550
  %v552 = vpop.f32.mrb[0].mxu0
  %v553 = vadd.f32 0.0, %v552
  %v554 = vpop.f32.mrb[0].mxu0
  %v555 = vadd.f32 0.0, %v554
  %556 = vmatprep.mubr.bf16.mxu0 0
  %557 = vmatmul.mubr.bf16.gmra.mrb[0].mxu0 %v459
  %v558 = vpop.f32.mrb[0].mxu0
  %v559 = vadd.f32 0.0, %v558
  %v560 = vpop.f32.mrb[0].mxu0
  %v561 = vadd.f32 0.0, %v560
  %v562 = vpop.f32.mrb[0].mxu0
  %v563 = vadd.f32 0.0, %v562
  %v564 = vpop.f32.mrb[0].mxu0
  %v565 = vadd.f32 0.0, %v564
  %566 = vmatprep.mubr.bf16.mxu0 0
  %567 = vmatmul.mubr.bf16.gmra.mrb[0].mxu0 %v462
  %v568 = vpop.f32.mrb[0].mxu0
  %v569 = vadd.f32 0.0, %v568
  %v570 = vpop.f32.mrb[0].mxu0
  %v571 = vadd.f32 0.0, %v570
  %v572 = vpop.f32.mrb[0].mxu0
  %v573 = vadd.f32 0.0, %v572
  %v574 = vpop.f32.mrb[0].mxu0
  %v575 = vadd.f32 0.0, %v574
  %576 = vdwg.mxu0
  %577 = vmatprep.subr.bf16.mxu0 %v411
  %578 = vmatpush1.bf16.msra.mxu0 %v410
  %579 = vmatprep.subr.bf16.mxu0 %v415
  %580 = vmatpush1.bf16.msra.mxu0 %v414
  %581 = vmatprep.subr.bf16.mxu0 %v419
  %582 = vmatpush1.bf16.msra.mxu0 %v418
  %583 = vmatprep.subr.bf16.mxu0 %v423
  %584 = vmatpush1.bf16.msra.mxu0 %v422
  %585 = vmatprep.subr.bf16.mxu0 0
  %586 = vmatpush1.bf16.msra.mxu0 0
  %587 = vmatprep.subr.bf16.mxu0 0
  %588 = vmatpush1.bf16.msra.mxu0 0
  %589 = vmatprep.subr.bf16.mxu0 0
  %590 = vmatpush1.bf16.msra.mxu0 0
  %591 = vmatprep.subr.bf16.mxu0 0
  %592 = vmatpush1.bf16.msra.mxu0 0
  %593 = vmatprep.subr.bf16.mxu0 0
  %594 = vmatpush1.bf16.msra.mxu0 0
  %595 = vmatprep.subr.bf16.mxu0 0
  %596 = vmatpush1.bf16.msra.mxu0 0
  %597 = vmatprep.subr.bf16.mxu0 0
  %598 = vmatpush1.bf16.msra.mxu0 0
  %599 = vmatprep.subr.bf16.mxu0 0
  %600 = vmatpush1.bf16.msra.mxu0 0
  %601 = vmatprep.subr.bf16.mxu0 0
  %602 = vmatpush1.bf16.msra.mxu0 0
  %603 = vmatprep.subr.bf16.mxu0 0
  %604 = vmatpush1.bf16.msra.mxu0 0
  %605 = vmatprep.subr.bf16.mxu0 0
  %606 = vmatpush1.bf16.msra.mxu0 0
  %607 = vmatprep.subr.bf16.mxu0 0
  %608 = vmatpush1.bf16.msra.mxu0 0
  %609 = vmatprep.mubr.bf16.mxu0 0
  %610 = vmatmul.mubr.bf16.gmra.mrb[0].mxu0 %v441
  %v611 = vpop.f32.mrb[0].mxu0
  %v612 = vadd.f32 0.0, %v611
  %v613 = vpop.f32.mrb[0].mxu0
  %v614 = vadd.f32 0.0, %v613
  %v615 = vpop.f32.mrb[0].mxu0
  %v616 = vadd.f32 0.0, %v615
  %v617 = vpop.f32.mrb[0].mxu0
  %v618 = vadd.f32 0.0, %v617
  %619 = vmatprep.mubr.bf16.mxu0 0
  %620 = vmatmul.mubr.bf16.gmra.mrb[0].mxu0 %v444
  %v621 = vpop.f32.mrb[0].mxu0
  %v622 = vadd.f32 0.0, %v621
  %v623 = vpop.f32.mrb[0].mxu0
  %v624 = vadd.f32 0.0, %v623
  %v625 = vpop.f32.mrb[0].mxu0
  %v626 = vadd.f32 0.0, %v625
  %v627 = vpop.f32.mrb[0].mxu0
  %v628 = vadd.f32 0.0, %v627
  %629 = vmatprep.mubr.bf16.mxu0 0
  %630 = vmatmul.mubr.bf16.gmra.mrb[0].mxu0 %v447
  %v631 = vpop.f32.mrb[0].mxu0
  %v632 = vadd.f32 0.0, %v631
  %v633 = vpop.f32.mrb[0].mxu0
  %v634 = vadd.f32 0.0, %v633
  %v635 = vpop.f32.mrb[0].mxu0
  %v636 = vadd.f32 0.0, %v635
  %v637 = vpop.f32.mrb[0].mxu0
  %v638 = vadd.f32 0.0, %v637
  %639 = vmatprep.mubr.bf16.mxu0 0
  %640 = vmatmul.mubr.bf16.gmra.mrb[0].mxu0 %v450
  %v641 = vpop.f32.mrb[0].mxu0
  %v642 = vadd.f32 0.0, %v641
  %v643 = vpop.f32.mrb[0].mxu0
  %v644 = vadd.f32 0.0, %v643
  %v645 = vpop.f32.mrb[0].mxu0
  %v646 = vadd.f32 0.0, %v645
  %v647 = vpop.f32.mrb[0].mxu0
  %v648 = vadd.f32 0.0, %v647
  %649 = vmatprep.mubr.bf16.mxu0 0
  %650 = vmatmul.mubr.bf16.gmra.mrb[0].mxu0 %v453
  %v651 = vpop.f32.mrb[0].mxu0
  %v652 = vadd.f32 0.0, %v651
  %v653 = vpop.f32.mrb[0].mxu0
  %v654 = vadd.f32 0.0, %v653
  %v655 = vpop.f32.mrb[0].mxu0
  %v656 = vadd.f32 0.0, %v655
  %v657 = vpop.f32.mrb[0].mxu0
  %v658 = vadd.f32 0.0, %v657
  %659 = vmatprep.mubr.bf16.mxu0 0
  %660 = vmatmul.mubr.bf16.gmra.mrb[0].mxu0 %v456
  %v661 = vpop.f32.mrb[0].mxu0
  %v662 = vadd.f32 0.0, %v661
  %v663 = vpop.f32.mrb[0].mxu0
  %v664 = vadd.f32 0.0, %v663
  %v665 = vpop.f32.mrb[0].mxu0
  %v666 = vadd.f32 0.0, %v665
  %v667 = vpop.f32.mrb[0].mxu0
  %v668 = vadd.f32 0.0, %v667
  %669 = vmatprep.mubr.bf16.mxu0 0
  %670 = vmatmul.mubr.bf16.gmra.mrb[0].mxu0 %v459
  %v671 = vpop.f32.mrb[0].mxu0
  %v672 = vadd.f32 0.0, %v671
  %v673 = vpop.f32.mrb[0].mxu0
  %v674 = vadd.f32 0.0, %v673
  %v675 = vpop.f32.mrb[0].mxu0
  %v676 = vadd.f32 0.0, %v675
  %v677 = vpop.f32.mrb[0].mxu0
  %v678 = vadd.f32 0.0, %v677
  %679 = vmatprep.mubr.bf16.mxu0 0
  %680 = vmatmul.mubr.bf16.gmra.mrb[0].mxu0 %v462
  %v681 = vpop.f32.mrb[0].mxu0
  %v682 = vadd.f32 0.0, %v681
  %v683 = vpop.f32.mrb[0].mxu0
  %v684 = vadd.f32 0.0, %v683
  %v685 = vpop.f32.mrb[0].mxu0
  %v686 = vadd.f32 0.0, %v685
  %v687 = vpop.f32.mrb[0].mxu0
  %v688 = vadd.f32 0.0, %v687
  %689 = vdwg.mxu0
  %v690 = vpack.c.bf16 %v503, %v499
  %v691 = vpack.c.bf16 %v505, %v501
  %v692 = vpack.c.bf16 %v616, %v612
  %v693 = vpack.c.bf16 %v618, %v614
  %v694 = vpack.c.bf16 %v513, %v509
  %v695 = vpack.c.bf16 %v515, %v511
  %v696 = vpack.c.bf16 %v626, %v622
  %v697 = vpack.c.bf16 %v628, %v624
  %v698 = vpack.c.bf16 %v523, %v519
  %v699 = vpack.c.bf16 %v525, %v521
  %v700 = vpack.c.bf16 %v636, %v632
  %v701 = vpack.c.bf16 %v638, %v634
  %v702 = vpack.c.bf16 %v533, %v529
  %v703 = vpack.c.bf16 %v535, %v531
  %v704 = vpack.c.bf16 %v646, %v642
  %v705 = vpack.c.bf16 %v648, %v644
  %v706 = vpack.c.bf16 %v543, %v539
  %v707 = vpack.c.bf16 %v545, %v541
  %v708 = vpack.c.bf16 %v656, %v652
  %v709 = vpack.c.bf16 %v658, %v654
  %v710 = vpack.c.bf16 %v553, %v549
  %v711 = vpack.c.bf16 %v555, %v551
  %v712 = vpack.c.bf16 %v666, %v662
  %v713 = vpack.c.bf16 %v668, %v664
  %v714 = vpack.c.bf16 %v563, %v559
  %v715 = vpack.c.bf16 %v565, %v561
  %v716 = vpack.c.bf16 %v676, %v672
  %v717 = vpack.c.bf16 %v678, %v674
  %v718 = vpack.c.bf16 %v573, %v569
  %v719 = vpack.c.bf16 %v575, %v571
  %v720 = vpack.c.bf16 %v686, %v682
  %v721 = vpack.c.bf16 %v688, %v684
  %v754 = vunpack.c.l.b16 %v690
  %v755 = vunpack.c.l.b16 %v691
  %v756 = vunpack.c.l.b16 %v692
  %v757 = vunpack.c.l.b16 %v693
  %v758 = vunpack.c.h.b16 %v690
  %v759 = vunpack.c.h.b16 %v691
  %v760 = vunpack.c.h.b16 %v692
  %v761 = vunpack.c.h.b16 %v693
  %v762 = vunpack.c.l.b16 %v694
  %v763 = vunpack.c.l.b16 %v695
  %v764 = vunpack.c.l.b16 %v696
  %v765 = vunpack.c.l.b16 %v697
  %v766 = vunpack.c.h.b16 %v694
  %v767 = vunpack.c.h.b16 %v695
  %v768 = vunpack.c.h.b16 %v696
  %v769 = vunpack.c.h.b16 %v697
  %v770 = vunpack.c.l.b16 %v698
  %v771 = vunpack.c.l.b16 %v699
  %v772 = vunpack.c.l.b16 %v700
  %v773 = vunpack.c.l.b16 %v701
  %v774 = vunpack.c.h.b16 %v698
  %v775 = vunpack.c.h.b16 %v699
  %v776 = vunpack.c.h.b16 %v700
  %v777 = vunpack.c.h.b16 %v701
  %v778 = vunpack.c.l.b16 %v702
  %v779 = vunpack.c.l.b16 %v703
  %v780 = vunpack.c.l.b16 %v704
  %v781 = vunpack.c.l.b16 %v705
  %v782 = vunpack.c.h.b16 %v702
  %v783 = vunpack.c.h.b16 %v703
  %v784 = vunpack.c.h.b16 %v704
  %v785 = vunpack.c.h.b16 %v705
  %v786 = vunpack.c.l.b16 %v706
  %v787 = vunpack.c.l.b16 %v707
  %v788 = vunpack.c.l.b16 %v708
  %v789 = vunpack.c.l.b16 %v709
  %v790 = vunpack.c.h.b16 %v706
  %v791 = vunpack.c.h.b16 %v707
  %v792 = vunpack.c.h.b16 %v708
  %v793 = vunpack.c.h.b16 %v709
  %v794 = vunpack.c.l.b16 %v710
  %v795 = vunpack.c.l.b16 %v711
  %v796 = vunpack.c.l.b16 %v712
  %v797 = vunpack.c.l.b16 %v713
  %v798 = vunpack.c.h.b16 %v710
  %v799 = vunpack.c.h.b16 %v711
  %v800 = vunpack.c.h.b16 %v712
  %v801 = vunpack.c.h.b16 %v713
  %v802 = vunpack.c.l.b16 %v714
  %v803 = vunpack.c.l.b16 %v715
  %v804 = vunpack.c.l.b16 %v716
  %v805 = vunpack.c.l.b16 %v717
  %v806 = vunpack.c.h.b16 %v714
  %v807 = vunpack.c.h.b16 %v715
  %v808 = vunpack.c.h.b16 %v716
  %v809 = vunpack.c.h.b16 %v717
  %v810 = vunpack.c.l.b16 %v718
  %v811 = vunpack.c.l.b16 %v719
  %v812 = vunpack.c.l.b16 %v720
  %v813 = vunpack.c.l.b16 %v721
  %v814 = vunpack.c.h.b16 %v718
  %v815 = vunpack.c.h.b16 %v719
  %v816 = vunpack.c.h.b16 %v720
  %v817 = vunpack.c.h.b16 %v721
  %v818 = vpack.c.b16 %v755, %v754
  %v819 = vpack.c.b16 %v757, %v756
  %v820 = vpack.c.b16 %v759, %v758
  %v821 = vpack.c.b16 %v761, %v760
  %v822 = vpack.c.b16 %v763, %v762
  %v823 = vpack.c.b16 %v765, %v764
  %v824 = vpack.c.b16 %v767, %v766
  %v825 = vpack.c.b16 %v769, %v768
  %v826 = vpack.c.b16 %v771, %v770
  %v827 = vpack.c.b16 %v773, %v772
  %v828 = vpack.c.b16 %v775, %v774
  %v829 = vpack.c.b16 %v777, %v776
  %v830 = vpack.c.b16 %v779, %v778
  %v831 = vpack.c.b16 %v781, %v780
  %v832 = vpack.c.b16 %v783, %v782
  %v833 = vpack.c.b16 %v785, %v784
  %v834 = vpack.c.b16 %v787, %v786
  %v835 = vpack.c.b16 %v789, %v788
  %v836 = vpack.c.b16 %v791, %v790
  %v837 = vpack.c.b16 %v793, %v792
  %v838 = vpack.c.b16 %v795, %v794
  %v839 = vpack.c.b16 %v797, %v796
  %v840 = vpack.c.b16 %v799, %v798
  %v841 = vpack.c.b16 %v801, %v800
  %v842 = vpack.c.b16 %v803, %v802
  %v843 = vpack.c.b16 %v805, %v804
  %v844 = vpack.c.b16 %v807, %v806
  %v845 = vpack.c.b16 %v809, %v808
  %v846 = vpack.c.b16 %v811, %v810
  %v847 = vpack.c.b16 %v813, %v812
  %v848 = vpack.c.b16 %v815, %v814
  %v849 = vpack.c.b16 %v817, %v816
  %882 = vst [vmem:[%s4] sm:$0xff] %v818
  %883 = vst [vmem:[%s4 + $0x8] sm:$0xff] %v819
  %884 = vst [vmem:[%s4 + $0x10] sm:$0xff] %v820
  %885 = vst [vmem:[%s4 + $0x18] sm:$0xff] %v821
  %886 = vst [vmem:[%s4 + $0x20] sm:$0xff] %v822
  %887 = vst [vmem:[%s4 + $0x28] sm:$0xff] %v823
  %888 = vst [vmem:[%s4 + $0x30] sm:$0xff] %v824
  %889 = vst [vmem:[%s4 + $0x38] sm:$0xff] %v825
  %890 = vst [vmem:[%s4 + $0x40] sm:$0xff] %v826
  %891 = vst [vmem:[%s4 + $0x48] sm:$0xff] %v827
  %892 = vst [vmem:[%s4 + $0x50] sm:$0xff] %v828
  %893 = vst [vmem:[%s4 + $0x58] sm:$0xff] %v829
  %894 = vst [vmem:[%s4 + $0x60] sm:$0xff] %v830
  %895 = vst [vmem:[%s4 + $0x68] sm:$0xff] %v831
  %896 = vst [vmem:[%s4 + $0x70] sm:$0xff] %v832
  %897 = vst [vmem:[%s4 + $0x78] sm:$0xff] %v833
  %898 = vst [vmem:[%s4 + $0x80] sm:$0xff] %v834
  %899 = vst [vmem:[%s4 + $0x88] sm:$0xff] %v835
  %900 = vst [vmem:[%s4 + $0x90] sm:$0xff] %v836
  %901 = vst [vmem:[%s4 + $0x98] sm:$0xff] %v837
  %902 = vst [vmem:[%s4 + $0xa0] sm:$0xff] %v838
  %903 = vst [vmem:[%s4 + $0xa8] sm:$0xff] %v839
  %904 = vst [vmem:[%s4 + $0xb0] sm:$0xff] %v840
  %905 = vst [vmem:[%s4 + $0xb8] sm:$0xff] %v841
  %906 = vst [vmem:[%s4 + $0xc0] sm:$0xff] %v842
  %907 = vst [vmem:[%s4 + $0xc8] sm:$0xff] %v843
  %908 = vst [vmem:[%s4 + $0xd0] sm:$0xff] %v844
  %909 = vst [vmem:[%s4 + $0xd8] sm:$0xff] %v845
  %910 = vst [vmem:[%s4 + $0xe0] sm:$0xff] %v846
  %911 = vst [vmem:[%s4 + $0xe8] sm:$0xff] %v847
  %912 = vst [vmem:[%s4 + $0xf0] sm:$0xff] %v848
  %913 = vst [vmem:[%s4 + $0xf8] sm:$0xff] %v849
  // Predicated region
  $region18: #{image_decoder_forward.6} parent=0 // pred_check
    _
  $region19: #{image_decoder_forward.6} parent=0 // pred_check_branch
    %915 = sbr.rel (0) target = $region21
  $region20: #{image_decoder_forward.6} parent=0 // pred_region
    _
  $region21: #{image_decoder_forward.6} parent=0 // pred_fallthru
    _
  // Predicated region
  $region22: #{image_decoder_forward.6} parent=0 // pred_check
    _
  $region23: #{image_decoder_forward.6} parent=0 // pred_check_branch
    %917 = sbr.rel (0) target = $region25
  $region24: #{image_decoder_forward.6} parent=0 // pred_region
    _
  $region25: #{image_decoder_forward.6} parent=0 // pred_fallthru
    _

// kernel: image_decoder_forward.7
$region0: #{image_decoder_forward.7}
  #allocation0 [shape = 'u32[]', space=smem, size = 0x4, offset = 0x4, fixed_abs, tag = 'smem constant byte address 0x4 - core index']
  #allocation1 [shape = 'u32[144,128]{1,0:T(1,128)}', space=vmem, size = 0x12000, scoped, tag = 'internal scratch']
  %s0 = inlined_call_operand.vmem [shape: bf16[512,32], index: 0, kind: input, shape index: {}]
  %s1 = inlined_call_operand.vmem [shape: f32[1,32], index: 1, kind: input, shape index: {}]
  %s2 = inlined_call_operand.vmem [shape: f32[1,32], index: 2, kind: input, shape index: {}]
  %s3 = inlined_call_operand.vmem [shape: bf16[32,128], index: 3, kind: input, shape index: {}]
  %s4 = inlined_call_operand.vmem [shape: bf16[512,128], index: 4, kind: output, shape index: {}]
  %s5 = sld [smem:[#allocation0]]
  $region26: #{image_decoder_forward.7} parent=0
    _
  %s7 = ssub.s32 1, %s5
  %s8 = scalar_select 0, %s7, %s5
  // Predicated region
  $region2: #{image_decoder_forward.7} parent=0 // pred_check
    _
  $region3: #{image_decoder_forward.7} parent=0 // pred_check_branch
    %10 = sbr.rel (0) target = $region5
  $region4: #{image_decoder_forward.7} parent=0 // pred_region
    _
  $region5: #{image_decoder_forward.7} parent=0 // pred_fallthru
    _
  // Predicated region
  $region6: #{image_decoder_forward.7} parent=0 // pred_check
    _
  $region7: #{image_decoder_forward.7} parent=0 // pred_check_branch
    %12 = sbr.rel (0) target = $region9
  $region8: #{image_decoder_forward.7} parent=0 // pred_region
    _
  $region9: #{image_decoder_forward.7} parent=0 // pred_fallthru
    _
  // Predicated region
  $region10: #{image_decoder_forward.7} parent=0 // pred_check
    _
  $region11: #{image_decoder_forward.7} parent=0 // pred_check_branch
    %14 = sbr.rel (0) target = $region13
  $region12: #{image_decoder_forward.7} parent=0 // pred_region
    _
  $region13: #{image_decoder_forward.7} parent=0 // pred_fallthru
    _
  // Predicated region
  $region14: #{image_decoder_forward.7} parent=0 // pred_check
    _
  $region15: #{image_decoder_forward.7} parent=0 // pred_check_branch
    %16 = sbr.rel (0) target = $region17
  $region16: #{image_decoder_forward.7} parent=0 // pred_region
    _
  $region17: #{image_decoder_forward.7} parent=0 // pred_fallthru
    _
  %v18 = vld [vmem:[%s0] sm:$0xf]
  %v19 = vld [vmem:[%s0 + $0x4] sm:$0xf]
  %v20 = vld [vmem:[%s0 + $0x8] sm:$0xf]
  %v21 = vld [vmem:[%s0 + $0xc] sm:$0xf]
  %v22 = vld [vmem:[%s0 + $0x10] sm:$0xf]
  %v23 = vld [vmem:[%s0 + $0x14] sm:$0xf]
  %v24 = vld [vmem:[%s0 + $0x18] sm:$0xf]
  %v25 = vld [vmem:[%s0 + $0x1c] sm:$0xf]
  %v26 = vld [vmem:[%s0 + $0x20] sm:$0xf]
  %v27 = vld [vmem:[%s0 + $0x24] sm:$0xf]
  %v28 = vld [vmem:[%s0 + $0x28] sm:$0xf]
  %v29 = vld [vmem:[%s0 + $0x2c] sm:$0xf]
  %v30 = vld [vmem:[%s0 + $0x30] sm:$0xf]
  %v31 = vld [vmem:[%s0 + $0x34] sm:$0xf]
  %v32 = vld [vmem:[%s0 + $0x38] sm:$0xf]
  %v33 = vld [vmem:[%s0 + $0x3c] sm:$0xf]
  %v34 = vld [vmem:[%s0 + $0x40] sm:$0xf]
  %v35 = vld [vmem:[%s0 + $0x44] sm:$0xf]
  %v36 = vld [vmem:[%s0 + $0x48] sm:$0xf]
  %v37 = vld [vmem:[%s0 + $0x4c] sm:$0xf]
  %v38 = vld [vmem:[%s0 + $0x50] sm:$0xf]
  %v39 = vld [vmem:[%s0 + $0x54] sm:$0xf]
  %v40 = vld [vmem:[%s0 + $0x58] sm:$0xf]
  %v41 = vld [vmem:[%s0 + $0x5c] sm:$0xf]
  %v42 = vld [vmem:[%s0 + $0x60] sm:$0xf]
  %v43 = vld [vmem:[%s0 + $0x64] sm:$0xf]
  %v44 = vld [vmem:[%s0 + $0x68] sm:$0xf]
  %v45 = vld [vmem:[%s0 + $0x6c] sm:$0xf]
  %v46 = vld [vmem:[%s0 + $0x70] sm:$0xf]
  %v47 = vld [vmem:[%s0 + $0x74] sm:$0xf]
  %v48 = vld [vmem:[%s0 + $0x78] sm:$0xf]
  %v49 = vld [vmem:[%s0 + $0x7c] sm:$0xf]
  %v50 = vld [vmem:[%s0 + $0x80] sm:$0xf]
  %v51 = vld [vmem:[%s0 + $0x84] sm:$0xf]
  %v52 = vld [vmem:[%s0 + $0x88] sm:$0xf]
  %v53 = vld [vmem:[%s0 + $0x8c] sm:$0xf]
  %v54 = vld [vmem:[%s0 + $0x90] sm:$0xf]
  %v55 = vld [vmem:[%s0 + $0x94] sm:$0xf]
  %v56 = vld [vmem:[%s0 + $0x98] sm:$0xf]
  %v57 = vld [vmem:[%s0 + $0x9c] sm:$0xf]
  %v58 = vld [vmem:[%s0 + $0xa0] sm:$0xf]
  %v59 = vld [vmem:[%s0 + $0xa4] sm:$0xf]
  %v60 = vld [vmem:[%s0 + $0xa8] sm:$0xf]
  %v61 = vld [vmem:[%s0 + $0xac] sm:$0xf]
  %v62 = vld [vmem:[%s0 + $0xb0] sm:$0xf]
  %v63 = vld [vmem:[%s0 + $0xb4] sm:$0xf]
  %v64 = vld [vmem:[%s0 + $0xb8] sm:$0xf]
  %v65 = vld [vmem:[%s0 + $0xbc] sm:$0xf]
  %v66 = vld [vmem:[%s0 + $0xc0] sm:$0xf]
  %v67 = vld [vmem:[%s0 + $0xc4] sm:$0xf]
  %v68 = vld [vmem:[%s0 + $0xc8] sm:$0xf]
  %v69 = vld [vmem:[%s0 + $0xcc] sm:$0xf]
  %v70 = vld [vmem:[%s0 + $0xd0] sm:$0xf]
  %v71 = vld [vmem:[%s0 + $0xd4] sm:$0xf]
  %v72 = vld [vmem:[%s0 + $0xd8] sm:$0xf]
  %v73 = vld [vmem:[%s0 + $0xdc] sm:$0xf]
  %v74 = vld [vmem:[%s0 + $0xe0] sm:$0xf]
  %v75 = vld [vmem:[%s0 + $0xe4] sm:$0xf]
  %v76 = vld [vmem:[%s0 + $0xe8] sm:$0xf]
  %v77 = vld [vmem:[%s0 + $0xec] sm:$0xf]
  %v78 = vld [vmem:[%s0 + $0xf0] sm:$0xf]
  %v79 = vld [vmem:[%s0 + $0xf4] sm:$0xf]
  %v80 = vld [vmem:[%s0 + $0xf8] sm:$0xf]
  %v81 = vld [vmem:[%s0 + $0xfc] sm:$0xf]
  %v82 = vunpack.c.l.bf16 %v18
  %v83 = vunpack.c.l.bf16 %v19
  %v84 = vunpack.c.l.bf16 %v20
  %v85 = vunpack.c.l.bf16 %v21
  %v86 = vunpack.c.l.bf16 %v22
  %v87 = vunpack.c.l.bf16 %v23
  %v88 = vunpack.c.l.bf16 %v24
  %v89 = vunpack.c.l.bf16 %v25
  %v90 = vunpack.c.l.bf16 %v26
  %v91 = vunpack.c.l.bf16 %v27
  %v92 = vunpack.c.l.bf16 %v28
  %v93 = vunpack.c.l.bf16 %v29
  %v94 = vunpack.c.l.bf16 %v30
  %v95 = vunpack.c.l.bf16 %v31
  %v96 = vunpack.c.l.bf16 %v32
  %v97 = vunpack.c.l.bf16 %v33
  %v98 = vunpack.c.l.bf16 %v34
  %v99 = vunpack.c.l.bf16 %v35
  %v100 = vunpack.c.l.bf16 %v36
  %v101 = vunpack.c.l.bf16 %v37
  %v102 = vunpack.c.l.bf16 %v38
  %v103 = vunpack.c.l.bf16 %v39
  %v104 = vunpack.c.l.bf16 %v40
  %v105 = vunpack.c.l.bf16 %v41
  %v106 = vunpack.c.l.bf16 %v42
  %v107 = vunpack.c.l.bf16 %v43
  %v108 = vunpack.c.l.bf16 %v44
  %v109 = vunpack.c.l.bf16 %v45
  %v110 = vunpack.c.l.bf16 %v46
  %v111 = vunpack.c.l.bf16 %v47
  %v112 = vunpack.c.l.bf16 %v48
  %v113 = vunpack.c.l.bf16 %v49
  %v114 = vunpack.c.l.bf16 %v50
  %v115 = vunpack.c.l.bf16 %v51
  %v116 = vunpack.c.l.bf16 %v52
  %v117 = vunpack.c.l.bf16 %v53
  %v118 = vunpack.c.l.bf16 %v54
  %v119 = vunpack.c.l.bf16 %v55
  %v120 = vunpack.c.l.bf16 %v56
  %v121 = vunpack.c.l.bf16 %v57
  %v122 = vunpack.c.l.bf16 %v58
  %v123 = vunpack.c.l.bf16 %v59
  %v124 = vunpack.c.l.bf16 %v60
  %v125 = vunpack.c.l.bf16 %v61
  %v126 = vunpack.c.l.bf16 %v62
  %v127 = vunpack.c.l.bf16 %v63
  %v128 = vunpack.c.l.bf16 %v64
  %v129 = vunpack.c.l.bf16 %v65
  %v130 = vunpack.c.l.bf16 %v66
  %v131 = vunpack.c.l.bf16 %v67
  %v132 = vunpack.c.l.bf16 %v68
  %v133 = vunpack.c.l.bf16 %v69
  %v134 = vunpack.c.l.bf16 %v70
  %v135 = vunpack.c.l.bf16 %v71
  %v136 = vunpack.c.l.bf16 %v72
  %v137 = vunpack.c.l.bf16 %v73
  %v138 = vunpack.c.l.bf16 %v74
  %v139 = vunpack.c.l.bf16 %v75
  %v140 = vunpack.c.l.bf16 %v76
  %v141 = vunpack.c.l.bf16 %v77
  %v142 = vunpack.c.l.bf16 %v78
  %v143 = vunpack.c.l.bf16 %v79
  %v144 = vunpack.c.l.bf16 %v80
  %v145 = vunpack.c.l.bf16 %v81
  %vm146 = vcmask 261120
  %v147 = vsel %vm146, %v82, 0.0
  %v148 = vsel %vm146, %v83, 0.0
  %v149 = vadd.f32 %v147, %v148
  %v150 = vsel %vm146, %v84, 0.0
  %v151 = vadd.f32 %v149, %v150
  %v152 = vsel %vm146, %v85, 0.0
  %v153 = vadd.f32 %v151, %v152
  %v154 = vsel %vm146, %v86, 0.0
  %v155 = vadd.f32 %v153, %v154
  %v156 = vsel %vm146, %v87, 0.0
  %v157 = vadd.f32 %v155, %v156
  %v158 = vsel %vm146, %v88, 0.0
  %v159 = vadd.f32 %v157, %v158
  %v160 = vsel %vm146, %v89, 0.0
  %v161 = vadd.f32 %v159, %v160
  %v162 = vsel %vm146, %v90, 0.0
  %v163 = vadd.f32 %v161, %v162
  %v164 = vsel %vm146, %v91, 0.0
  %v165 = vadd.f32 %v163, %v164
  %v166 = vsel %vm146, %v92, 0.0
  %v167 = vadd.f32 %v165, %v166
  %v168 = vsel %vm146, %v93, 0.0
  %v169 = vadd.f32 %v167, %v168
  %v170 = vsel %vm146, %v94, 0.0
  %v171 = vadd.f32 %v169, %v170
  %v172 = vsel %vm146, %v95, 0.0
  %v173 = vadd.f32 %v171, %v172
  %v174 = vsel %vm146, %v96, 0.0
  %v175 = vadd.f32 %v173, %v174
  %v176 = vsel %vm146, %v97, 0.0
  %v177 = vadd.f32 %v175, %v176
  %v178 = vsel %vm146, %v98, 0.0
  %v179 = vadd.f32 %v177, %v178
  %v180 = vsel %vm146, %v99, 0.0
  %v181 = vadd.f32 %v179, %v180
  %v182 = vsel %vm146, %v100, 0.0
  %v183 = vadd.f32 %v181, %v182
  %v184 = vsel %vm146, %v101, 0.0
  %v185 = vadd.f32 %v183, %v184
  %v186 = vsel %vm146, %v102, 0.0
  %v187 = vadd.f32 %v185, %v186
  %v188 = vsel %vm146, %v103, 0.0
  %v189 = vadd.f32 %v187, %v188
  %v190 = vsel %vm146, %v104, 0.0
  %v191 = vadd.f32 %v189, %v190
  %v192 = vsel %vm146, %v105, 0.0
  %v193 = vadd.f32 %v191, %v192
  %v194 = vsel %vm146, %v106, 0.0
  %v195 = vadd.f32 %v193, %v194
  %v196 = vsel %vm146, %v107, 0.0
  %v197 = vadd.f32 %v195, %v196
  %v198 = vsel %vm146, %v108, 0.0
  %v199 = vadd.f32 %v197, %v198
  %v200 = vsel %vm146, %v109, 0.0
  %v201 = vadd.f32 %v199, %v200
  %v202 = vsel %vm146, %v110, 0.0
  %v203 = vadd.f32 %v201, %v202
  %v204 = vsel %vm146, %v111, 0.0
  %v205 = vadd.f32 %v203, %v204
  %v206 = vsel %vm146, %v112, 0.0
  %v207 = vadd.f32 %v205, %v206
  %v208 = vsel %vm146, %v113, 0.0
  %v209 = vadd.f32 %v207, %v208
  %v210 = vsel %vm146, %v114, 0.0
  %v211 = vadd.f32 %v209, %v210
  %v212 = vsel %vm146, %v115, 0.0
  %v213 = vadd.f32 %v211, %v212
  %v214 = vsel %vm146, %v116, 0.0
  %v215 = vadd.f32 %v213, %v214
  %v216 = vsel %vm146, %v117, 0.0
  %v217 = vadd.f32 %v215, %v216
  %v218 = vsel %vm146, %v118, 0.0
  %v219 = vadd.f32 %v217, %v218
  %v220 = vsel %vm146, %v119, 0.0
  %v221 = vadd.f32 %v219, %v220
  %v222 = vsel %vm146, %v120, 0.0
  %v223 = vadd.f32 %v221, %v222
  %v224 = vsel %vm146, %v121, 0.0
  %v225 = vadd.f32 %v223, %v224
  %v226 = vsel %vm146, %v122, 0.0
  %v227 = vadd.f32 %v225, %v226
  %v228 = vsel %vm146, %v123, 0.0
  %v229 = vadd.f32 %v227, %v228
  %v230 = vsel %vm146, %v124, 0.0
  %v231 = vadd.f32 %v229, %v230
  %v232 = vsel %vm146, %v125, 0.0
  %v233 = vadd.f32 %v231, %v232
  %v234 = vsel %vm146, %v126, 0.0
  %v235 = vadd.f32 %v233, %v234
  %v236 = vsel %vm146, %v127, 0.0
  %v237 = vadd.f32 %v235, %v236
  %v238 = vsel %vm146, %v128, 0.0
  %v239 = vadd.f32 %v237, %v238
  %v240 = vsel %vm146, %v129, 0.0
  %v241 = vadd.f32 %v239, %v240
  %v242 = vsel %vm146, %v130, 0.0
  %v243 = vadd.f32 %v241, %v242
  %v244 = vsel %vm146, %v131, 0.0
  %v245 = vadd.f32 %v243, %v244
  %v246 = vsel %vm146, %v132, 0.0
  %v247 = vadd.f32 %v245, %v246
  %v248 = vsel %vm146, %v133, 0.0
  %v249 = vadd.f32 %v247, %v248
  %v250 = vsel %vm146, %v134, 0.0
  %v251 = vadd.f32 %v249, %v250
  %v252 = vsel %vm146, %v135, 0.0
  %v253 = vadd.f32 %v251, %v252
  %v254 = vsel %vm146, %v136, 0.0
  %v255 = vadd.f32 %v253, %v254
  %v256 = vsel %vm146, %v137, 0.0
  %v257 = vadd.f32 %v255, %v256
  %v258 = vsel %vm146, %v138, 0.0
  %v259 = vadd.f32 %v257, %v258
  %v260 = vsel %vm146, %v139, 0.0
  %v261 = vadd.f32 %v259, %v260
  %v262 = vsel %vm146, %v140, 0.0
  %v263 = vadd.f32 %v261, %v262
  %v264 = vsel %vm146, %v141, 0.0
  %v265 = vadd.f32 %v263, %v264
  %v266 = vsel %vm146, %v142, 0.0
  %v267 = vadd.f32 %v265, %v266
  %v268 = vsel %vm146, %v143, 0.0
  %v269 = vadd.f32 %v267, %v268
  %v270 = vsel %vm146, %v144, 0.0
  %v271 = vadd.f32 %v269, %v270
  %v272 = vsel %vm146, %v145, 0.0
  %v273 = vadd.f32 %v271, %v272
  %v274 = vrot.slane %v273, 4
  %v275 = vadd.f32 %v273, %v274
  %v276 = vrot.slane %v275, 2
  %v277 = vadd.f32 %v275, %v276
  %v278 = vrot.slane %v277, 1
  %v279 = vadd.f32 %v277, %v278
  %v280 = vrcp.pop 512.0
  %v281 = vmul.f32 %v279, %v280
  %v282 = vsub.f32 %v82, %v281
  %v283 = vsub.f32 %v83, %v281
  %v284 = vsub.f32 %v84, %v281
  %v285 = vsub.f32 %v85, %v281
  %v286 = vsub.f32 %v86, %v281
  %v287 = vsub.f32 %v87, %v281
  %v288 = vsub.f32 %v88, %v281
  %v289 = vsub.f32 %v89, %v281
  %v290 = vsub.f32 %v90, %v281
  %v291 = vsub.f32 %v91, %v281
  %v292 = vsub.f32 %v92, %v281
  %v293 = vsub.f32 %v93, %v281
  %v294 = vsub.f32 %v94, %v281
  %v295 = vsub.f32 %v95, %v281
  %v296 = vsub.f32 %v96, %v281
  %v297 = vsub.f32 %v97, %v281
  %v298 = vsub.f32 %v98, %v281
  %v299 = vsub.f32 %v99, %v281
  %v300 = vsub.f32 %v100, %v281
  %v301 = vsub.f32 %v101, %v281
  %v302 = vsub.f32 %v102, %v281
  %v303 = vsub.f32 %v103, %v281
  %v304 = vsub.f32 %v104, %v281
  %v305 = vsub.f32 %v105, %v281
  %v306 = vsub.f32 %v106, %v281
  %v307 = vsub.f32 %v107, %v281
  %v308 = vsub.f32 %v108, %v281
  %v309 = vsub.f32 %v109, %v281
  %v310 = vsub.f32 %v110, %v281
  %v311 = vsub.f32 %v111, %v281
  %v312 = vsub.f32 %v112, %v281
  %v313 = vsub.f32 %v113, %v281
  %v314 = vsub.f32 %v114, %v281
  %v315 = vsub.f32 %v115, %v281
  %v316 = vsub.f32 %v116, %v281
  %v317 = vsub.f32 %v117, %v281
  %v318 = vsub.f32 %v118, %v281
  %v319 = vsub.f32 %v119, %v281
  %v320 = vsub.f32 %v120, %v281
  %v321 = vsub.f32 %v121, %v281
  %v322 = vsub.f32 %v122, %v281
  %v323 = vsub.f32 %v123, %v281
  %v324 = vsub.f32 %v124, %v281
  %v325 = vsub.f32 %v125, %v281
  %v326 = vsub.f32 %v126, %v281
  %v327 = vsub.f32 %v127, %v281
  %v328 = vsub.f32 %v128, %v281
  %v329 = vsub.f32 %v129, %v281
  %v330 = vsub.f32 %v130, %v281
  %v331 = vsub.f32 %v131, %v281
  %v332 = vsub.f32 %v132, %v281
  %v333 = vsub.f32 %v133, %v281
  %v334 = vsub.f32 %v134, %v281
  %v335 = vsub.f32 %v135, %v281
  %v336 = vsub.f32 %v136, %v281
  %v337 = vsub.f32 %v137, %v281
  %v338 = vsub.f32 %v138, %v281
  %v339 = vsub.f32 %v139, %v281
  %v340 = vsub.f32 %v140, %v281
  %v341 = vsub.f32 %v141, %v281
  %v342 = vsub.f32 %v142, %v281
  %v343 = vsub.f32 %v143, %v281
  %v344 = vsub.f32 %v144, %v281
  %v345 = vsub.f32 %v145, %v281
  %v346 = vmul.f32 %v282, %v282
  %v347 = vmul.f32 %v283, %v283
  %v348 = vmul.f32 %v284, %v284
  %v349 = vmul.f32 %v285, %v285
  %v350 = vmul.f32 %v286, %v286
  %v351 = vmul.f32 %v287, %v287
  %v352 = vmul.f32 %v288, %v288
  %v353 = vmul.f32 %v289, %v289
  %v354 = vmul.f32 %v290, %v290
  %v355 = vmul.f32 %v291, %v291
  %v356 = vmul.f32 %v292, %v292
  %v357 = vmul.f32 %v293, %v293
  %v358 = vmul.f32 %v294, %v294
  %v359 = vmul.f32 %v295, %v295
  %v360 = vmul.f32 %v296, %v296
  %v361 = vmul.f32 %v297, %v297
  %v362 = vmul.f32 %v298, %v298
  %v363 = vmul.f32 %v299, %v299
  %v364 = vmul.f32 %v300, %v300
  %v365 = vmul.f32 %v301, %v301
  %v366 = vmul.f32 %v302, %v302
  %v367 = vmul.f32 %v303, %v303
  %v368 = vmul.f32 %v304, %v304
  %v369 = vmul.f32 %v305, %v305
  %v370 = vmul.f32 %v306, %v306
  %v371 = vmul.f32 %v307, %v307
  %v372 = vmul.f32 %v308, %v308
  %v373 = vmul.f32 %v309, %v309
  %v374 = vmul.f32 %v310, %v310
  %v375 = vmul.f32 %v311, %v311
  %v376 = vmul.f32 %v312, %v312
  %v377 = vmul.f32 %v313, %v313
  %v378 = vmul.f32 %v314, %v314
  %v379 = vmul.f32 %v315, %v315
  %v380 = vmul.f32 %v316, %v316
  %v381 = vmul.f32 %v317, %v317
  %v382 = vmul.f32 %v318, %v318
  %v383 = vmul.f32 %v319, %v319
  %v384 = vmul.f32 %v320, %v320
  %v385 = vmul.f32 %v321, %v321
  %v386 = vmul.f32 %v322, %v322
  %v387 = vmul.f32 %v323, %v323
  %v388 = vmul.f32 %v324, %v324
  %v389 = vmul.f32 %v325, %v325
  %v390 = vmul.f32 %v326, %v326
  %v391 = vmul.f32 %v327, %v327
  %v392 = vmul.f32 %v328, %v328
  %v393 = vmul.f32 %v329, %v329
  %v394 = vmul.f32 %v330, %v330
  %v395 = vmul.f32 %v331, %v331
  %v396 = vmul.f32 %v332, %v332
  %v397 = vmul.f32 %v333, %v333
  %v398 = vmul.f32 %v334, %v334
  %v399 = vmul.f32 %v335, %v335
  %v400 = vmul.f32 %v336, %v336
  %v401 = vmul.f32 %v337, %v337
  %v402 = vmul.f32 %v338, %v338
  %v403 = vmul.f32 %v339, %v339
  %v404 = vmul.f32 %v340, %v340
  %v405 = vmul.f32 %v341, %v341
  %v406 = vmul.f32 %v342, %v342
  %v407 = vmul.f32 %v343, %v343
  %v408 = vmul.f32 %v344, %v344
  %v409 = vmul.f32 %v345, %v345
  %v410 = vsel %vm146, %v346, 0.0
  %v411 = vsel %vm146, %v347, 0.0
  %v412 = vadd.f32 %v410, %v411
  %v413 = vsel %vm146, %v348, 0.0
  %v414 = vadd.f32 %v412, %v413
  %v415 = vsel %vm146, %v349, 0.0
  %v416 = vadd.f32 %v414, %v415
  %v417 = vsel %vm146, %v350, 0.0
  %v418 = vadd.f32 %v416, %v417
  %v419 = vsel %vm146, %v351, 0.0
  %v420 = vadd.f32 %v418, %v419
  %v421 = vsel %vm146, %v352, 0.0
  %v422 = vadd.f32 %v420, %v421
  %v423 = vsel %vm146, %v353, 0.0
  %v424 = vadd.f32 %v422, %v423
  %v425 = vsel %vm146, %v354, 0.0
  %v426 = vadd.f32 %v424, %v425
  %v427 = vsel %vm146, %v355, 0.0
  %v428 = vadd.f32 %v426, %v427
  %v429 = vsel %vm146, %v356, 0.0
  %v430 = vadd.f32 %v428, %v429
  %v431 = vsel %vm146, %v357, 0.0
  %v432 = vadd.f32 %v430, %v431
  %v433 = vsel %vm146, %v358, 0.0
  %v434 = vadd.f32 %v432, %v433
  %v435 = vsel %vm146, %v359, 0.0
  %v436 = vadd.f32 %v434, %v435
  %v437 = vsel %vm146, %v360, 0.0
  %v438 = vadd.f32 %v436, %v437
  %v439 = vsel %vm146, %v361, 0.0
  %v440 = vadd.f32 %v438, %v439
  %v441 = vsel %vm146, %v362, 0.0
  %v442 = vadd.f32 %v440, %v441
  %v443 = vsel %vm146, %v363, 0.0
  %v444 = vadd.f32 %v442, %v443
  %v445 = vsel %vm146, %v364, 0.0
  %v446 = vadd.f32 %v444, %v445
  %v447 = vsel %vm146, %v365, 0.0
  %v448 = vadd.f32 %v446, %v447
  %v449 = vsel %vm146, %v366, 0.0
  %v450 = vadd.f32 %v448, %v449
  %v451 = vsel %vm146, %v367, 0.0
  %v452 = vadd.f32 %v450, %v451
  %v453 = vsel %vm146, %v368, 0.0
  %v454 = vadd.f32 %v452, %v453
  %v455 = vsel %vm146, %v369, 0.0
  %v456 = vadd.f32 %v454, %v455
  %v457 = vsel %vm146, %v370, 0.0
  %v458 = vadd.f32 %v456, %v457
  %v459 = vsel %vm146, %v371, 0.0
  %v460 = vadd.f32 %v458, %v459
  %v461 = vsel %vm146, %v372, 0.0
  %v462 = vadd.f32 %v460, %v461
  %v463 = vsel %vm146, %v373, 0.0
  %v464 = vadd.f32 %v462, %v463
  %v465 = vsel %vm146, %v374, 0.0
  %v466 = vadd.f32 %v464, %v465
  %v467 = vsel %vm146, %v375, 0.0
  %v468 = vadd.f32 %v466, %v467
  %v469 = vsel %vm146, %v376, 0.0
  %v470 = vadd.f32 %v468, %v469
  %v471 = vsel %vm146, %v377, 0.0
  %v472 = vadd.f32 %v470, %v471
  %v473 = vsel %vm146, %v378, 0.0
  %v474 = vadd.f32 %v472, %v473
  %v475 = vsel %vm146, %v379, 0.0
  %v476 = vadd.f32 %v474, %v475
  %v477 = vsel %vm146, %v380, 0.0
  %v478 = vadd.f32 %v476, %v477
  %v479 = vsel %vm146, %v381, 0.0
  %v480 = vadd.f32 %v478, %v479
  %v481 = vsel %vm146, %v382, 0.0
  %v482 = vadd.f32 %v480, %v481
  %v483 = vsel %vm146, %v383, 0.0
  %v484 = vadd.f32 %v482, %v483
  %v485 = vsel %vm146, %v384, 0.0
  %v486 = vadd.f32 %v484, %v485
  %v487 = vsel %vm146, %v385, 0.0
  %v488 = vadd.f32 %v486, %v487
  %v489 = vsel %vm146, %v386, 0.0
  %v490 = vadd.f32 %v488, %v489
  %v491 = vsel %vm146, %v387, 0.0
  %v492 = vadd.f32 %v490, %v491
  %v493 = vsel %vm146, %v388, 0.0
  %v494 = vadd.f32 %v492, %v493
  %v495 = vsel %vm146, %v389, 0.0
  %v496 = vadd.f32 %v494, %v495
  %v497 = vsel %vm146, %v390, 0.0
  %v498 = vadd.f32 %v496, %v497
  %v499 = vsel %vm146, %v391, 0.0
  %v500 = vadd.f32 %v498, %v499
  %v501 = vsel %vm146, %v392, 0.0
  %v502 = vadd.f32 %v500, %v501
  %v503 = vsel %vm146, %v393, 0.0
  %v504 = vadd.f32 %v502, %v503
  %v505 = vsel %vm146, %v394, 0.0
  %v506 = vadd.f32 %v504, %v505
  %v507 = vsel %vm146, %v395, 0.0
  %v508 = vadd.f32 %v506, %v507
  %v509 = vsel %vm146, %v396, 0.0
  %v510 = vadd.f32 %v508, %v509
  %v511 = vsel %vm146, %v397, 0.0
  %v512 = vadd.f32 %v510, %v511
  %v513 = vsel %vm146, %v398, 0.0
  %v514 = vadd.f32 %v512, %v513
  %v515 = vsel %vm146, %v399, 0.0
  %v516 = vadd.f32 %v514, %v515
  %v517 = vsel %vm146, %v400, 0.0
  %v518 = vadd.f32 %v516, %v517
  %v519 = vsel %vm146, %v401, 0.0
  %v520 = vadd.f32 %v518, %v519
  %v521 = vsel %vm146, %v402, 0.0
  %v522 = vadd.f32 %v520, %v521
  %v523 = vsel %vm146, %v403, 0.0
  %v524 = vadd.f32 %v522, %v523
  %v525 = vsel %vm146, %v404, 0.0
  %v526 = vadd.f32 %v524, %v525
  %v527 = vsel %vm146, %v405, 0.0
  %v528 = vadd.f32 %v526, %v527
  %v529 = vsel %vm146, %v406, 0.0
  %v530 = vadd.f32 %v528, %v529
  %v531 = vsel %vm146, %v407, 0.0
  %v532 = vadd.f32 %v530, %v531
  %v533 = vsel %vm146, %v408, 0.0
  %v534 = vadd.f32 %v532, %v533
  %v535 = vsel %vm146, %v409, 0.0
  %v536 = vadd.f32 %v534, %v535
  %v537 = vrot.slane %v536, 4
  %v538 = vadd.f32 %v536, %v537
  %v539 = vrot.slane %v538, 2
  %v540 = vadd.f32 %v538, %v539
  %v541 = vrot.slane %v540, 1
  %v542 = vadd.f32 %v540, %v541
  %v543 = vmul.f32 %v542, %v280
  %v544 = vadd.f32 %v543, 1e-05
  %v545 = vrsqrt.pop %v544
  %v546 = vmul.f32 %v282, %v545
  %v547 = vmul.f32 %v283, %v545
  %v548 = vmul.f32 %v284, %v545
  %v549 = vmul.f32 %v285, %v545
  %v550 = vmul.f32 %v286, %v545
  %v551 = vmul.f32 %v287, %v545
  %v552 = vmul.f32 %v288, %v545
  %v553 = vmul.f32 %v289, %v545
  %v554 = vmul.f32 %v290, %v545
  %v555 = vmul.f32 %v291, %v545
  %v556 = vmul.f32 %v292, %v545
  %v557 = vmul.f32 %v293, %v545
  %v558 = vmul.f32 %v294, %v545
  %v559 = vmul.f32 %v295, %v545
  %v560 = vmul.f32 %v296, %v545
  %v561 = vmul.f32 %v297, %v545
  %v562 = vmul.f32 %v298, %v545
  %v563 = vmul.f32 %v299, %v545
  %v564 = vmul.f32 %v300, %v545
  %v565 = vmul.f32 %v301, %v545
  %v566 = vmul.f32 %v302, %v545
  %v567 = vmul.f32 %v303, %v545
  %v568 = vmul.f32 %v304, %v545
  %v569 = vmul.f32 %v305, %v545
  %v570 = vmul.f32 %v306, %v545
  %v571 = vmul.f32 %v307, %v545
  %v572 = vmul.f32 %v308, %v545
  %v573 = vmul.f32 %v309, %v545
  %v574 = vmul.f32 %v310, %v545
  %v575 = vmul.f32 %v311, %v545
  %v576 = vmul.f32 %v312, %v545
  %v577 = vmul.f32 %v313, %v545
  %v578 = vmul.f32 %v314, %v545
  %v579 = vmul.f32 %v315, %v545
  %v580 = vmul.f32 %v316, %v545
  %v581 = vmul.f32 %v317, %v545
  %v582 = vmul.f32 %v318, %v545
  %v583 = vmul.f32 %v319, %v545
  %v584 = vmul.f32 %v320, %v545
  %v585 = vmul.f32 %v321, %v545
  %v586 = vmul.f32 %v322, %v545
  %v587 = vmul.f32 %v323, %v545
  %v588 = vmul.f32 %v324, %v545
  %v589 = vmul.f32 %v325, %v545
  %v590 = vmul.f32 %v326, %v545
  %v591 = vmul.f32 %v327, %v545
  %v592 = vmul.f32 %v328, %v545
  %v593 = vmul.f32 %v329, %v545
  %v594 = vmul.f32 %v330, %v545
  %v595 = vmul.f32 %v331, %v545
  %v596 = vmul.f32 %v332, %v545
  %v597 = vmul.f32 %v333, %v545
  %v598 = vmul.f32 %v334, %v545
  %v599 = vmul.f32 %v335, %v545
  %v600 = vmul.f32 %v336, %v545
  %v601 = vmul.f32 %v337, %v545
  %v602 = vmul.f32 %v338, %v545
  %v603 = vmul.f32 %v339, %v545
  %v604 = vmul.f32 %v340, %v545
  %v605 = vmul.f32 %v341, %v545
  %v606 = vmul.f32 %v342, %v545
  %v607 = vmul.f32 %v343, %v545
  %v608 = vmul.f32 %v344, %v545
  %v609 = vmul.f32 %v345, %v545
  %v610 = vld [vmem:[%s1] sm:$0x1]
  %v612 = vlaneseq
  %v613 = vshrl.u32 %v612, 7
  %v614 = vsub.s32 0, %v613
  %v615 = vrot.slane %v610, %v614
  %v617 = vmul.f32 %v546, %v615
  %v618 = vmul.f32 %v547, %v615
  %v619 = vmul.f32 %v548, %v615
  %v620 = vmul.f32 %v549, %v615
  %v621 = vmul.f32 %v550, %v615
  %v622 = vmul.f32 %v551, %v615
  %v623 = vmul.f32 %v552, %v615
  %v624 = vmul.f32 %v553, %v615
  %v625 = vmul.f32 %v554, %v615
  %v626 = vmul.f32 %v555, %v615
  %v627 = vmul.f32 %v556, %v615
  %v628 = vmul.f32 %v557, %v615
  %v629 = vmul.f32 %v558, %v615
  %v630 = vmul.f32 %v559, %v615
  %v631 = vmul.f32 %v560, %v615
  %v632 = vmul.f32 %v561, %v615
  %v633 = vmul.f32 %v562, %v615
  %v634 = vmul.f32 %v563, %v615
  %v635 = vmul.f32 %v564, %v615
  %v636 = vmul.f32 %v565, %v615
  %v637 = vmul.f32 %v566, %v615
  %v638 = vmul.f32 %v567, %v615
  %v639 = vmul.f32 %v568, %v615
  %v640 = vmul.f32 %v569, %v615
  %v641 = vmul.f32 %v570, %v615
  %v642 = vmul.f32 %v571, %v615
  %v643 = vmul.f32 %v572, %v615
  %v644 = vmul.f32 %v573, %v615
  %v645 = vmul.f32 %v574, %v615
  %v646 = vmul.f32 %v575, %v615
  %v647 = vmul.f32 %v576, %v615
  %v648 = vmul.f32 %v577, %v615
  %v649 = vmul.f32 %v578, %v615
  %v650 = vmul.f32 %v579, %v615
  %v651 = vmul.f32 %v580, %v615
  %v652 = vmul.f32 %v581, %v615
  %v653 = vmul.f32 %v582, %v615
  %v654 = vmul.f32 %v583, %v615
  %v655 = vmul.f32 %v584, %v615
  %v656 = vmul.f32 %v585, %v615
  %v657 = vmul.f32 %v586, %v615
  %v658 = vmul.f32 %v587, %v615
  %v659 = vmul.f32 %v588, %v615
  %v660 = vmul.f32 %v589, %v615
  %v661 = vmul.f32 %v590, %v615
  %v662 = vmul.f32 %v591, %v615
  %v663 = vmul.f32 %v592, %v615
  %v664 = vmul.f32 %v593, %v615
  %v665 = vmul.f32 %v594, %v615
  %v666 = vmul.f32 %v595, %v615
  %v667 = vmul.f32 %v596, %v615
  %v668 = vmul.f32 %v597, %v615
  %v669 = vmul.f32 %v598, %v615
  %v670 = vmul.f32 %v599, %v615
  %v671 = vmul.f32 %v600, %v615
  %v672 = vmul.f32 %v601, %v615
  %v673 = vmul.f32 %v602, %v615
  %v674 = vmul.f32 %v603, %v615
  %v675 = vmul.f32 %v604, %v615
  %v676 = vmul.f32 %v605, %v615
  %v677 = vmul.f32 %v606, %v615
  %v678 = vmul.f32 %v607, %v615
  %v679 = vmul.f32 %v608, %v615
  %v680 = vmul.f32 %v609, %v615
  %v681 = vld [vmem:[%s2] sm:$0x1]
  %v683 = vlaneseq
  %v684 = vshrl.u32 %v683, 7
  %v685 = vsub.s32 0, %v684
  %v686 = vrot.slane %v681, %v685
  %v688 = vadd.f32 %v617, %v686
  %v689 = vadd.f32 %v618, %v686
  %v690 = vadd.f32 %v619, %v686
  %v691 = vadd.f32 %v620, %v686
  %v692 = vadd.f32 %v621, %v686
  %v693 = vadd.f32 %v622, %v686
  %v694 = vadd.f32 %v623, %v686
  %v695 = vadd.f32 %v624, %v686
  %v696 = vadd.f32 %v625, %v686
  %v697 = vadd.f32 %v626, %v686
  %v698 = vadd.f32 %v627, %v686
  %v699 = vadd.f32 %v628, %v686
  %v700 = vadd.f32 %v629, %v686
  %v701 = vadd.f32 %v630, %v686
  %v702 = vadd.f32 %v631, %v686
  %v703 = vadd.f32 %v632, %v686
  %v704 = vadd.f32 %v633, %v686
  %v705 = vadd.f32 %v634, %v686
  %v706 = vadd.f32 %v635, %v686
  %v707 = vadd.f32 %v636, %v686
  %v708 = vadd.f32 %v637, %v686
  %v709 = vadd.f32 %v638, %v686
  %v710 = vadd.f32 %v639, %v686
  %v711 = vadd.f32 %v640, %v686
  %v712 = vadd.f32 %v641, %v686
  %v713 = vadd.f32 %v642, %v686
  %v714 = vadd.f32 %v643, %v686
  %v715 = vadd.f32 %v644, %v686
  %v716 = vadd.f32 %v645, %v686
  %v717 = vadd.f32 %v646, %v686
  %v718 = vadd.f32 %v647, %v686
  %v719 = vadd.f32 %v648, %v686
  %v720 = vadd.f32 %v649, %v686
  %v721 = vadd.f32 %v650, %v686
  %v722 = vadd.f32 %v651, %v686
  %v723 = vadd.f32 %v652, %v686
  %v724 = vadd.f32 %v653, %v686
  %v725 = vadd.f32 %v654, %v686
  %v726 = vadd.f32 %v655, %v686
  %v727 = vadd.f32 %v656, %v686
  %v728 = vadd.f32 %v657, %v686
  %v729 = vadd.f32 %v658, %v686
  %v730 = vadd.f32 %v659, %v686
  %v731 = vadd.f32 %v660, %v686
  %v732 = vadd.f32 %v661, %v686
  %v733 = vadd.f32 %v662, %v686
  %v734 = vadd.f32 %v663, %v686
  %v735 = vadd.f32 %v664, %v686
  %v736 = vadd.f32 %v665, %v686
  %v737 = vadd.f32 %v666, %v686
  %v738 = vadd.f32 %v667, %v686
  %v739 = vadd.f32 %v668, %v686
  %v740 = vadd.f32 %v669, %v686
  %v741 = vadd.f32 %v670, %v686
  %v742 = vadd.f32 %v671, %v686
  %v743 = vadd.f32 %v672, %v686
  %v744 = vadd.f32 %v673, %v686
  %v745 = vadd.f32 %v674, %v686
  %v746 = vadd.f32 %v675, %v686
  %v747 = vadd.f32 %v676, %v686
  %v748 = vadd.f32 %v677, %v686
  %v749 = vadd.f32 %v678, %v686
  %v750 = vadd.f32 %v679, %v686
  %v751 = vadd.f32 %v680, %v686
  %v752 = vsub.f32 0.0, %v688
  %v753 = vsub.f32 0.0, %v689
  %v754 = vsub.f32 0.0, %v690
  %v755 = vsub.f32 0.0, %v691
  %v756 = vsub.f32 0.0, %v692
  %v757 = vsub.f32 0.0, %v693
  %v758 = vsub.f32 0.0, %v694
  %v759 = vsub.f32 0.0, %v695
  %v760 = vsub.f32 0.0, %v696
  %v761 = vsub.f32 0.0, %v697
  %v762 = vsub.f32 0.0, %v698
  %v763 = vsub.f32 0.0, %v699
  %v764 = vsub.f32 0.0, %v700
  %v765 = vsub.f32 0.0, %v701
  %v766 = vsub.f32 0.0, %v702
  %v767 = vsub.f32 0.0, %v703
  %v768 = vsub.f32 0.0, %v704
  %v769 = vsub.f32 0.0, %v705
  %v770 = vsub.f32 0.0, %v706
  %v771 = vsub.f32 0.0, %v707
  %v772 = vsub.f32 0.0, %v708
  %v773 = vsub.f32 0.0, %v709
  %v774 = vsub.f32 0.0, %v710
  %v775 = vsub.f32 0.0, %v711
  %v776 = vsub.f32 0.0, %v712
  %v777 = vsub.f32 0.0, %v713
  %v778 = vsub.f32 0.0, %v714
  %v779 = vsub.f32 0.0, %v715
  %v780 = vsub.f32 0.0, %v716
  %v781 = vsub.f32 0.0, %v717
  %v782 = vsub.f32 0.0, %v718
  %v783 = vsub.f32 0.0, %v719
  %v784 = vsub.f32 0.0, %v720
  %v785 = vsub.f32 0.0, %v721
  %v786 = vsub.f32 0.0, %v722
  %v787 = vsub.f32 0.0, %v723
  %v788 = vsub.f32 0.0, %v724
  %v789 = vsub.f32 0.0, %v725
  %v790 = vsub.f32 0.0, %v726
  %v791 = vsub.f32 0.0, %v727
  %v792 = vsub.f32 0.0, %v728
  %v793 = vsub.f32 0.0, %v729
  %v794 = vsub.f32 0.0, %v730
  %v795 = vsub.f32 0.0, %v731
  %v796 = vsub.f32 0.0, %v732
  %v797 = vsub.f32 0.0, %v733
  %v798 = vsub.f32 0.0, %v734
  %v799 = vsub.f32 0.0, %v735
  %v800 = vsub.f32 0.0, %v736
  %v801 = vsub.f32 0.0, %v737
  %v802 = vsub.f32 0.0, %v738
  %v803 = vsub.f32 0.0, %v739
  %v804 = vsub.f32 0.0, %v740
  %v805 = vsub.f32 0.0, %v741
  %v806 = vsub.f32 0.0, %v742
  %v807 = vsub.f32 0.0, %v743
  %v808 = vsub.f32 0.0, %v744
  %v809 = vsub.f32 0.0, %v745
  %v810 = vsub.f32 0.0, %v746
  %v811 = vsub.f32 0.0, %v747
  %v812 = vsub.f32 0.0, %v748
  %v813 = vsub.f32 0.0, %v749
  %v814 = vsub.f32 0.0, %v750
  %v815 = vsub.f32 0.0, %v751
  %v816 = vmul.f32 %v752, 1.442695
  %v817 = vpow.pop %v816
  %v818 = vmul.f32 %v753, 1.442695
  %v819 = vpow.pop %v818
  %v820 = vmul.f32 %v754, 1.442695
  %v821 = vpow.pop %v820
  %v822 = vmul.f32 %v755, 1.442695
  %v823 = vpow.pop %v822
  %v824 = vmul.f32 %v756, 1.442695
  %v825 = vpow.pop %v824
  %v826 = vmul.f32 %v757, 1.442695
  %v827 = vpow.pop %v826
  %v828 = vmul.f32 %v758, 1.442695
  %v829 = vpow.pop %v828
  %v830 = vmul.f32 %v759, 1.442695
  %v831 = vpow.pop %v830
  %v832 = vmul.f32 %v760, 1.442695
  %v833 = vpow.pop %v832
  %v834 = vmul.f32 %v761, 1.442695
  %v835 = vpow.pop %v834
  %v836 = vmul.f32 %v762, 1.442695
  %v837 = vpow.pop %v836
  %v838 = vmul.f32 %v763, 1.442695
  %v839 = vpow.pop %v838
  %v840 = vmul.f32 %v764, 1.442695
  %v841 = vpow.pop %v840
  %v842 = vmul.f32 %v765, 1.442695
  %v843 = vpow.pop %v842
  %v844 = vmul.f32 %v766, 1.442695
  %v845 = vpow.pop %v844
  %v846 = vmul.f32 %v767, 1.442695
  %v847 = vpow.pop %v846
  %v848 = vmul.f32 %v768, 1.442695
  %v849 = vpow.pop %v848
  %v850 = vmul.f32 %v769, 1.442695
  %v851 = vpow.pop %v850
  %v852 = vmul.f32 %v770, 1.442695
  %v853 = vpow.pop %v852
  %v854 = vmul.f32 %v771, 1.442695
  %v855 = vpow.pop %v854
  %v856 = vmul.f32 %v772, 1.442695
  %v857 = vpow.pop %v856
  %v858 = vmul.f32 %v773, 1.442695
  %v859 = vpow.pop %v858
  %v860 = vmul.f32 %v774, 1.442695
  %v861 = vpow.pop %v860
  %v862 = vmul.f32 %v775, 1.442695
  %v863 = vpow.pop %v862
  %v864 = vmul.f32 %v776, 1.442695
  %v865 = vpow.pop %v864
  %v866 = vmul.f32 %v777, 1.442695
  %v867 = vpow.pop %v866
  %v868 = vmul.f32 %v778, 1.442695
  %v869 = vpow.pop %v868
  %v870 = vmul.f32 %v779, 1.442695
  %v871 = vpow.pop %v870
  %v872 = vmul.f32 %v780, 1.442695
  %v873 = vpow.pop %v872
  %v874 = vmul.f32 %v781, 1.442695
  %v875 = vpow.pop %v874
  %v876 = vmul.f32 %v782, 1.442695
  %v877 = vpow.pop %v876
  %v878 = vmul.f32 %v783, 1.442695
  %v879 = vpow.pop %v878
  %v880 = vmul.f32 %v784, 1.442695
  %v881 = vpow.pop %v880
  %v882 = vmul.f32 %v785, 1.442695
  %v883 = vpow.pop %v882
  %v884 = vmul.f32 %v786, 1.442695
  %v885 = vpow.pop %v884
  %v886 = vmul.f32 %v787, 1.442695
  %v887 = vpow.pop %v886
  %v888 = vmul.f32 %v788, 1.442695
  %v889 = vpow.pop %v888
  %v890 = vmul.f32 %v789, 1.442695
  %v891 = vpow.pop %v890
  %v892 = vmul.f32 %v790, 1.442695
  %v893 = vpow.pop %v892
  %v894 = vmul.f32 %v791, 1.442695
  %v895 = vpow.pop %v894
  %v896 = vmul.f32 %v792, 1.442695
  %v897 = vpow.pop %v896
  %v898 = vmul.f32 %v793, 1.442695
  %v899 = vpow.pop %v898
  %v900 = vmul.f32 %v794, 1.442695
  %v901 = vpow.pop %v900
  %v902 = vmul.f32 %v795, 1.442695
  %v903 = vpow.pop %v902
  %v904 = vmul.f32 %v796, 1.442695
  %v905 = vpow.pop %v904
  %v906 = vmul.f32 %v797, 1.442695
  %v907 = vpow.pop %v906
  %v908 = vmul.f32 %v798, 1.442695
  %v909 = vpow.pop %v908
  %v910 = vmul.f32 %v799, 1.442695
  %v911 = vpow.pop %v910
  %v912 = vmul.f32 %v800, 1.442695
  %v913 = vpow.pop %v912
  %v914 = vmul.f32 %v801, 1.442695
  %v915 = vpow.pop %v914
  %v916 = vmul.f32 %v802, 1.442695
  %v917 = vpow.pop %v916
  %v918 = vmul.f32 %v803, 1.442695
  %v919 = vpow.pop %v918
  %v920 = vmul.f32 %v804, 1.442695
  %v921 = vpow.pop %v920
  %v922 = vmul.f32 %v805, 1.442695
  %v923 = vpow.pop %v922
  %v924 = vmul.f32 %v806, 1.442695
  %v925 = vpow.pop %v924
  %v926 = vmul.f32 %v807, 1.442695
  %v927 = vpow.pop %v926
  %v928 = vmul.f32 %v808, 1.442695
  %v929 = vpow.pop %v928
  %v930 = vmul.f32 %v809, 1.442695
  %v931 = vpow.pop %v930
  %v932 = vmul.f32 %v810, 1.442695
  %v933 = vpow.pop %v932
  %v934 = vmul.f32 %v811, 1.442695
  %v935 = vpow.pop %v934
  %v936 = vmul.f32 %v812, 1.442695
  %v937 = vpow.pop %v936
  %v938 = vmul.f32 %v813, 1.442695
  %v939 = vpow.pop %v938
  %v940 = vmul.f32 %v814, 1.442695
  %v941 = vpow.pop %v940
  %v942 = vmul.f32 %v815, 1.442695
  %v943 = vpow.pop %v942
  %v944 = vadd.f32 %v817, 1.0
  %v945 = vadd.f32 %v819, 1.0
  %v946 = vadd.f32 %v821, 1.0
  %v947 = vadd.f32 %v823, 1.0
  %v948 = vadd.f32 %v825, 1.0
  %v949 = vadd.f32 %v827, 1.0
  %v950 = vadd.f32 %v829, 1.0
  %v951 = vadd.f32 %v831, 1.0
  %v952 = vadd.f32 %v833, 1.0
  %v953 = vadd.f32 %v835, 1.0
  %v954 = vadd.f32 %v837, 1.0
  %v955 = vadd.f32 %v839, 1.0
  %v956 = vadd.f32 %v841, 1.0
  %v957 = vadd.f32 %v843, 1.0
  %v958 = vadd.f32 %v845, 1.0
  %v959 = vadd.f32 %v847, 1.0
  %v960 = vadd.f32 %v849, 1.0
  %v961 = vadd.f32 %v851, 1.0
  %v962 = vadd.f32 %v853, 1.0
  %v963 = vadd.f32 %v855, 1.0
  %v964 = vadd.f32 %v857, 1.0
  %v965 = vadd.f32 %v859, 1.0
  %v966 = vadd.f32 %v861, 1.0
  %v967 = vadd.f32 %v863, 1.0
  %v968 = vadd.f32 %v865, 1.0
  %v969 = vadd.f32 %v867, 1.0
  %v970 = vadd.f32 %v869, 1.0
  %v971 = vadd.f32 %v871, 1.0
  %v972 = vadd.f32 %v873, 1.0
  %v973 = vadd.f32 %v875, 1.0
  %v974 = vadd.f32 %v877, 1.0
  %v975 = vadd.f32 %v879, 1.0
  %v976 = vadd.f32 %v881, 1.0
  %v977 = vadd.f32 %v883, 1.0
  %v978 = vadd.f32 %v885, 1.0
  %v979 = vadd.f32 %v887, 1.0
  %v980 = vadd.f32 %v889, 1.0
  %v981 = vadd.f32 %v891, 1.0
  %v982 = vadd.f32 %v893, 1.0
  %v983 = vadd.f32 %v895, 1.0
  %v984 = vadd.f32 %v897, 1.0
  %v985 = vadd.f32 %v899, 1.0
  %v986 = vadd.f32 %v901, 1.0
  %v987 = vadd.f32 %v903, 1.0
  %v988 = vadd.f32 %v905, 1.0
  %v989 = vadd.f32 %v907, 1.0
  %v990 = vadd.f32 %v909, 1.0
  %v991 = vadd.f32 %v911, 1.0
  %v992 = vadd.f32 %v913, 1.0
  %v993 = vadd.f32 %v915, 1.0
  %v994 = vadd.f32 %v917, 1.0
  %v995 = vadd.f32 %v919, 1.0
  %v996 = vadd.f32 %v921, 1.0
  %v997 = vadd.f32 %v923, 1.0
  %v998 = vadd.f32 %v925, 1.0
  %v999 = vadd.f32 %v927, 1.0
  %v1000 = vadd.f32 %v929, 1.0
  %v1001 = vadd.f32 %v931, 1.0
  %v1002 = vadd.f32 %v933, 1.0
  %v1003 = vadd.f32 %v935, 1.0
  %v1004 = vadd.f32 %v937, 1.0
  %v1005 = vadd.f32 %v939, 1.0
  %v1006 = vadd.f32 %v941, 1.0
  %v1007 = vadd.f32 %v943, 1.0
  %v1008 = vrcp.pop %v944
  %v1009 = vmul.f32 1.0, %v1008
  %v1010 = vrcp.pop %v945
  %v1011 = vmul.f32 1.0, %v1010
  %v1012 = vrcp.pop %v946
  %v1013 = vmul.f32 1.0, %v1012
  %v1014 = vrcp.pop %v947
  %v1015 = vmul.f32 1.0, %v1014
  %v1016 = vrcp.pop %v948
  %v1017 = vmul.f32 1.0, %v1016
  %v1018 = vrcp.pop %v949
  %v1019 = vmul.f32 1.0, %v1018
  %v1020 = vrcp.pop %v950
  %v1021 = vmul.f32 1.0, %v1020
  %v1022 = vrcp.pop %v951
  %v1023 = vmul.f32 1.0, %v1022
  %v1024 = vrcp.pop %v952
  %v1025 = vmul.f32 1.0, %v1024
  %v1026 = vrcp.pop %v953
  %v1027 = vmul.f32 1.0, %v1026
  %v1028 = vrcp.pop %v954
  %v1029 = vmul.f32 1.0, %v1028
  %v1030 = vrcp.pop %v955
  %v1031 = vmul.f32 1.0, %v1030
  %v1032 = vrcp.pop %v956
  %v1033 = vmul.f32 1.0, %v1032
  %v1034 = vrcp.pop %v957
  %v1035 = vmul.f32 1.0, %v1034
  %v1036 = vrcp.pop %v958
  %v1037 = vmul.f32 1.0, %v1036
  %v1038 = vrcp.pop %v959
  %v1039 = vmul.f32 1.0, %v1038
  %v1040 = vrcp.pop %v960
  %v1041 = vmul.f32 1.0, %v1040
  %v1042 = vrcp.pop %v961
  %v1043 = vmul.f32 1.0, %v1042
  %v1044 = vrcp.pop %v962
  %v1045 = vmul.f32 1.0, %v1044
  %v1046 = vrcp.pop %v963
  %v1047 = vmul.f32 1.0, %v1046
  %v1048 = vrcp.pop %v964
  %v1049 = vmul.f32 1.0, %v1048
  %v1050 = vrcp.pop %v965
  %v1051 = vmul.f32 1.0, %v1050
  %v1052 = vrcp.pop %v966
  %v1053 = vmul.f32 1.0, %v1052
  %v1054 = vrcp.pop %v967
  %v1055 = vmul.f32 1.0, %v1054
  %v1056 = vrcp.pop %v968
  %v1057 = vmul.f32 1.0, %v1056
  %v1058 = vrcp.pop %v969
  %v1059 = vmul.f32 1.0, %v1058
  %v1060 = vrcp.pop %v970
  %v1061 = vmul.f32 1.0, %v1060
  %v1062 = vrcp.pop %v971
  %v1063 = vmul.f32 1.0, %v1062
  %v1064 = vrcp.pop %v972
  %v1065 = vmul.f32 1.0, %v1064
  %v1066 = vrcp.pop %v973
  %v1067 = vmul.f32 1.0, %v1066
  %v1068 = vrcp.pop %v974
  %v1069 = vmul.f32 1.0, %v1068
  %v1070 = vrcp.pop %v975
  %v1071 = vmul.f32 1.0, %v1070
  %v1072 = vrcp.pop %v976
  %v1073 = vmul.f32 1.0, %v1072
  %v1074 = vrcp.pop %v977
  %v1075 = vmul.f32 1.0, %v1074
  %v1076 = vrcp.pop %v978
  %v1077 = vmul.f32 1.0, %v1076
  %v1078 = vrcp.pop %v979
  %v1079 = vmul.f32 1.0, %v1078
  %v1080 = vrcp.pop %v980
  %v1081 = vmul.f32 1.0, %v1080
  %v1082 = vrcp.pop %v981
  %v1083 = vmul.f32 1.0, %v1082
  %v1084 = vrcp.pop %v982
  %v1085 = vmul.f32 1.0, %v1084
  %v1086 = vrcp.pop %v983
  %v1087 = vmul.f32 1.0, %v1086
  %v1088 = vrcp.pop %v984
  %v1089 = vmul.f32 1.0, %v1088
  %v1090 = vrcp.pop %v985
  %v1091 = vmul.f32 1.0, %v1090
  %v1092 = vrcp.pop %v986
  %v1093 = vmul.f32 1.0, %v1092
  %v1094 = vrcp.pop %v987
  %v1095 = vmul.f32 1.0, %v1094
  %v1096 = vrcp.pop %v988
  %v1097 = vmul.f32 1.0, %v1096
  %v1098 = vrcp.pop %v989
  %v1099 = vmul.f32 1.0, %v1098
  %v1100 = vrcp.pop %v990
  %v1101 = vmul.f32 1.0, %v1100
  %v1102 = vrcp.pop %v991
  %v1103 = vmul.f32 1.0, %v1102
  %v1104 = vrcp.pop %v992
  %v1105 = vmul.f32 1.0, %v1104
  %v1106 = vrcp.pop %v993
  %v1107 = vmul.f32 1.0, %v1106
  %v1108 = vrcp.pop %v994
  %v1109 = vmul.f32 1.0, %v1108
  %v1110 = vrcp.pop %v995
  %v1111 = vmul.f32 1.0, %v1110
  %v1112 = vrcp.pop %v996
  %v1113 = vmul.f32 1.0, %v1112
  %v1114 = vrcp.pop %v997
  %v1115 = vmul.f32 1.0, %v1114
  %v1116 = vrcp.pop %v998
  %v1117 = vmul.f32 1.0, %v1116
  %v1118 = vrcp.pop %v999
  %v1119 = vmul.f32 1.0, %v1118
  %v1120 = vrcp.pop %v1000
  %v1121 = vmul.f32 1.0, %v1120
  %v1122 = vrcp.pop %v1001
  %v1123 = vmul.f32 1.0, %v1122
  %v1124 = vrcp.pop %v1002
  %v1125 = vmul.f32 1.0, %v1124
  %v1126 = vrcp.pop %v1003
  %v1127 = vmul.f32 1.0, %v1126
  %v1128 = vrcp.pop %v1004
  %v1129 = vmul.f32 1.0, %v1128
  %v1130 = vrcp.pop %v1005
  %v1131 = vmul.f32 1.0, %v1130
  %v1132 = vrcp.pop %v1006
  %v1133 = vmul.f32 1.0, %v1132
  %v1134 = vrcp.pop %v1007
  %v1135 = vmul.f32 1.0, %v1134
  %v1136 = vmul.f32 %v688, %v1009
  %v1137 = vmul.f32 %v689, %v1011
  %v1138 = vmul.f32 %v690, %v1013
  %v1139 = vmul.f32 %v691, %v1015
  %v1140 = vmul.f32 %v692, %v1017
  %v1141 = vmul.f32 %v693, %v1019
  %v1142 = vmul.f32 %v694, %v1021
  %v1143 = vmul.f32 %v695, %v1023
  %v1144 = vmul.f32 %v696, %v1025
  %v1145 = vmul.f32 %v697, %v1027
  %v1146 = vmul.f32 %v698, %v1029
  %v1147 = vmul.f32 %v699, %v1031
  %v1148 = vmul.f32 %v700, %v1033
  %v1149 = vmul.f32 %v701, %v1035
  %v1150 = vmul.f32 %v702, %v1037
  %v1151 = vmul.f32 %v703, %v1039
  %v1152 = vmul.f32 %v704, %v1041
  %v1153 = vmul.f32 %v705, %v1043
  %v1154 = vmul.f32 %v706, %v1045
  %v1155 = vmul.f32 %v707, %v1047
  %v1156 = vmul.f32 %v708, %v1049
  %v1157 = vmul.f32 %v709, %v1051
  %v1158 = vmul.f32 %v710, %v1053
  %v1159 = vmul.f32 %v711, %v1055
  %v1160 = vmul.f32 %v712, %v1057
  %v1161 = vmul.f32 %v713, %v1059
  %v1162 = vmul.f32 %v714, %v1061
  %v1163 = vmul.f32 %v715, %v1063
  %v1164 = vmul.f32 %v716, %v1065
  %v1165 = vmul.f32 %v717, %v1067
  %v1166 = vmul.f32 %v718, %v1069
  %v1167 = vmul.f32 %v719, %v1071
  %v1168 = vmul.f32 %v720, %v1073
  %v1169 = vmul.f32 %v721, %v1075
  %v1170 = vmul.f32 %v722, %v1077
  %v1171 = vmul.f32 %v723, %v1079
  %v1172 = vmul.f32 %v724, %v1081
  %v1173 = vmul.f32 %v725, %v1083
  %v1174 = vmul.f32 %v726, %v1085
  %v1175 = vmul.f32 %v727, %v1087
  %v1176 = vmul.f32 %v728, %v1089
  %v1177 = vmul.f32 %v729, %v1091
  %v1178 = vmul.f32 %v730, %v1093
  %v1179 = vmul.f32 %v731, %v1095
  %v1180 = vmul.f32 %v732, %v1097
  %v1181 = vmul.f32 %v733, %v1099
  %v1182 = vmul.f32 %v734, %v1101
  %v1183 = vmul.f32 %v735, %v1103
  %v1184 = vmul.f32 %v736, %v1105
  %v1185 = vmul.f32 %v737, %v1107
  %v1186 = vmul.f32 %v738, %v1109
  %v1187 = vmul.f32 %v739, %v1111
  %v1188 = vmul.f32 %v740, %v1113
  %v1189 = vmul.f32 %v741, %v1115
  %v1190 = vmul.f32 %v742, %v1117
  %v1191 = vmul.f32 %v743, %v1119
  %v1192 = vmul.f32 %v744, %v1121
  %v1193 = vmul.f32 %v745, %v1123
  %v1194 = vmul.f32 %v746, %v1125
  %v1195 = vmul.f32 %v747, %v1127
  %v1196 = vmul.f32 %v748, %v1129
  %v1197 = vmul.f32 %v749, %v1131
  %v1198 = vmul.f32 %v750, %v1133
  %v1199 = vmul.f32 %v751, %v1135
  %v1200 = vpack.c.bf16 %v1137, %v1136
  %v1201 = vpack.c.bf16 %v1139, %v1138
  %v1202 = vpack.c.bf16 %v1141, %v1140
  %v1203 = vpack.c.bf16 %v1143, %v1142
  %v1204 = vpack.c.bf16 %v1145, %v1144
  %v1205 = vpack.c.bf16 %v1147, %v1146
  %v1206 = vpack.c.bf16 %v1149, %v1148
  %v1207 = vpack.c.bf16 %v1151, %v1150
  %v1208 = vpack.c.bf16 %v1153, %v1152
  %v1209 = vpack.c.bf16 %v1155, %v1154
  %v1210 = vpack.c.bf16 %v1157, %v1156
  %v1211 = vpack.c.bf16 %v1159, %v1158
  %v1212 = vpack.c.bf16 %v1161, %v1160
  %v1213 = vpack.c.bf16 %v1163, %v1162
  %v1214 = vpack.c.bf16 %v1165, %v1164
  %v1215 = vpack.c.bf16 %v1167, %v1166
  %v1216 = vpack.c.bf16 %v1169, %v1168
  %v1217 = vpack.c.bf16 %v1171, %v1170
  %v1218 = vpack.c.bf16 %v1173, %v1172
  %v1219 = vpack.c.bf16 %v1175, %v1174
  %v1220 = vpack.c.bf16 %v1177, %v1176
  %v1221 = vpack.c.bf16 %v1179, %v1178
  %v1222 = vpack.c.bf16 %v1181, %v1180
  %v1223 = vpack.c.bf16 %v1183, %v1182
  %v1224 = vpack.c.bf16 %v1185, %v1184
  %v1225 = vpack.c.bf16 %v1187, %v1186
  %v1226 = vpack.c.bf16 %v1189, %v1188
  %v1227 = vpack.c.bf16 %v1191, %v1190
  %v1228 = vpack.c.bf16 %v1193, %v1192
  %v1229 = vpack.c.bf16 %v1195, %v1194
  %v1230 = vpack.c.bf16 %v1197, %v1196
  %v1231 = vpack.c.bf16 %v1199, %v1198
  %v1232 = vld [vmem:[%s3] sm:$0xf]
  %v1233 = vld [vmem:[%s3 + $0x4] sm:$0xf]
  %v1234 = vld [vmem:[%s3 + $0x8] sm:$0xf]
  %v1235 = vld [vmem:[%s3 + $0xc] sm:$0xf]
  %v1240 = vunpack.c.l.b16 %v1232
  %v1241 = vunpack.c.l.b16 %v1233
  %v1242 = vunpack.c.l.b16 %v1234
  %v1243 = vunpack.c.l.b16 %v1235
  %v1244 = vpack.c.b16 %v1241, %v1240
  %v1245 = vpack.c.b16 %v1243, %v1242
  %v1249 = vsel %vm146, %v1200, 0
  %v1252 = vsel %vm146, %v1201, 0
  %v1255 = vsel %vm146, %v1202, 0
  %v1258 = vsel %vm146, %v1203, 0
  %v1261 = vsel %vm146, %v1204, 0
  %v1264 = vsel %vm146, %v1205, 0
  %v1267 = vsel %vm146, %v1206, 0
  %v1270 = vsel %vm146, %v1207, 0
  %v1273 = vsel %vm146, %v1208, 0
  %v1276 = vsel %vm146, %v1209, 0
  %v1279 = vsel %vm146, %v1210, 0
  %v1282 = vsel %vm146, %v1211, 0
  %v1285 = vsel %vm146, %v1212, 0
  %v1288 = vsel %vm146, %v1213, 0
  %v1291 = vsel %vm146, %v1214, 0
  %v1294 = vsel %vm146, %v1215, 0
  %v1297 = vsel %vm146, %v1216, 0
  %v1300 = vsel %vm146, %v1217, 0
  %v1303 = vsel %vm146, %v1218, 0
  %v1306 = vsel %vm146, %v1219, 0
  %v1309 = vsel %vm146, %v1220, 0
  %v1312 = vsel %vm146, %v1221, 0
  %v1315 = vsel %vm146, %v1222, 0
  %v1318 = vsel %vm146, %v1223, 0
  %v1321 = vsel %vm146, %v1224, 0
  %v1324 = vsel %vm146, %v1225, 0
  %v1327 = vsel %vm146, %v1226, 0
  %v1330 = vsel %vm146, %v1227, 0
  %v1333 = vsel %vm146, %v1228, 0
  %v1336 = vsel %vm146, %v1229, 0
  %v1339 = vsel %vm146, %v1230, 0
  %v1342 = vsel %vm146, %v1231, 0
  %1344 = vmatprep.subr.bf16.mxu0 0
  %1345 = vmatpush1.bf16.msra.mxu0 %v1244
  %1346 = vmatprep.subr.bf16.mxu0 0
  %1347 = vmatpush1.bf16.msra.mxu0 %v1245
  %1348 = vmatprep.subr.bf16.mxu0 0
  %1349 = vmatpush1.bf16.msra.mxu0 0
  %1350 = vmatprep.subr.bf16.mxu0 0
  %1351 = vmatpush1.bf16.msra.mxu0 0
  %1352 = vmatprep.subr.bf16.mxu0 0
  %1353 = vmatpush1.bf16.msra.mxu0 0
  %1354 = vmatprep.subr.bf16.mxu0 0
  %1355 = vmatpush1.bf16.msra.mxu0 0
  %1356 = vmatprep.subr.bf16.mxu0 0
  %1357 = vmatpush1.bf16.msra.mxu0 0
  %1358 = vmatprep.subr.bf16.mxu0 0
  %1359 = vmatpush1.bf16.msra.mxu0 0
  %1360 = vmatprep.subr.bf16.mxu0 0
  %1361 = vmatpush1.bf16.msra.mxu0 0
  %1362 = vmatprep.subr.bf16.mxu0 0
  %1363 = vmatpush1.bf16.msra.mxu0 0
  %1364 = vmatprep.subr.bf16.mxu0 0
  %1365 = vmatpush1.bf16.msra.mxu0 0
  %1366 = vmatprep.subr.bf16.mxu0 0
  %1367 = vmatpush1.bf16.msra.mxu0 0
  %1368 = vmatprep.subr.bf16.mxu0 0
  %1369 = vmatpush1.bf16.msra.mxu0 0
  %1370 = vmatprep.subr.bf16.mxu0 0
  %1371 = vmatpush1.bf16.msra.mxu0 0
  %1372 = vmatprep.subr.bf16.mxu0 0
  %1373 = vmatpush1.bf16.msra.mxu0 0
  %1374 = vmatprep.subr.bf16.mxu0 0
  %1375 = vmatpush1.bf16.msra.mxu0 0
  %1376 = vmatprep.mubr.bf16.mxu0 0
  %1377 = vmatmul.mubr.bf16.gmra.mrb[0].mxu0 %v1249
  %v1378 = vpop.f32.mrb[0].mxu0
  %v1379 = vadd.f32 0.0, %v1378
  %v1380 = vpop.f32.mrb[0].mxu0
  %v1381 = vpop.f32.mrb[0].mxu0
  %v1382 = vadd.f32 0.0, %v1381
  %v1383 = vpop.f32.mrb[0].mxu0
  %1384 = vmatprep.mubr.bf16.mxu0 0
  %1385 = vmatmul.mubr.bf16.gmra.mrb[0].mxu0 %v1252
  %v1386 = vpop.f32.mrb[0].mxu0
  %v1387 = vadd.f32 0.0, %v1386
  %v1388 = vpop.f32.mrb[0].mxu0
  %v1389 = vpop.f32.mrb[0].mxu0
  %v1390 = vadd.f32 0.0, %v1389
  %v1391 = vpop.f32.mrb[0].mxu0
  %1392 = vmatprep.mubr.bf16.mxu0 0
  %1393 = vmatmul.mubr.bf16.gmra.mrb[0].mxu0 %v1255
  %v1394 = vpop.f32.mrb[0].mxu0
  %v1395 = vadd.f32 0.0, %v1394
  %v1396 = vpop.f32.mrb[0].mxu0
  %v1397 = vpop.f32.mrb[0].mxu0
  %v1398 = vadd.f32 0.0, %v1397
  %v1399 = vpop.f32.mrb[0].mxu0
  %1400 = vmatprep.mubr.bf16.mxu0 0
  %1401 = vmatmul.mubr.bf16.gmra.mrb[0].mxu0 %v1258
  %v1402 = vpop.f32.mrb[0].mxu0
  %v1403 = vadd.f32 0.0, %v1402
  %v1404 = vpop.f32.mrb[0].mxu0
  %v1405 = vpop.f32.mrb[0].mxu0
  %v1406 = vadd.f32 0.0, %v1405
  %v1407 = vpop.f32.mrb[0].mxu0
  %1408 = vmatprep.mubr.bf16.mxu0 0
  %1409 = vmatmul.mubr.bf16.gmra.mrb[0].mxu0 %v1261
  %v1410 = vpop.f32.mrb[0].mxu0
  %v1411 = vadd.f32 0.0, %v1410
  %v1412 = vpop.f32.mrb[0].mxu0
  %v1413 = vpop.f32.mrb[0].mxu0
  %v1414 = vadd.f32 0.0, %v1413
  %v1415 = vpop.f32.mrb[0].mxu0
  %1416 = vmatprep.mubr.bf16.mxu0 0
  %1417 = vmatmul.mubr.bf16.gmra.mrb[0].mxu0 %v1264
  %v1418 = vpop.f32.mrb[0].mxu0
  %v1419 = vadd.f32 0.0, %v1418
  %v1420 = vpop.f32.mrb[0].mxu0
  %v1421 = vpop.f32.mrb[0].mxu0
  %v1422 = vadd.f32 0.0, %v1421
  %v1423 = vpop.f32.mrb[0].mxu0
  %1424 = vmatprep.mubr.bf16.mxu0 0
  %1425 = vmatmul.mubr.bf16.gmra.mrb[0].mxu0 %v1267
  %v1426 = vpop.f32.mrb[0].mxu0
  %v1427 = vadd.f32 0.0, %v1426
  %v1428 = vpop.f32.mrb[0].mxu0
  %v1429 = vpop.f32.mrb[0].mxu0
  %v1430 = vadd.f32 0.0, %v1429
  %v1431 = vpop.f32.mrb[0].mxu0
  %1432 = vmatprep.mubr.bf16.mxu0 0
  %1433 = vmatmul.mubr.bf16.gmra.mrb[0].mxu0 %v1270
  %v1434 = vpop.f32.mrb[0].mxu0
  %v1435 = vadd.f32 0.0, %v1434
  %v1436 = vpop.f32.mrb[0].mxu0
  %v1437 = vpop.f32.mrb[0].mxu0
  %v1438 = vadd.f32 0.0, %v1437
  %v1439 = vpop.f32.mrb[0].mxu0
  %1440 = vmatprep.mubr.bf16.mxu0 0
  %1441 = vmatmul.mubr.bf16.gmra.mrb[0].mxu0 %v1273
  %v1442 = vpop.f32.mrb[0].mxu0
  %v1443 = vadd.f32 0.0, %v1442
  %v1444 = vpop.f32.mrb[0].mxu0
  %v1445 = vpop.f32.mrb[0].mxu0
  %v1446 = vadd.f32 0.0, %v1445
  %v1447 = vpop.f32.mrb[0].mxu0
  %1448 = vmatprep.mubr.bf16.mxu0 0
  %1449 = vmatmul.mubr.bf16.gmra.mrb[0].mxu0 %v1276
  %v1450 = vpop.f32.mrb[0].mxu0
  %v1451 = vadd.f32 0.0, %v1450
  %v1452 = vpop.f32.mrb[0].mxu0
  %v1453 = vpop.f32.mrb[0].mxu0
  %v1454 = vadd.f32 0.0, %v1453
  %v1455 = vpop.f32.mrb[0].mxu0
  %1456 = vmatprep.mubr.bf16.mxu0 0
  %1457 = vmatmul.mubr.bf16.gmra.mrb[0].mxu0 %v1279
  %v1458 = vpop.f32.mrb[0].mxu0
  %v1459 = vadd.f32 0.0, %v1458
  %v1460 = vpop.f32.mrb[0].mxu0
  %v1461 = vpop.f32.mrb[0].mxu0
  %v1462 = vadd.f32 0.0, %v1461
  %v1463 = vpop.f32.mrb[0].mxu0
  %1464 = vmatprep.mubr.bf16.mxu0 0
  %1465 = vmatmul.mubr.bf16.gmra.mrb[0].mxu0 %v1282
  %v1466 = vpop.f32.mrb[0].mxu0
  %v1467 = vadd.f32 0.0, %v1466
  %v1468 = vpop.f32.mrb[0].mxu0
  %v1469 = vpop.f32.mrb[0].mxu0
  %v1470 = vadd.f32 0.0, %v1469
  %v1471 = vpop.f32.mrb[0].mxu0
  %1472 = vmatprep.mubr.bf16.mxu0 0
  %1473 = vmatmul.mubr.bf16.gmra.mrb[0].mxu0 %v1285
  %v1474 = vpop.f32.mrb[0].mxu0
  %v1475 = vadd.f32 0.0, %v1474
  %v1476 = vpop.f32.mrb[0].mxu0
  %v1477 = vpop.f32.mrb[0].mxu0
  %v1478 = vadd.f32 0.0, %v1477
  %v1479 = vpop.f32.mrb[0].mxu0
  %1480 = vmatprep.mubr.bf16.mxu0 0
  %1481 = vmatmul.mubr.bf16.gmra.mrb[0].mxu0 %v1288
  %v1482 = vpop.f32.mrb[0].mxu0
  %v1483 = vadd.f32 0.0, %v1482
  %v1484 = vpop.f32.mrb[0].mxu0
  %v1485 = vpop.f32.mrb[0].mxu0
  %v1486 = vadd.f32 0.0, %v1485
  %v1487 = vpop.f32.mrb[0].mxu0
  %1488 = vmatprep.mubr.bf16.mxu0 0
  %1489 = vmatmul.mubr.bf16.gmra.mrb[0].mxu0 %v1291
  %v1490 = vpop.f32.mrb[0].mxu0
  %v1491 = vadd.f32 0.0, %v1490
  %v1492 = vpop.f32.mrb[0].mxu0
  %v1493 = vpop.f32.mrb[0].mxu0
  %v1494 = vadd.f32 0.0, %v1493
  %v1495 = vpop.f32.mrb[0].mxu0
  %1496 = vmatprep.mubr.bf16.mxu0 0
  %1497 = vmatmul.mubr.bf16.gmra.mrb[0].mxu0 %v1294
  %v1498 = vpop.f32.mrb[0].mxu0
  %v1499 = vadd.f32 0.0, %v1498
  %v1500 = vpop.f32.mrb[0].mxu0
  %v1501 = vpop.f32.mrb[0].mxu0
  %v1502 = vadd.f32 0.0, %v1501
  %v1503 = vpop.f32.mrb[0].mxu0
  %1504 = vmatprep.mubr.bf16.mxu0 0
  %1505 = vmatmul.mubr.bf16.gmra.mrb[0].mxu0 %v1297
  %v1506 = vpop.f32.mrb[0].mxu0
  %v1507 = vadd.f32 0.0, %v1506
  %v1508 = vpop.f32.mrb[0].mxu0
  %v1509 = vpop.f32.mrb[0].mxu0
  %v1510 = vadd.f32 0.0, %v1509
  %v1511 = vpop.f32.mrb[0].mxu0
  %1512 = vmatprep.mubr.bf16.mxu0 0
  %1513 = vmatmul.mubr.bf16.gmra.mrb[0].mxu0 %v1300
  %v1514 = vpop.f32.mrb[0].mxu0
  %v1515 = vadd.f32 0.0, %v1514
  %v1516 = vpop.f32.mrb[0].mxu0
  %v1517 = vpop.f32.mrb[0].mxu0
  %v1518 = vadd.f32 0.0, %v1517
  %v1519 = vpop.f32.mrb[0].mxu0
  %1520 = vmatprep.mubr.bf16.mxu0 0
  %1521 = vmatmul.mubr.bf16.gmra.mrb[0].mxu0 %v1303
  %v1522 = vpop.f32.mrb[0].mxu0
  %v1523 = vadd.f32 0.0, %v1522
  %v1524 = vpop.f32.mrb[0].mxu0
  %v1525 = vpop.f32.mrb[0].mxu0
  %v1526 = vadd.f32 0.0, %v1525
  %v1527 = vpop.f32.mrb[0].mxu0
  %1528 = vmatprep.mubr.bf16.mxu0 0
  %1529 = vmatmul.mubr.bf16.gmra.mrb[0].mxu0 %v1306
  %v1530 = vpop.f32.mrb[0].mxu0
  %v1531 = vadd.f32 0.0, %v1530
  %v1532 = vpop.f32.mrb[0].mxu0
  %v1533 = vpop.f32.mrb[0].mxu0
  %v1534 = vadd.f32 0.0, %v1533
  %v1535 = vpop.f32.mrb[0].mxu0
  %1536 = vmatprep.mubr.bf16.mxu0 0
  %1537 = vmatmul.mubr.bf16.gmra.mrb[0].mxu0 %v1309
  %v1538 = vpop.f32.mrb[0].mxu0
  %v1539 = vadd.f32 0.0, %v1538
  %v1540 = vpop.f32.mrb[0].mxu0
  %v1541 = vpop.f32.mrb[0].mxu0
  %v1542 = vadd.f32 0.0, %v1541
  %v1543 = vpop.f32.mrb[0].mxu0
  %1544 = vmatprep.mubr.bf16.mxu0 0
  %1545 = vmatmul.mubr.bf16.gmra.mrb[0].mxu0 %v1312
  %v1546 = vpop.f32.mrb[0].mxu0
  %v1547 = vadd.f32 0.0, %v1546
  %v1548 = vpop.f32.mrb[0].mxu0
  %v1549 = vpop.f32.mrb[0].mxu0
  %v1550 = vadd.f32 0.0, %v1549
  %v1551 = vpop.f32.mrb[0].mxu0
  %1552 = vmatprep.mubr.bf16.mxu0 0
  %1553 = vmatmul.mubr.bf16.gmra.mrb[0].mxu0 %v1315
  %v1554 = vpop.f32.mrb[0].mxu0
  %v1555 = vadd.f32 0.0, %v1554
  %v1556 = vpop.f32.mrb[0].mxu0
  %v1557 = vpop.f32.mrb[0].mxu0
  %v1558 = vadd.f32 0.0, %v1557
  %v1559 = vpop.f32.mrb[0].mxu0
  %1560 = vmatprep.mubr.bf16.mxu0 0
  %1561 = vmatmul.mubr.bf16.gmra.mrb[0].mxu0 %v1318
  %v1562 = vpop.f32.mrb[0].mxu0
  %v1563 = vadd.f32 0.0, %v1562
  %v1564 = vpop.f32.mrb[0].mxu0
  %v1565 = vpop.f32.mrb[0].mxu0
  %v1566 = vadd.f32 0.0, %v1565
  %v1567 = vpop.f32.mrb[0].mxu0
  %1568 = vmatprep.mubr.bf16.mxu0 0
  %1569 = vmatmul.mubr.bf16.gmra.mrb[0].mxu0 %v1321
  %v1570 = vpop.f32.mrb[0].mxu0
  %v1571 = vadd.f32 0.0, %v1570
  %v1572 = vpop.f32.mrb[0].mxu0
  %v1573 = vpop.f32.mrb[0].mxu0
  %v1574 = vadd.f32 0.0, %v1573
  %v1575 = vpop.f32.mrb[0].mxu0
  %1576 = vmatprep.mubr.bf16.mxu0 0
  %1577 = vmatmul.mubr.bf16.gmra.mrb[0].mxu0 %v1324
  %v1578 = vpop.f32.mrb[0].mxu0
  %v1579 = vadd.f32 0.0, %v1578
  %v1580 = vpop.f32.mrb[0].mxu0
  %v1581 = vpop.f32.mrb[0].mxu0
  %v1582 = vadd.f32 0.0, %v1581
  %v1583 = vpop.f32.mrb[0].mxu0
  %1584 = vmatprep.mubr.bf16.mxu0 0
  %1585 = vmatmul.mubr.bf16.gmra.mrb[0].mxu0 %v1327
  %v1586 = vpop.f32.mrb[0].mxu0
  %v1587 = vadd.f32 0.0, %v1586
  %v1588 = vpop.f32.mrb[0].mxu0
  %v1589 = vpop.f32.mrb[0].mxu0
  %v1590 = vadd.f32 0.0, %v1589
  %v1591 = vpop.f32.mrb[0].mxu0
  %1592 = vmatprep.mubr.bf16.mxu0 0
  %1593 = vmatmul.mubr.bf16.gmra.mrb[0].mxu0 %v1330
  %v1594 = vpop.f32.mrb[0].mxu0
  %v1595 = vadd.f32 0.0, %v1594
  %v1596 = vpop.f32.mrb[0].mxu0
  %v1597 = vpop.f32.mrb[0].mxu0
  %v1598 = vadd.f32 0.0, %v1597
  %v1599 = vpop.f32.mrb[0].mxu0
  %1600 = vmatprep.mubr.bf16.mxu0 0
  %1601 = vmatmul.mubr.bf16.gmra.mrb[0].mxu0 %v1333
  %v1602 = vpop.f32.mrb[0].mxu0
  %v1603 = vadd.f32 0.0, %v1602
  %v1604 = vpop.f32.mrb[0].mxu0
  %v1605 = vpop.f32.mrb[0].mxu0
  %v1606 = vadd.f32 0.0, %v1605
  %v1607 = vpop.f32.mrb[0].mxu0
  %1608 = vmatprep.mubr.bf16.mxu0 0
  %1609 = vmatmul.mubr.bf16.gmra.mrb[0].mxu0 %v1336
  %v1610 = vpop.f32.mrb[0].mxu0
  %v1611 = vadd.f32 0.0, %v1610
  %v1612 = vpop.f32.mrb[0].mxu0
  %v1613 = vpop.f32.mrb[0].mxu0
  %v1614 = vadd.f32 0.0, %v1613
  %v1615 = vpop.f32.mrb[0].mxu0
  %1616 = vmatprep.mubr.bf16.mxu0 0
  %1617 = vmatmul.mubr.bf16.gmra.mrb[0].mxu0 %v1339
  %v1618 = vpop.f32.mrb[0].mxu0
  %v1619 = vadd.f32 0.0, %v1618
  %v1620 = vpop.f32.mrb[0].mxu0
  %v1621 = vpop.f32.mrb[0].mxu0
  %v1622 = vadd.f32 0.0, %v1621
  %v1623 = vpop.f32.mrb[0].mxu0
  %1624 = vmatprep.mubr.bf16.mxu0 0
  %1625 = vmatmul.mubr.bf16.gmra.mrb[0].mxu0 %v1342
  %v1626 = vpop.f32.mrb[0].mxu0
  %v1627 = vadd.f32 0.0, %v1626
  %v1628 = vpop.f32.mrb[0].mxu0
  %v1629 = vpop.f32.mrb[0].mxu0
  %v1630 = vadd.f32 0.0, %v1629
  %v1631 = vpop.f32.mrb[0].mxu0
  %1632 = vdwg.mxu0
  %v1633 = vpack.c.bf16 %v1382, %v1379
  %v1634 = vpack.c.bf16 %v1390, %v1387
  %v1635 = vpack.c.bf16 %v1398, %v1395
  %v1636 = vpack.c.bf16 %v1406, %v1403
  %v1637 = vpack.c.bf16 %v1414, %v1411
  %v1638 = vpack.c.bf16 %v1422, %v1419
  %v1639 = vpack.c.bf16 %v1430, %v1427
  %v1640 = vpack.c.bf16 %v1438, %v1435
  %v1641 = vpack.c.bf16 %v1446, %v1443
  %v1642 = vpack.c.bf16 %v1454, %v1451
  %v1643 = vpack.c.bf16 %v1462, %v1459
  %v1644 = vpack.c.bf16 %v1470, %v1467
  %v1645 = vpack.c.bf16 %v1478, %v1475
  %v1646 = vpack.c.bf16 %v1486, %v1483
  %v1647 = vpack.c.bf16 %v1494, %v1491
  %v1648 = vpack.c.bf16 %v1502, %v1499
  %v1649 = vpack.c.bf16 %v1510, %v1507
  %v1650 = vpack.c.bf16 %v1518, %v1515
  %v1651 = vpack.c.bf16 %v1526, %v1523
  %v1652 = vpack.c.bf16 %v1534, %v1531
  %v1653 = vpack.c.bf16 %v1542, %v1539
  %v1654 = vpack.c.bf16 %v1550, %v1547
  %v1655 = vpack.c.bf16 %v1558, %v1555
  %v1656 = vpack.c.bf16 %v1566, %v1563
  %v1657 = vpack.c.bf16 %v1574, %v1571
  %v1658 = vpack.c.bf16 %v1582, %v1579
  %v1659 = vpack.c.bf16 %v1590, %v1587
  %v1660 = vpack.c.bf16 %v1598, %v1595
  %v1661 = vpack.c.bf16 %v1606, %v1603
  %v1662 = vpack.c.bf16 %v1614, %v1611
  %v1663 = vpack.c.bf16 %v1622, %v1619
  %v1664 = vpack.c.bf16 %v1630, %v1627
  %v1697 = vunpack.c.l.b16 %v1633
  %v1698 = vunpack.c.h.b16 %v1633
  %v1699 = vunpack.c.l.b16 %v1634
  %v1700 = vunpack.c.h.b16 %v1634
  %v1701 = vunpack.c.l.b16 %v1635
  %v1702 = vunpack.c.h.b16 %v1635
  %v1703 = vunpack.c.l.b16 %v1636
  %v1704 = vunpack.c.h.b16 %v1636
  %v1705 = vunpack.c.l.b16 %v1637
  %v1706 = vunpack.c.h.b16 %v1637
  %v1707 = vunpack.c.l.b16 %v1638
  %v1708 = vunpack.c.h.b16 %v1638
  %v1709 = vunpack.c.l.b16 %v1639
  %v1710 = vunpack.c.h.b16 %v1639
  %v1711 = vunpack.c.l.b16 %v1640
  %v1712 = vunpack.c.h.b16 %v1640
  %v1713 = vunpack.c.l.b16 %v1641
  %v1714 = vunpack.c.h.b16 %v1641
  %v1715 = vunpack.c.l.b16 %v1642
  %v1716 = vunpack.c.h.b16 %v1642
  %v1717 = vunpack.c.l.b16 %v1643
  %v1718 = vunpack.c.h.b16 %v1643
  %v1719 = vunpack.c.l.b16 %v1644
  %v1720 = vunpack.c.h.b16 %v1644
  %v1721 = vunpack.c.l.b16 %v1645
  %v1722 = vunpack.c.h.b16 %v1645
  %v1723 = vunpack.c.l.b16 %v1646
  %v1724 = vunpack.c.h.b16 %v1646
  %v1725 = vunpack.c.l.b16 %v1647
  %v1726 = vunpack.c.h.b16 %v1647
  %v1727 = vunpack.c.l.b16 %v1648
  %v1728 = vunpack.c.h.b16 %v1648
  %v1729 = vunpack.c.l.b16 %v1649
  %v1730 = vunpack.c.h.b16 %v1649
  %v1731 = vunpack.c.l.b16 %v1650
  %v1732 = vunpack.c.h.b16 %v1650
  %v1733 = vunpack.c.l.b16 %v1651
  %v1734 = vunpack.c.h.b16 %v1651
  %v1735 = vunpack.c.l.b16 %v1652
  %v1736 = vunpack.c.h.b16 %v1652
  %v1737 = vunpack.c.l.b16 %v1653
  %v1738 = vunpack.c.h.b16 %v1653
  %v1739 = vunpack.c.l.b16 %v1654
  %v1740 = vunpack.c.h.b16 %v1654
  %v1741 = vunpack.c.l.b16 %v1655
  %v1742 = vunpack.c.h.b16 %v1655
  %v1743 = vunpack.c.l.b16 %v1656
  %v1744 = vunpack.c.h.b16 %v1656
  %v1745 = vunpack.c.l.b16 %v1657
  %v1746 = vunpack.c.h.b16 %v1657
  %v1747 = vunpack.c.l.b16 %v1658
  %v1748 = vunpack.c.h.b16 %v1658
  %v1749 = vunpack.c.l.b16 %v1659
  %v1750 = vunpack.c.h.b16 %v1659
  %v1751 = vunpack.c.l.b16 %v1660
  %v1752 = vunpack.c.h.b16 %v1660
  %v1753 = vunpack.c.l.b16 %v1661
  %v1754 = vunpack.c.h.b16 %v1661
  %v1755 = vunpack.c.l.b16 %v1662
  %v1756 = vunpack.c.h.b16 %v1662
  %v1757 = vunpack.c.l.b16 %v1663
  %v1758 = vunpack.c.h.b16 %v1663
  %v1759 = vunpack.c.l.b16 %v1664
  %v1760 = vunpack.c.h.b16 %v1664
  %v1761 = vpack.c.b16 %v1697, %v1697
  %v1762 = vpack.c.b16 %v1698, %v1698
  %v1763 = vpack.c.b16 %v1699, %v1699
  %v1764 = vpack.c.b16 %v1700, %v1700
  %v1765 = vpack.c.b16 %v1701, %v1701
  %v1766 = vpack.c.b16 %v1702, %v1702
  %v1767 = vpack.c.b16 %v1703, %v1703
  %v1768 = vpack.c.b16 %v1704, %v1704
  %v1769 = vpack.c.b16 %v1705, %v1705
  %v1770 = vpack.c.b16 %v1706, %v1706
  %v1771 = vpack.c.b16 %v1707, %v1707
  %v1772 = vpack.c.b16 %v1708, %v1708
  %v1773 = vpack.c.b16 %v1709, %v1709
  %v1774 = vpack.c.b16 %v1710, %v1710
  %v1775 = vpack.c.b16 %v1711, %v1711
  %v1776 = vpack.c.b16 %v1712, %v1712
  %v1777 = vpack.c.b16 %v1713, %v1713
  %v1778 = vpack.c.b16 %v1714, %v1714
  %v1779 = vpack.c.b16 %v1715, %v1715
  %v1780 = vpack.c.b16 %v1716, %v1716
  %v1781 = vpack.c.b16 %v1717, %v1717
  %v1782 = vpack.c.b16 %v1718, %v1718
  %v1783 = vpack.c.b16 %v1719, %v1719
  %v1784 = vpack.c.b16 %v1720, %v1720
  %v1785 = vpack.c.b16 %v1721, %v1721
  %v1786 = vpack.c.b16 %v1722, %v1722
  %v1787 = vpack.c.b16 %v1723, %v1723
  %v1788 = vpack.c.b16 %v1724, %v1724
  %v1789 = vpack.c.b16 %v1725, %v1725
  %v1790 = vpack.c.b16 %v1726, %v1726
  %v1791 = vpack.c.b16 %v1727, %v1727
  %v1792 = vpack.c.b16 %v1728, %v1728
  %v1793 = vpack.c.b16 %v1729, %v1729
  %v1794 = vpack.c.b16 %v1730, %v1730
  %v1795 = vpack.c.b16 %v1731, %v1731
  %v1796 = vpack.c.b16 %v1732, %v1732
  %v1797 = vpack.c.b16 %v1733, %v1733
  %v1798 = vpack.c.b16 %v1734, %v1734
  %v1799 = vpack.c.b16 %v1735, %v1735
  %v1800 = vpack.c.b16 %v1736, %v1736
  %v1801 = vpack.c.b16 %v1737, %v1737
  %v1802 = vpack.c.b16 %v1738, %v1738
  %v1803 = vpack.c.b16 %v1739, %v1739
  %v1804 = vpack.c.b16 %v1740, %v1740
  %v1805 = vpack.c.b16 %v1741, %v1741
  %v1806 = vpack.c.b16 %v1742, %v1742
  %v1807 = vpack.c.b16 %v1743, %v1743
  %v1808 = vpack.c.b16 %v1744, %v1744
  %v1809 = vpack.c.b16 %v1745, %v1745
  %v1810 = vpack.c.b16 %v1746, %v1746
  %v1811 = vpack.c.b16 %v1747, %v1747
  %v1812 = vpack.c.b16 %v1748, %v1748
  %v1813 = vpack.c.b16 %v1749, %v1749
  %v1814 = vpack.c.b16 %v1750, %v1750
  %v1815 = vpack.c.b16 %v1751, %v1751
  %v1816 = vpack.c.b16 %v1752, %v1752
  %v1817 = vpack.c.b16 %v1753, %v1753
  %v1818 = vpack.c.b16 %v1754, %v1754
  %v1819 = vpack.c.b16 %v1755, %v1755
  %v1820 = vpack.c.b16 %v1756, %v1756
  %v1821 = vpack.c.b16 %v1757, %v1757
  %v1822 = vpack.c.b16 %v1758, %v1758
  %v1823 = vpack.c.b16 %v1759, %v1759
  %v1824 = vpack.c.b16 %v1760, %v1760
  %1889 = vst [vmem:[%s4] sm:$0xf] %v1761
  %1890 = vst [vmem:[%s4 + $0x4] sm:$0xf] %v1762
  %1891 = vst [vmem:[%s4 + $0x8] sm:$0xf] %v1763
  %1892 = vst [vmem:[%s4 + $0xc] sm:$0xf] %v1764
  %1893 = vst [vmem:[%s4 + $0x10] sm:$0xf] %v1765
  %1894 = vst [vmem:[%s4 + $0x14] sm:$0xf] %v1766
  %1895 = vst [vmem:[%s4 + $0x18] sm:$0xf] %v1767
  %1896 = vst [vmem:[%s4 + $0x1c] sm:$0xf] %v1768
  %1897 = vst [vmem:[%s4 + $0x20] sm:$0xf] %v1769
  %1898 = vst [vmem:[%s4 + $0x24] sm:$0xf] %v1770
  %1899 = vst [vmem:[%s4 + $0x28] sm:$0xf] %v1771
  %1900 = vst [vmem:[%s4 + $0x2c] sm:$0xf] %v1772
  %1901 = vst [vmem:[%s4 + $0x30] sm:$0xf] %v1773
  %1902 = vst [vmem:[%s4 + $0x34] sm:$0xf] %v1774
  %1903 = vst [vmem:[%s4 + $0x38] sm:$0xf] %v1775
  %1904 = vst [vmem:[%s4 + $0x3c] sm:$0xf] %v1776
  %1905 = vst [vmem:[%s4 + $0x40] sm:$0xf] %v1777
  %1906 = vst [vmem:[%s4 + $0x44] sm:$0xf] %v1778
  %1907 = vst [vmem:[%s4 + $0x48] sm:$0xf] %v1779
  %1908 = vst [vmem:[%s4 + $0x4c] sm:$0xf] %v1780
  %1909 = vst [vmem:[%s4 + $0x50] sm:$0xf] %v1781
  %1910 = vst [vmem:[%s4 + $0x54] sm:$0xf] %v1782
  %1911 = vst [vmem:[%s4 + $0x58] sm:$0xf] %v1783
  %1912 = vst [vmem:[%s4 + $0x5c] sm:$0xf] %v1784
  %1913 = vst [vmem:[%s4 + $0x60] sm:$0xf] %v1785
  %1914 = vst [vmem:[%s4 + $0x64] sm:$0xf] %v1786
  %1915 = vst [vmem:[%s4 + $0x68] sm:$0xf] %v1787
  %1916 = vst [vmem:[%s4 + $0x6c] sm:$0xf] %v1788
  %1917 = vst [vmem:[%s4 + $0x70] sm:$0xf] %v1789
  %1918 = vst [vmem:[%s4 + $0x74] sm:$0xf] %v1790
  %1919 = vst [vmem:[%s4 + $0x78] sm:$0xf] %v1791
  %1920 = vst [vmem:[%s4 + $0x7c] sm:$0xf] %v1792
  %1921 = vst [vmem:[%s4 + $0x80] sm:$0xf] %v1793
  %1922 = vst [vmem:[%s4 + $0x84] sm:$0xf] %v1794
  %1923 = vst [vmem:[%s4 + $0x88] sm:$0xf] %v1795
  %1924 = vst [vmem:[%s4 + $0x8c] sm:$0xf] %v1796
  %1925 = vst [vmem:[%s4 + $0x90] sm:$0xf] %v1797
  %1926 = vst [vmem:[%s4 + $0x94] sm:$0xf] %v1798
  %1927 = vst [vmem:[%s4 + $0x98] sm:$0xf] %v1799
  %1928 = vst [vmem:[%s4 + $0x9c] sm:$0xf] %v1800
  %1929 = vst [vmem:[%s4 + $0xa0] sm:$0xf] %v1801
  %1930 = vst [vmem:[%s4 + $0xa4] sm:$0xf] %v1802
  %1931 = vst [vmem:[%s4 + $0xa8] sm:$0xf] %v1803
  %1932 = vst [vmem:[%s4 + $0xac] sm:$0xf] %v1804
  %1933 = vst [vmem:[%s4 + $0xb0] sm:$0xf] %v1805
  %1934 = vst [vmem:[%s4 + $0xb4] sm:$0xf] %v1806
  %1935 = vst [vmem:[%s4 + $0xb8] sm:$0xf] %v1807
  %1936 = vst [vmem:[%s4 + $0xbc] sm:$0xf] %v1808
  %1937 = vst [vmem:[%s4 + $0xc0] sm:$0xf] %v1809
  %1938 = vst [vmem:[%s4 + $0xc4] sm:$0xf] %v1810
  %1939 = vst [vmem:[%s4 + $0xc8] sm:$0xf] %v1811
  %1940 = vst [vmem:[%s4 + $0xcc] sm:$0xf] %v1812
  %1941 = vst [vmem:[%s4 + $0xd0] sm:$0xf] %v1813
  %1942 = vst [vmem:[%s4 + $0xd4] sm:$0xf] %v1814
  %1943 = vst [vmem:[%s4 + $0xd8] sm:$0xf] %v1815
  %1944 = vst [vmem:[%s4 + $0xdc] sm:$0xf] %v1816
  %1945 = vst [vmem:[%s4 + $0xe0] sm:$0xf] %v1817
  %1946 = vst [vmem:[%s4 + $0xe4] sm:$0xf] %v1818
  %1947 = vst [vmem:[%s4 + $0xe8] sm:$0xf] %v1819
  %1948 = vst [vmem:[%s4 + $0xec] sm:$0xf] %v1820
  %1949 = vst [vmem:[%s4 + $0xf0] sm:$0xf] %v1821
  %1950 = vst [vmem:[%s4 + $0xf4] sm:$0xf] %v1822
  %1951 = vst [vmem:[%s4 + $0xf8] sm:$0xf] %v1823
  %1952 = vst [vmem:[%s4 + $0xfc] sm:$0xf] %v1824
  // Predicated region
  $region18: #{image_decoder_forward.7} parent=0 // pred_check
    _
  $region19: #{image_decoder_forward.7} parent=0 // pred_check_branch
    %1954 = sbr.rel (0) target = $region21
  $region20: #{image_decoder_forward.7} parent=0 // pred_region
    _
  $region21: #{image_decoder_forward.7} parent=0 // pred_fallthru
    _
  // Predicated region
  $region22: #{image_decoder_forward.7} parent=0 // pred_check
    _
  $region23: #{image_decoder_forward.7} parent=0 // pred_check_branch
    %1956 = sbr.rel (0) target = $region25
  $region24: #{image_decoder_forward.7} parent=0 // pred_region
    _
  $region25: #{image_decoder_forward.7} parent=0 // pred_fallthru
    _

</llo_original>
